<compile_context>
chip_gen: v6e
topology: v6e:2x2x1
jax: 0.10.0
libtpu: 0.0.40
codegen_flags: <defaults>
</compile_context>

<pallas_src>
import functools

import jax
import jax.numpy as jnp
import numpy as np
from jax.experimental import pallas as pl
from jax.experimental.pallas import tpu as pltpu


# ----------------------------------------------------------------------------
# Fused forward kernel (grid-free: everything resident in VMEM/vregs)
# ----------------------------------------------------------------------------
def _seq2seq_kernel(emb_enc_ref, emb_dec_ref, w1f_ref, bw1_ref,
                    w2f_ref, bw2_ref, w1hh_ref, b1_ref, w2cat_ref, b2_ref,
                    out_wt_ref, out_b_ref,
                    logits_ref, state_ref,
                    *, batch, latent, enc_steps, dec_steps, v_pad):
    B, L = batch, latent

    def mm(a, b):
        # weights are pre-transposed outside -> no per-step relayout
        return jax.lax.dot_general(a, b, (((1,), (0,)), ((), ())),
                                   preferred_element_type=jnp.float32)

    w1hh = w1hh_ref[...]                       # (L, 4L)
    w2cat = w2cat_ref[...]                     # (2L, 4L)
    # hoisted bias broadcasts (emitted once, not once per unrolled step)
    b1_b = jnp.broadcast_to(b1_ref[...], (B, 4 * L))
    b2_b = jnp.broadcast_to(b2_ref[...], (B, 4 * L))

    # hoisted input projections; dense layer already folded into the weights
    x1p = mm(emb_enc_ref[...], w1f_ref[...]) + bw1_ref[...]   # (Te*B, 4L)
    gtp = mm(emb_dec_ref[...], w2f_ref[...]) + bw2_ref[...]   # (Td*B, 4L)

    def lstm_cell(gates, c):
        # full-width EUP transcendentals, then 32-lane i/f/g/o slices
        sg = jax.nn.sigmoid(gates)
        th = jnp.tanh(gates)
        i = sg[:, 0 * L:1 * L]
        f = sg[:, 1 * L:2 * L]
        g = th[:, 2 * L:3 * L]
        o = sg[:, 3 * L:4 * L]
        c_new = f * c + i * g
        return o * jnp.tanh(c_new), c_new

    zeros = jnp.zeros((B, L), jnp.float32)
    h1, c1, h2, c2 = zeros, zeros, zeros, zeros

    # ---- encoder: both layers fused per step (static -> fully unrolled) ----
    for t in range(enc_steps):
        g1 = x1p[t * B:(t + 1) * B, :] + mm(h1, w1hh)
        h1, c1 = lstm_cell(g1, c1)
        # layer-2 input is concat([0, out1]): zero half dropped; the out1-input
        # and hidden matmuls are fused into a single (B,2L)x(2L,4L) matmul.
        g2 = mm(jnp.concatenate([h1, h2], axis=-1), w2cat) + b2_b
        h2, c2 = lstm_cell(g2, c2)

    out_wt = out_wt_ref[...]                                  # (L, Vpad)
    out_b_b = jnp.broadcast_to(out_b_ref[...], (B, v_pad))

    # ---- decoder ------------------------------------------------------------
    for t in range(dec_steps):
        # layer-1 input is all zeros -> no input matmul at all
        g1 = mm(h1, w1hh) + b1_b
        h1, c1 = lstm_cell(g1, c1)
        g2 = gtp[t * B:(t + 1) * B, :] + mm(
            jnp.concatenate([h1, h2], axis=-1), w2cat)
        h2, c2 = lstm_cell(g2, c2)
        # lane-dense full-slice store; independent of the recurrence chain so
        # the scheduler can hide it under the next step's matmuls.
        logits_ref[t] = mm(h2, out_wt) + out_b_b

    # one merged state slab instead of four tiny outputs
    state_ref[...] = jnp.concatenate([h1, c1, h2, c2], axis=-1)   # (B, 4L)


# ----------------------------------------------------------------------------
# One-time parameter prep (transposes + algebraic fusions, outside the hot path)
# ----------------------------------------------------------------------------
def prepare_params(params, *, latent_dim, num_tokens):
    L = latent_dim
    V = num_tokens
    v_pad = ((V + 127) // 128) * 128

    dense_wt = params["dense_w"].T                  # (C, L)
    dense_b = params["dense_b"]                     # (L,)
    w1ih_t = params["lstm1_wih"].T                  # (L, 4L)
    w1hh_t = params["lstm1_whh"].T                  # (L, 4L)
    w2ih_gt_t = params["lstm2_wih"][:, :L].T        # (L, 4L)  ground-truth half
    w2ih_h_t = params["lstm2_wih"][:, L:].T         # (L, 4L)  out1 half
    w2hh_t = params["lstm2_whh"].T                  # (L, 4L)
    b1 = params["lstm1_b"]
    b2 = params["lstm2_b"]

    # fold the dense layer into the hoisted input projections
    w1f = dense_wt @ w1ih_t                         # (C, 4L)
    bw1 = dense_b @ w1ih_t + b1                     # (4L,)
    w2f = dense_wt @ w2ih_gt_t                      # (C, 4L)
    bw2 = dense_b @ w2ih_gt_t + b2                  # (4L,)
    # fuse the two per-step layer-2 hidden matmuls
    w2cat = jnp.concatenate([w2ih_h_t, w2hh_t], axis=0)   # (2L, 4L)

    # lane-dense (padded to a multiple of 128) vocab projection
    out_wt_pad = jnp.zeros((L, v_pad), jnp.float32).at[:, :V].set(params["out_w"].T)
    out_b_pad = jnp.zeros((v_pad,), jnp.float32).at[:V].set(params["out_b"])

    return dict(
        embedding=params["embedding"],
        w1f=w1f, bw1=bw1.reshape(1, -1),
        w2f=w2f, bw2=bw2.reshape(1, -1),
        w1hh=w1hh_t, b1=b1.reshape(1, -1),
        w2cat=w2cat, b2=b2.reshape(1, -1),
        out_wt=out_wt_pad, out_b=out_b_pad.reshape(1, -1),
    )


# ----------------------------------------------------------------------------
# Per-call wrapper: 2 gathers + 1 pallas_call + slices
# ----------------------------------------------------------------------------
def new_seq2seq_forward(prep, inputs, targets, *, latent_dim, num_tokens,
                        time_steps):
    """inputs: (T_enc, B) int32, targets: (time_steps, B) int32.
    Returns (logits (time_steps,B,V), hidden1=(h,c), hidden2=(h,c))."""
    L = latent_dim
    t_enc, batch = inputs.shape
    t_dec = time_steps
    v_pad = ((num_tokens + 127) // 128) * 128

    emb_enc2d = jnp.take(prep["embedding"], inputs.reshape(-1), axis=0)   # (Te*B, C)
    emb_dec2d = jnp.take(prep["embedding"], targets.reshape(-1), axis=0)  # (Td*B, C)

    kernel = functools.partial(_seq2seq_kernel, batch=batch, latent=L,
                               enc_steps=t_enc, dec_steps=t_dec, v_pad=v_pad)

    vmem = pl.BlockSpec(memory_space=pltpu.MemorySpace.VMEM)
    # Total resident footprint (weights + projections + outputs) << 1 MB,
    # far below default scoped VMEM on v5e/v6e/v7x -> grid-free single block,
    # no vmem_limit_bytes needed.
    logits_pad, states = pl.pallas_call(
        kernel,
        out_shape=(jax.ShapeDtypeStruct((t_dec, batch, v_pad), jnp.float32),
                   jax.ShapeDtypeStruct((batch, 4 * L), jnp.float32)),
        in_specs=[vmem] * 12,
        out_specs=(vmem, vmem),
    )(emb_enc2d, emb_dec2d, prep["w1f"], prep["bw1"], prep["w2f"], prep["bw2"],
      prep["w1hh"], prep["b1"], prep["w2cat"], prep["b2"],
      prep["out_wt"], prep["out_b"])

    logits = logits_pad[:, :, :num_tokens]
    dh1 = states[:, 0 * L:1 * L]
    dc1 = states[:, 1 * L:2 * L]
    dh2 = states[:, 2 * L:3 * L]
    dc2 = states[:, 3 * L:4 * L]
    # PyTorch hidden states have shape (num_layers=1, B, L)
    return logits, (dh1[None], dc1[None]), (dh2[None], dc2[None])


# ----------------------------------------------------------------------------
# Parameter init (deterministic, PyTorch-compatible shapes)
# ----------------------------------------------------------------------------
def init_params(key, num_tokens, char_dim, latent_dim):
    ks = jax.random.split(key, 12)
    u = lambda k, shape, bound: jax.random.uniform(
        k, shape, jnp.float32, -bound, bound)
    bd = 1.0 / np.sqrt(char_dim)
    bl = 1.0 / np.sqrt(latent_dim)
    return dict(
        embedding=jax.random.normal(ks[0], (num_tokens, char_dim), jnp.float32),
        dense_w=u(ks[1], (latent_dim, char_dim), bd),
        dense_b=u(ks[2], (latent_dim,), bd),
        lstm1_wih=u(ks[3], (4 * latent_dim, latent_dim), bl),
        lstm1_whh=u(ks[4], (4 * latent_dim, latent_dim), bl),
        lstm1_b=u(ks[5], (4 * latent_dim,), bl),        # b_ih + b_hh combined
        lstm2_wih=u(ks[6], (4 * latent_dim, 2 * latent_dim), bl),
        lstm2_whh=u(ks[7], (4 * latent_dim, latent_dim), bl),
        lstm2_b=u(ks[8], (4 * latent_dim,), bl),
        out_w=u(ks[9], (num_tokens, latent_dim), bl),
        out_b=u(ks[10], (num_tokens,), bl),
    )


# ----------------------------------------------------------------------------
# Pure-JAX reference (same math as the PyTorch forward; concat([0,out1]) and
# the zero decoder-L1 input handled analytically, mathematically identical).
# ----------------------------------------------------------------------------
def _ref_forward(params, inputs, targets, *, char_dim, latent_dim,
                 num_tokens, time_steps):
    L = latent_dim
    t_enc, batch = inputs.shape
    t_dec = time_steps

    emb_enc = jnp.take(params["embedding"], inputs, axis=0)
    emb_dec = jnp.take(params["embedding"], targets, axis=0)

    dense_wt = params["dense_w"].T
    w1ih_t = params["lstm1_wih"].T
    w1hh_t = params["lstm1_whh"].T
    w2ih_gt_t = params["lstm2_wih"][:, :L].T
    w2ih_h_t = params["lstm2_wih"][:, L:].T
    w2hh_t = params["lstm2_whh"].T
    out_wt = params["out_w"].T
    b1 = params["lstm1_b"]
    b2 = params["lstm2_b"]

    x_enc = emb_enc.reshape(t_enc * batch, char_dim) @ dense_wt + params["dense_b"]
    x1p = (x_enc @ w1ih_t + b1).reshape(t_enc, batch, 4 * L)
    gt = emb_dec.reshape(t_dec * batch, char_dim) @ dense_wt + params["dense_b"]
    gtp = (gt @ w2ih_gt_t + b2).reshape(t_dec, batch, 4 * L)

    def cell(gates, c):
        i = jax.nn.sigmoid(gates[:, :L])
        f = jax.nn.sigmoid(gates[:, L:2 * L])
        g = jnp.tanh(gates[:, 2 * L:3 * L])
        o = jax.nn.sigmoid(gates[:, 3 * L:])
        c = f * c + i * g
        return o * jnp.tanh(c), c

    z = jnp.zeros((batch, L), jnp.float32)
    h1, c1, h2, c2 = z, z, z, z
    for t in range(t_enc):
        h1, c1 = cell(x1p[t] + h1 @ w1hh_t, c1)
        h2, c2 = cell(h1 @ w2ih_h_t + h2 @ w2hh_t + b2, c2)
    outs = []
    for t in range(t_dec):
        h1, c1 = cell(h1 @ w1hh_t + b1, c1)
        h2, c2 = cell(gtp[t] + h1 @ w2ih_h_t + h2 @ w2hh_t, c2)
        outs.append(h2)
    dout2 = jnp.stack(outs, 0).reshape(t_dec * batch, L)
    logits = (dout2 @ out_wt + params["out_b"]).reshape(t_dec, batch, num_tokens)
    return logits, (h1[None], c1[None]), (h2[None], c2[None])


# ----------------------------------------------------------------------------
if __name__ == "__main__":
    # opt-equivalent config (small shapes), chinese=True, sos_id=1
    NUM_TOKENS = 32
    CHAR_DIM = 16
    LATENT_DIM = 32
    TIME_STEPS = 8     # opt.mxlen
    BATCH = 2

    key = jax.random.PRNGKey(0)
    pkey, ikey, tkey = jax.random.split(key, 3)
    params = init_params(pkey, NUM_TOKENS, CHAR_DIM, LATENT_DIM)

    inputs = jax.random.randint(ikey, (TIME_STEPS, BATCH), 0, NUM_TOKENS,
                                dtype=jnp.int32)
    targets = jax.random.randint(tkey, (TIME_STEPS, BATCH), 0, NUM_TOKENS,
                                 dtype=jnp.int32)

    # one-time weight prep (transposes, dense fold, w2 concat, vocab padding)
    prep = prepare_params(params, latent_dim=LATENT_DIM, num_tokens=NUM_TOKENS)
    prep = jax.tree_util.tree_map(jnp.asarray, prep)

    fwd = jax.jit(functools.partial(
        new_seq2seq_forward, latent_dim=LATENT_DIM,
        num_tokens=NUM_TOKENS, time_steps=TIME_STEPS))

    logits, hidden1, hidden2 = fwd(prep, inputs, targets)
    jax.block_until_ready((logits, hidden1, hidden2))

    # sanity check against pure-JAX reference (tolerance allows for f32
    # add-reordering from the hoisted/fused projections)
    ref_logits, ref_h1, ref_h2 = _ref_forward(
        params, inputs, targets, char_dim=CHAR_DIM, latent_dim=LATENT_DIM,
        num_tokens=NUM_TOKENS, time_steps=TIME_STEPS)
    np.testing.assert_allclose(np.asarray(logits), np.asarray(ref_logits),
                               rtol=1e-4, atol=1e-4)
    np.testing.assert_allclose(np.asarray(hidden1[0]), np.asarray(ref_h1[0]),
                               rtol=1e-4, atol=1e-4)
    np.testing.assert_allclose(np.asarray(hidden1[1]), np.asarray(ref_h1[1]),
                               rtol=1e-4, atol=1e-4)
    np.testing.assert_allclose(np.asarray(hidden2[0]), np.asarray(ref_h2[0]),
                               rtol=1e-4, atol=1e-4)
    np.testing.assert_allclose(np.asarray(hidden2[1]), np.asarray(ref_h2[1]),
                               rtol=1e-4, atol=1e-4)

    print("KERNEL_OK")
</pallas_src>

<mosaic_0001>
module attributes {stable_mosaic.version = 11 : i64} {
  func.func @_seq2seq_kernel(%arg0: memref<16x16xf32, #tpu.memory_space<vmem>>, %arg1: memref<16x16xf32, #tpu.memory_space<vmem>>, %arg2: memref<16x128xf32, #tpu.memory_space<vmem>>, %arg3: memref<1x128xf32, #tpu.memory_space<vmem>>, %arg4: memref<16x128xf32, #tpu.memory_space<vmem>>, %arg5: memref<1x128xf32, #tpu.memory_space<vmem>>, %arg6: memref<32x128xf32, #tpu.memory_space<vmem>>, %arg7: memref<1x128xf32, #tpu.memory_space<vmem>>, %arg8: memref<64x128xf32, #tpu.memory_space<vmem>>, %arg9: memref<1x128xf32, #tpu.memory_space<vmem>>, %arg10: memref<32x128xf32, #tpu.memory_space<vmem>>, %arg11: memref<1x128xf32, #tpu.memory_space<vmem>>, %arg12: memref<8x2x128xf32, #tpu.memory_space<vmem>>, %arg13: memref<2x128xf32, #tpu.memory_space<vmem>>) attributes {dimension_semantics = [], scalar_prefetch = 0 : i64, scratch_operands = 0 : i64, tpu.core_type = #tpu.core_type<tc>} {
    %c0 = arith.constant 0 : index
    %c0_0 = arith.constant 0 : index
    %0 = vector.load %arg6[%c0, %c0_0] : memref<32x128xf32, #tpu.memory_space<vmem>>, vector<32x128xf32>
    %c0_1 = arith.constant 0 : index
    %c0_2 = arith.constant 0 : index
    %1 = vector.load %arg8[%c0_1, %c0_2] : memref<64x128xf32, #tpu.memory_space<vmem>>, vector<64x128xf32>
    %c0_3 = arith.constant 0 : index
    %c0_4 = arith.constant 0 : index
    %2 = vector.load %arg7[%c0_3, %c0_4] : memref<1x128xf32, #tpu.memory_space<vmem>>, vector<1x128xf32>
    %3 = vector.shape_cast %2 : vector<1x128xf32> to vector<1x128xf32>
    %4 = vector.broadcast %3 : vector<1x128xf32> to vector<2x128xf32>
    %c0_5 = arith.constant 0 : index
    %c0_6 = arith.constant 0 : index
    %5 = vector.load %arg9[%c0_5, %c0_6] : memref<1x128xf32, #tpu.memory_space<vmem>>, vector<1x128xf32>
    %6 = vector.shape_cast %5 : vector<1x128xf32> to vector<1x128xf32>
    %7 = vector.broadcast %6 : vector<1x128xf32> to vector<2x128xf32>
    %c0_7 = arith.constant 0 : index
    %c0_8 = arith.constant 0 : index
    %8 = vector.load %arg0[%c0_7, %c0_8] : memref<16x16xf32, #tpu.memory_space<vmem>>, vector<16x16xf32>
    %c0_9 = arith.constant 0 : index
    %c0_10 = arith.constant 0 : index
    %9 = vector.load %arg2[%c0_9, %c0_10] : memref<16x128xf32, #tpu.memory_space<vmem>>, vector<16x128xf32>
    %cst = arith.constant dense<0.000000e+00> : vector<16x128xf32>
    %10 = tpu.matmul %8, %9, %cst {dimension_numbers = #tpu.dot_dimension_numbers<[1], [0], [0], [1], [0, 0, 1, 1], [], []>} : vector<16x16xf32>, vector<16x128xf32>, vector<16x128xf32> -> vector<16x128xf32>
    %c0_11 = arith.constant 0 : index
    %c0_12 = arith.constant 0 : index
    %11 = vector.load %arg3[%c0_11, %c0_12] : memref<1x128xf32, #tpu.memory_space<vmem>>, vector<1x128xf32>
    %12 = vector.broadcast %11 : vector<1x128xf32> to vector<16x128xf32>
    %13 = arith.addf %10, %12 : vector<16x128xf32>
    %c0_13 = arith.constant 0 : index
    %c0_14 = arith.constant 0 : index
    %14 = vector.load %arg1[%c0_13, %c0_14] : memref<16x16xf32, #tpu.memory_space<vmem>>, vector<16x16xf32>
    %c0_15 = arith.constant 0 : index
    %c0_16 = arith.constant 0 : index
    %15 = vector.load %arg4[%c0_15, %c0_16] : memref<16x128xf32, #tpu.memory_space<vmem>>, vector<16x128xf32>
    %cst_17 = arith.constant dense<0.000000e+00> : vector<16x128xf32>
    %16 = tpu.matmul %14, %15, %cst_17 {dimension_numbers = #tpu.dot_dimension_numbers<[1], [0], [0], [1], [0, 0, 1, 1], [], []>} : vector<16x16xf32>, vector<16x128xf32>, vector<16x128xf32> -> vector<16x128xf32>
    %c0_18 = arith.constant 0 : index
    %c0_19 = arith.constant 0 : index
    %17 = vector.load %arg5[%c0_18, %c0_19] : memref<1x128xf32, #tpu.memory_space<vmem>>, vector<1x128xf32>
    %18 = vector.broadcast %17 : vector<1x128xf32> to vector<16x128xf32>
    %19 = arith.addf %16, %18 : vector<16x128xf32>
    %cst_20 = arith.constant 0.000000e+00 : f32
    %20 = vector.broadcast %cst_20 : f32 to vector<2x32xf32>
    %21 = vector.extract_strided_slice %13 {offsets = [0, 0], sizes = [2, 128], strides = [1, 1]} : vector<16x128xf32> to vector<2x128xf32>
    %cst_21 = arith.constant dense<0.000000e+00> : vector<2x128xf32>
    %22 = tpu.matmul %20, %0, %cst_21 {dimension_numbers = #tpu.dot_dimension_numbers<[1], [0], [0], [1], [0, 0, 1, 1], [], []>} : vector<2x32xf32>, vector<32x128xf32>, vector<2x128xf32> -> vector<2x128xf32>
    %23 = arith.addf %21, %22 : vector<2x128xf32>
    %24 = arith.negf %23 : vector<2x128xf32>
    %25 = math.exp %24 : vector<2x128xf32>
    %cst_22 = arith.constant 1.000000e+00 : f32
    %26 = vector.broadcast %cst_22 : f32 to vector<2x128xf32>
    %27 = arith.addf %26, %25 : vector<2x128xf32>
    %28 = arith.divf %26, %27 : vector<2x128xf32>
    %29 = math.tanh %23 : vector<2x128xf32>
    %30 = vector.extract_strided_slice %28 {offsets = [0, 0], sizes = [2, 32], strides = [1, 1]} : vector<2x128xf32> to vector<2x32xf32>
    %31 = vector.extract_strided_slice %28 {offsets = [0, 32], sizes = [2, 32], strides = [1, 1]} : vector<2x128xf32> to vector<2x32xf32>
    %32 = vector.extract_strided_slice %29 {offsets = [0, 64], sizes = [2, 32], strides = [1, 1]} : vector<2x128xf32> to vector<2x32xf32>
    %33 = vector.extract_strided_slice %28 {offsets = [0, 96], sizes = [2, 32], strides = [1, 1]} : vector<2x128xf32> to vector<2x32xf32>
    %34 = arith.mulf %31, %20 : vector<2x32xf32>
    %35 = arith.mulf %30, %32 : vector<2x32xf32>
    %36 = arith.addf %34, %35 : vector<2x32xf32>
    %37 = math.tanh %36 : vector<2x32xf32>
    %38 = arith.mulf %33, %37 : vector<2x32xf32>
    %39 = tpu.concatenate %38, %20 in 1 : vector<2x32xf32>, vector<2x32xf32> -> vector<2x64xf32>
    %cst_23 = arith.constant dense<0.000000e+00> : vector<2x128xf32>
    %40 = tpu.matmul %39, %1, %cst_23 {dimension_numbers = #tpu.dot_dimension_numbers<[1], [0], [0], [1], [0, 0, 1, 1], [], []>} : vector<2x64xf32>, vector<64x128xf32>, vector<2x128xf32> -> vector<2x128xf32>
    %41 = arith.addf %40, %7 : vector<2x128xf32>
    %42 = arith.negf %41 : vector<2x128xf32>
    %43 = math.exp %42 : vector<2x128xf32>
    %cst_24 = arith.constant 1.000000e+00 : f32
    %44 = vector.broadcast %cst_24 : f32 to vector<2x128xf32>
    %45 = arith.addf %44, %43 : vector<2x128xf32>
    %46 = arith.divf %44, %45 : vector<2x128xf32>
    %47 = math.tanh %41 : vector<2x128xf32>
    %48 = vector.extract_strided_slice %46 {offsets = [0, 0], sizes = [2, 32], strides = [1, 1]} : vector<2x128xf32> to vector<2x32xf32>
    %49 = vector.extract_strided_slice %46 {offsets = [0, 32], sizes = [2, 32], strides = [1, 1]} : vector<2x128xf32> to vector<2x32xf32>
    %50 = vector.extract_strided_slice %47 {offsets = [0, 64], sizes = [2, 32], strides = [1, 1]} : vector<2x128xf32> to vector<2x32xf32>
    %51 = vector.extract_strided_slice %46 {offsets = [0, 96], sizes = [2, 32], strides = [1, 1]} : vector<2x128xf32> to vector<2x32xf32>
    %52 = arith.mulf %49, %20 : vector<2x32xf32>
    %53 = arith.mulf %48, %50 : vector<2x32xf32>
    %54 = arith.addf %52, %53 : vector<2x32xf32>
    %55 = math.tanh %54 : vector<2x32xf32>
    %56 = arith.mulf %51, %55 : vector<2x32xf32>
    %57 = vector.extract_strided_slice %13 {offsets = [2, 0], sizes = [2, 128], strides = [1, 1]} : vector<16x128xf32> to vector<2x128xf32>
    %cst_25 = arith.constant dense<0.000000e+00> : vector<2x128xf32>
    %58 = tpu.matmul %38, %0, %cst_25 {dimension_numbers = #tpu.dot_dimension_numbers<[1], [0], [0], [1], [0, 0, 1, 1], [], []>} : vector<2x32xf32>, vector<32x128xf32>, vector<2x128xf32> -> vector<2x128xf32>
    %59 = arith.addf %57, %58 : vector<2x128xf32>
    %60 = arith.negf %59 : vector<2x128xf32>
    %61 = math.exp %60 : vector<2x128xf32>
    %cst_26 = arith.constant 1.000000e+00 : f32
    %62 = vector.broadcast %cst_26 : f32 to vector<2x128xf32>
    %63 = arith.addf %62, %61 : vector<2x128xf32>
    %64 = arith.divf %62, %63 : vector<2x128xf32>
    %65 = math.tanh %59 : vector<2x128xf32>
    %66 = vector.extract_strided_slice %64 {offsets = [0, 0], sizes = [2, 32], strides = [1, 1]} : vector<2x128xf32> to vector<2x32xf32>
    %67 = vector.extract_strided_slice %64 {offsets = [0, 32], sizes = [2, 32], strides = [1, 1]} : vector<2x128xf32> to vector<2x32xf32>
    %68 = vector.extract_strided_slice %65 {offsets = [0, 64], sizes = [2, 32], strides = [1, 1]} : vector<2x128xf32> to vector<2x32xf32>
    %69 = vector.extract_strided_slice %64 {offsets = [0, 96], sizes = [2, 32], strides = [1, 1]} : vector<2x128xf32> to vector<2x32xf32>
    %70 = arith.mulf %67, %36 : vector<2x32xf32>
    %71 = arith.mulf %66, %68 : vector<2x32xf32>
    %72 = arith.addf %70, %71 : vector<2x32xf32>
    %73 = math.tanh %72 : vector<2x32xf32>
    %74 = arith.mulf %69, %73 : vector<2x32xf32>
    %75 = tpu.concatenate %74, %56 in 1 : vector<2x32xf32>, vector<2x32xf32> -> vector<2x64xf32>
    %cst_27 = arith.constant dense<0.000000e+00> : vector<2x128xf32>
    %76 = tpu.matmul %75, %1, %cst_27 {dimension_numbers = #tpu.dot_dimension_numbers<[1], [0], [0], [1], [0, 0, 1, 1], [], []>} : vector<2x64xf32>, vector<64x128xf32>, vector<2x128xf32> -> vector<2x128xf32>
    %77 = arith.addf %76, %7 : vector<2x128xf32>
    %78 = arith.negf %77 : vector<2x128xf32>
    %79 = math.exp %78 : vector<2x128xf32>
    %cst_28 = arith.constant 1.000000e+00 : f32
    %80 = vector.broadcast %cst_28 : f32 to vector<2x128xf32>
    %81 = arith.addf %80, %79 : vector<2x128xf32>
    %82 = arith.divf %80, %81 : vector<2x128xf32>
    %83 = math.tanh %77 : vector<2x128xf32>
    %84 = vector.extract_strided_slice %82 {offsets = [0, 0], sizes = [2, 32], strides = [1, 1]} : vector<2x128xf32> to vector<2x32xf32>
    %85 = vector.extract_strided_slice %82 {offsets = [0, 32], sizes = [2, 32], strides = [1, 1]} : vector<2x128xf32> to vector<2x32xf32>
    %86 = vector.extract_strided_slice %83 {offsets = [0, 64], sizes = [2, 32], strides = [1, 1]} : vector<2x128xf32> to vector<2x32xf32>
    %87 = vector.extract_strided_slice %82 {offsets = [0, 96], sizes = [2, 32], strides = [1, 1]} : vector<2x128xf32> to vector<2x32xf32>
    %88 = arith.mulf %85, %54 : vector<2x32xf32>
    %89 = arith.mulf %84, %86 : vector<2x32xf32>
    %90 = arith.addf %88, %89 : vector<2x32xf32>
    %91 = math.tanh %90 : vector<2x32xf32>
    %92 = arith.mulf %87, %91 : vector<2x32xf32>
    %93 = vector.extract_strided_slice %13 {offsets = [4, 0], sizes = [2, 128], strides = [1, 1]} : vector<16x128xf32> to vector<2x128xf32>
    %cst_29 = arith.constant dense<0.000000e+00> : vector<2x128xf32>
    %94 = tpu.matmul %74, %0, %cst_29 {dimension_numbers = #tpu.dot_dimension_numbers<[1], [0], [0], [1], [0, 0, 1, 1], [], []>} : vector<2x32xf32>, vector<32x128xf32>, vector<2x128xf32> -> vector<2x128xf32>
    %95 = arith.addf %93, %94 : vector<2x128xf32>
    %96 = arith.negf %95 : vector<2x128xf32>
    %97 = math.exp %96 : vector<2x128xf32>
    %cst_30 = arith.constant 1.000000e+00 : f32
    %98 = vector.broadcast %cst_30 : f32 to vector<2x128xf32>
    %99 = arith.addf %98, %97 : vector<2x128xf32>
    %100 = arith.divf %98, %99 : vector<2x128xf32>
    %101 = math.tanh %95 : vector<2x128xf32>
    %102 = vector.extract_strided_slice %100 {offsets = [0, 0], sizes = [2, 32], strides = [1, 1]} : vector<2x128xf32> to vector<2x32xf32>
    %103 = vector.extract_strided_slice %100 {offsets = [0, 32], sizes = [2, 32], strides = [1, 1]} : vector<2x128xf32> to vector<2x32xf32>
    %104 = vector.extract_strided_slice %101 {offsets = [0, 64], sizes = [2, 32], strides = [1, 1]} : vector<2x128xf32> to vector<2x32xf32>
    %105 = vector.extract_strided_slice %100 {offsets = [0, 96], sizes = [2, 32], strides = [1, 1]} : vector<2x128xf32> to vector<2x32xf32>
    %106 = arith.mulf %103, %72 : vector<2x32xf32>
    %107 = arith.mulf %102, %104 : vector<2x32xf32>
    %108 = arith.addf %106, %107 : vector<2x32xf32>
    %109 = math.tanh %108 : vector<2x32xf32>
    %110 = arith.mulf %105, %109 : vector<2x32xf32>
    %111 = tpu.concatenate %110, %92 in 1 : vector<2x32xf32>, vector<2x32xf32> -> vector<2x64xf32>
    %cst_31 = arith.constant dense<0.000000e+00> : vector<2x128xf32>
    %112 = tpu.matmul %111, %1, %cst_31 {dimension_numbers = #tpu.dot_dimension_numbers<[1], [0], [0], [1], [0, 0, 1, 1], [], []>} : vector<2x64xf32>, vector<64x128xf32>, vector<2x128xf32> -> vector<2x128xf32>
    %113 = arith.addf %112, %7 : vector<2x128xf32>
    %114 = arith.negf %113 : vector<2x128xf32>
    %115 = math.exp %114 : vector<2x128xf32>
    %cst_32 = arith.constant 1.000000e+00 : f32
    %116 = vector.broadcast %cst_32 : f32 to vector<2x128xf32>
    %117 = arith.addf %116, %115 : vector<2x128xf32>
    %118 = arith.divf %116, %117 : vector<2x128xf32>
    %119 = math.tanh %113 : vector<2x128xf32>
    %120 = vector.extract_strided_slice %118 {offsets = [0, 0], sizes = [2, 32], strides = [1, 1]} : vector<2x128xf32> to vector<2x32xf32>
    %121 = vector.extract_strided_slice %118 {offsets = [0, 32], sizes = [2, 32], strides = [1, 1]} : vector<2x128xf32> to vector<2x32xf32>
    %122 = vector.extract_strided_slice %119 {offsets = [0, 64], sizes = [2, 32], strides = [1, 1]} : vector<2x128xf32> to vector<2x32xf32>
    %123 = vector.extract_strided_slice %118 {offsets = [0, 96], sizes = [2, 32], strides = [1, 1]} : vector<2x128xf32> to vector<2x32xf32>
    %124 = arith.mulf %121, %90 : vector<2x32xf32>
    %125 = arith.mulf %120, %122 : vector<2x32xf32>
    %126 = arith.addf %124, %125 : vector<2x32xf32>
    %127 = math.tanh %126 : vector<2x32xf32>
    %128 = arith.mulf %123, %127 : vector<2x32xf32>
    %129 = vector.extract_strided_slice %13 {offsets = [6, 0], sizes = [2, 128], strides = [1, 1]} : vector<16x128xf32> to vector<2x128xf32>
    %cst_33 = arith.constant dense<0.000000e+00> : vector<2x128xf32>
    %130 = tpu.matmul %110, %0, %cst_33 {dimension_numbers = #tpu.dot_dimension_numbers<[1], [0], [0], [1], [0, 0, 1, 1], [], []>} : vector<2x32xf32>, vector<32x128xf32>, vector<2x128xf32> -> vector<2x128xf32>
    %131 = arith.addf %129, %130 : vector<2x128xf32>
    %132 = arith.negf %131 : vector<2x128xf32>
    %133 = math.exp %132 : vector<2x128xf32>
    %cst_34 = arith.constant 1.000000e+00 : f32
    %134 = vector.broadcast %cst_34 : f32 to vector<2x128xf32>
    %135 = arith.addf %134, %133 : vector<2x128xf32>
    %136 = arith.divf %134, %135 : vector<2x128xf32>
    %137 = math.tanh %131 : vector<2x128xf32>
    %138 = vector.extract_strided_slice %136 {offsets = [0, 0], sizes = [2, 32], strides = [1, 1]} : vector<2x128xf32> to vector<2x32xf32>
    %139 = vector.extract_strided_slice %136 {offsets = [0, 32], sizes = [2, 32], strides = [1, 1]} : vector<2x128xf32> to vector<2x32xf32>
    %140 = vector.extract_strided_slice %137 {offsets = [0, 64], sizes = [2, 32], strides = [1, 1]} : vector<2x128xf32> to vector<2x32xf32>
    %141 = vector.extract_strided_slice %136 {offsets = [0, 96], sizes = [2, 32], strides = [1, 1]} : vector<2x128xf32> to vector<2x32xf32>
    %142 = arith.mulf %139, %108 : vector<2x32xf32>
    %143 = arith.mulf %138, %140 : vector<2x32xf32>
    %144 = arith.addf %142, %143 : vector<2x32xf32>
    %145 = math.tanh %144 : vector<2x32xf32>
    %146 = arith.mulf %141, %145 : vector<2x32xf32>
    %147 = tpu.concatenate %146, %128 in 1 : vector<2x32xf32>, vector<2x32xf32> -> vector<2x64xf32>
    %cst_35 = arith.constant dense<0.000000e+00> : vector<2x128xf32>
    %148 = tpu.matmul %147, %1, %cst_35 {dimension_numbers = #tpu.dot_dimension_numbers<[1], [0], [0], [1], [0, 0, 1, 1], [], []>} : vector<2x64xf32>, vector<64x128xf32>, vector<2x128xf32> -> vector<2x128xf32>
    %149 = arith.addf %148, %7 : vector<2x128xf32>
    %150 = arith.negf %149 : vector<2x128xf32>
    %151 = math.exp %150 : vector<2x128xf32>
    %cst_36 = arith.constant 1.000000e+00 : f32
    %152 = vector.broadcast %cst_36 : f32 to vector<2x128xf32>
    %153 = arith.addf %152, %151 : vector<2x128xf32>
    %154 = arith.divf %152, %153 : vector<2x128xf32>
    %155 = math.tanh %149 : vector<2x128xf32>
    %156 = vector.extract_strided_slice %154 {offsets = [0, 0], sizes = [2, 32], strides = [1, 1]} : vector<2x128xf32> to vector<2x32xf32>
    %157 = vector.extract_strided_slice %154 {offsets = [0, 32], sizes = [2, 32], strides = [1, 1]} : vector<2x128xf32> to vector<2x32xf32>
    %158 = vector.extract_strided_slice %155 {offsets = [0, 64], sizes = [2, 32], strides = [1, 1]} : vector<2x128xf32> to vector<2x32xf32>
    %159 = vector.extract_strided_slice %154 {offsets = [0, 96], sizes = [2, 32], strides = [1, 1]} : vector<2x128xf32> to vector<2x32xf32>
    %160 = arith.mulf %157, %126 : vector<2x32xf32>
    %161 = arith.mulf %156, %158 : vector<2x32xf32>
    %162 = arith.addf %160, %161 : vector<2x32xf32>
    %163 = math.tanh %162 : vector<2x32xf32>
    %164 = arith.mulf %159, %163 : vector<2x32xf32>
    %165 = vector.extract_strided_slice %13 {offsets = [8, 0], sizes = [2, 128], strides = [1, 1]} : vector<16x128xf32> to vector<2x128xf32>
    %cst_37 = arith.constant dense<0.000000e+00> : vector<2x128xf32>
    %166 = tpu.matmul %146, %0, %cst_37 {dimension_numbers = #tpu.dot_dimension_numbers<[1], [0], [0], [1], [0, 0, 1, 1], [], []>} : vector<2x32xf32>, vector<32x128xf32>, vector<2x128xf32> -> vector<2x128xf32>
    %167 = arith.addf %165, %166 : vector<2x128xf32>
    %168 = arith.negf %167 : vector<2x128xf32>
    %169 = math.exp %168 : vector<2x128xf32>
    %cst_38 = arith.constant 1.000000e+00 : f32
    %170 = vector.broadcast %cst_38 : f32 to vector<2x128xf32>
    %171 = arith.addf %170, %169 : vector<2x128xf32>
    %172 = arith.divf %170, %171 : vector<2x128xf32>
    %173 = math.tanh %167 : vector<2x128xf32>
    %174 = vector.extract_strided_slice %172 {offsets = [0, 0], sizes = [2, 32], strides = [1, 1]} : vector<2x128xf32> to vector<2x32xf32>
    %175 = vector.extract_strided_slice %172 {offsets = [0, 32], sizes = [2, 32], strides = [1, 1]} : vector<2x128xf32> to vector<2x32xf32>
    %176 = vector.extract_strided_slice %173 {offsets = [0, 64], sizes = [2, 32], strides = [1, 1]} : vector<2x128xf32> to vector<2x32xf32>
    %177 = vector.extract_strided_slice %172 {offsets = [0, 96], sizes = [2, 32], strides = [1, 1]} : vector<2x128xf32> to vector<2x32xf32>
    %178 = arith.mulf %175, %144 : vector<2x32xf32>
    %179 = arith.mulf %174, %176 : vector<2x32xf32>
    %180 = arith.addf %178, %179 : vector<2x32xf32>
    %181 = math.tanh %180 : vector<2x32xf32>
    %182 = arith.mulf %177, %181 : vector<2x32xf32>
    %183 = tpu.concatenate %182, %164 in 1 : vector<2x32xf32>, vector<2x32xf32> -> vector<2x64xf32>
    %cst_39 = arith.constant dense<0.000000e+00> : vector<2x128xf32>
    %184 = tpu.matmul %183, %1, %cst_39 {dimension_numbers = #tpu.dot_dimension_numbers<[1], [0], [0], [1], [0, 0, 1, 1], [], []>} : vector<2x64xf32>, vector<64x128xf32>, vector<2x128xf32> -> vector<2x128xf32>
    %185 = arith.addf %184, %7 : vector<2x128xf32>
    %186 = arith.negf %185 : vector<2x128xf32>
    %187 = math.exp %186 : vector<2x128xf32>
    %cst_40 = arith.constant 1.000000e+00 : f32
    %188 = vector.broadcast %cst_40 : f32 to vector<2x128xf32>
    %189 = arith.addf %188, %187 : vector<2x128xf32>
    %190 = arith.divf %188, %189 : vector<2x128xf32>
    %191 = math.tanh %185 : vector<2x128xf32>
    %192 = vector.extract_strided_slice %190 {offsets = [0, 0], sizes = [2, 32], strides = [1, 1]} : vector<2x128xf32> to vector<2x32xf32>
    %193 = vector.extract_strided_slice %190 {offsets = [0, 32], sizes = [2, 32], strides = [1, 1]} : vector<2x128xf32> to vector<2x32xf32>
    %194 = vector.extract_strided_slice %191 {offsets = [0, 64], sizes = [2, 32], strides = [1, 1]} : vector<2x128xf32> to vector<2x32xf32>
    %195 = vector.extract_strided_slice %190 {offsets = [0, 96], sizes = [2, 32], strides = [1, 1]} : vector<2x128xf32> to vector<2x32xf32>
    %196 = arith.mulf %193, %162 : vector<2x32xf32>
    %197 = arith.mulf %192, %194 : vector<2x32xf32>
    %198 = arith.addf %196, %197 : vector<2x32xf32>
    %199 = math.tanh %198 : vector<2x32xf32>
    %200 = arith.mulf %195, %199 : vector<2x32xf32>
    %201 = vector.extract_strided_slice %13 {offsets = [10, 0], sizes = [2, 128], strides = [1, 1]} : vector<16x128xf32> to vector<2x128xf32>
    %cst_41 = arith.constant dense<0.000000e+00> : vector<2x128xf32>
    %202 = tpu.matmul %182, %0, %cst_41 {dimension_numbers = #tpu.dot_dimension_numbers<[1], [0], [0], [1], [0, 0, 1, 1], [], []>} : vector<2x32xf32>, vector<32x128xf32>, vector<2x128xf32> -> vector<2x128xf32>
    %203 = arith.addf %201, %202 : vector<2x128xf32>
    %204 = arith.negf %203 : vector<2x128xf32>
    %205 = math.exp %204 : vector<2x128xf32>
    %cst_42 = arith.constant 1.000000e+00 : f32
    %206 = vector.broadcast %cst_42 : f32 to vector<2x128xf32>
    %207 = arith.addf %206, %205 : vector<2x128xf32>
    %208 = arith.divf %206, %207 : vector<2x128xf32>
    %209 = math.tanh %203 : vector<2x128xf32>
    %210 = vector.extract_strided_slice %208 {offsets = [0, 0], sizes = [2, 32], strides = [1, 1]} : vector<2x128xf32> to vector<2x32xf32>
    %211 = vector.extract_strided_slice %208 {offsets = [0, 32], sizes = [2, 32], strides = [1, 1]} : vector<2x128xf32> to vector<2x32xf32>
    %212 = vector.extract_strided_slice %209 {offsets = [0, 64], sizes = [2, 32], strides = [1, 1]} : vector<2x128xf32> to vector<2x32xf32>
    %213 = vector.extract_strided_slice %208 {offsets = [0, 96], sizes = [2, 32], strides = [1, 1]} : vector<2x128xf32> to vector<2x32xf32>
    %214 = arith.mulf %211, %180 : vector<2x32xf32>
    %215 = arith.mulf %210, %212 : vector<2x32xf32>
    %216 = arith.addf %214, %215 : vector<2x32xf32>
    %217 = math.tanh %216 : vector<2x32xf32>
    %218 = arith.mulf %213, %217 : vector<2x32xf32>
    %219 = tpu.concatenate %218, %200 in 1 : vector<2x32xf32>, vector<2x32xf32> -> vector<2x64xf32>
    %cst_43 = arith.constant dense<0.000000e+00> : vector<2x128xf32>
    %220 = tpu.matmul %219, %1, %cst_43 {dimension_numbers = #tpu.dot_dimension_numbers<[1], [0], [0], [1], [0, 0, 1, 1], [], []>} : vector<2x64xf32>, vector<64x128xf32>, vector<2x128xf32> -> vector<2x128xf32>
    %221 = arith.addf %220, %7 : vector<2x128xf32>
    %222 = arith.negf %221 : vector<2x128xf32>
    %223 = math.exp %222 : vector<2x128xf32>
    %cst_44 = arith.constant 1.000000e+00 : f32
    %224 = vector.broadcast %cst_44 : f32 to vector<2x128xf32>
    %225 = arith.addf %224, %223 : vector<2x128xf32>
    %226 = arith.divf %224, %225 : vector<2x128xf32>
    %227 = math.tanh %221 : vector<2x128xf32>
    %228 = vector.extract_strided_slice %226 {offsets = [0, 0], sizes = [2, 32], strides = [1, 1]} : vector<2x128xf32> to vector<2x32xf32>
    %229 = vector.extract_strided_slice %226 {offsets = [0, 32], sizes = [2, 32], strides = [1, 1]} : vector<2x128xf32> to vector<2x32xf32>
    %230 = vector.extract_strided_slice %227 {offsets = [0, 64], sizes = [2, 32], strides = [1, 1]} : vector<2x128xf32> to vector<2x32xf32>
    %231 = vector.extract_strided_slice %226 {offsets = [0, 96], sizes = [2, 32], strides = [1, 1]} : vector<2x128xf32> to vector<2x32xf32>
    %232 = arith.mulf %229, %198 : vector<2x32xf32>
    %233 = arith.mulf %228, %230 : vector<2x32xf32>
    %234 = arith.addf %232, %233 : vector<2x32xf32>
    %235 = math.tanh %234 : vector<2x32xf32>
    %236 = arith.mulf %231, %235 : vector<2x32xf32>
    %237 = vector.extract_strided_slice %13 {offsets = [12, 0], sizes = [2, 128], strides = [1, 1]} : vector<16x128xf32> to vector<2x128xf32>
    %cst_45 = arith.constant dense<0.000000e+00> : vector<2x128xf32>
    %238 = tpu.matmul %218, %0, %cst_45 {dimension_numbers = #tpu.dot_dimension_numbers<[1], [0], [0], [1], [0, 0, 1, 1], [], []>} : vector<2x32xf32>, vector<32x128xf32>, vector<2x128xf32> -> vector<2x128xf32>
    %239 = arith.addf %237, %238 : vector<2x128xf32>
    %240 = arith.negf %239 : vector<2x128xf32>
    %241 = math.exp %240 : vector<2x128xf32>
    %cst_46 = arith.constant 1.000000e+00 : f32
    %242 = vector.broadcast %cst_46 : f32 to vector<2x128xf32>
    %243 = arith.addf %242, %241 : vector<2x128xf32>
    %244 = arith.divf %242, %243 : vector<2x128xf32>
    %245 = math.tanh %239 : vector<2x128xf32>
    %246 = vector.extract_strided_slice %244 {offsets = [0, 0], sizes = [2, 32], strides = [1, 1]} : vector<2x128xf32> to vector<2x32xf32>
    %247 = vector.extract_strided_slice %244 {offsets = [0, 32], sizes = [2, 32], strides = [1, 1]} : vector<2x128xf32> to vector<2x32xf32>
    %248 = vector.extract_strided_slice %245 {offsets = [0, 64], sizes = [2, 32], strides = [1, 1]} : vector<2x128xf32> to vector<2x32xf32>
    %249 = vector.extract_strided_slice %244 {offsets = [0, 96], sizes = [2, 32], strides = [1, 1]} : vector<2x128xf32> to vector<2x32xf32>
    %250 = arith.mulf %247, %216 : vector<2x32xf32>
    %251 = arith.mulf %246, %248 : vector<2x32xf32>
    %252 = arith.addf %250, %251 : vector<2x32xf32>
    %253 = math.tanh %252 : vector<2x32xf32>
    %254 = arith.mulf %249, %253 : vector<2x32xf32>
    %255 = tpu.concatenate %254, %236 in 1 : vector<2x32xf32>, vector<2x32xf32> -> vector<2x64xf32>
    %cst_47 = arith.constant dense<0.000000e+00> : vector<2x128xf32>
    %256 = tpu.matmul %255, %1, %cst_47 {dimension_numbers = #tpu.dot_dimension_numbers<[1], [0], [0], [1], [0, 0, 1, 1], [], []>} : vector<2x64xf32>, vector<64x128xf32>, vector<2x128xf32> -> vector<2x128xf32>
    %257 = arith.addf %256, %7 : vector<2x128xf32>
    %258 = arith.negf %257 : vector<2x128xf32>
    %259 = math.exp %258 : vector<2x128xf32>
    %cst_48 = arith.constant 1.000000e+00 : f32
    %260 = vector.broadcast %cst_48 : f32 to vector<2x128xf32>
    %261 = arith.addf %260, %259 : vector<2x128xf32>
    %262 = arith.divf %260, %261 : vector<2x128xf32>
    %263 = math.tanh %257 : vector<2x128xf32>
    %264 = vector.extract_strided_slice %262 {offsets = [0, 0], sizes = [2, 32], strides = [1, 1]} : vector<2x128xf32> to vector<2x32xf32>
    %265 = vector.extract_strided_slice %262 {offsets = [0, 32], sizes = [2, 32], strides = [1, 1]} : vector<2x128xf32> to vector<2x32xf32>
    %266 = vector.extract_strided_slice %263 {offsets = [0, 64], sizes = [2, 32], strides = [1, 1]} : vector<2x128xf32> to vector<2x32xf32>
    %267 = vector.extract_strided_slice %262 {offsets = [0, 96], sizes = [2, 32], strides = [1, 1]} : vector<2x128xf32> to vector<2x32xf32>
    %268 = arith.mulf %265, %234 : vector<2x32xf32>
    %269 = arith.mulf %264, %266 : vector<2x32xf32>
    %270 = arith.addf %268, %269 : vector<2x32xf32>
    %271 = math.tanh %270 : vector<2x32xf32>
    %272 = arith.mulf %267, %271 : vector<2x32xf32>
    %273 = vector.extract_strided_slice %13 {offsets = [14, 0], sizes = [2, 128], strides = [1, 1]} : vector<16x128xf32> to vector<2x128xf32>
    %cst_49 = arith.constant dense<0.000000e+00> : vector<2x128xf32>
    %274 = tpu.matmul %254, %0, %cst_49 {dimension_numbers = #tpu.dot_dimension_numbers<[1], [0], [0], [1], [0, 0, 1, 1], [], []>} : vector<2x32xf32>, vector<32x128xf32>, vector<2x128xf32> -> vector<2x128xf32>
    %275 = arith.addf %273, %274 : vector<2x128xf32>
    %276 = arith.negf %275 : vector<2x128xf32>
    %277 = math.exp %276 : vector<2x128xf32>
    %cst_50 = arith.constant 1.000000e+00 : f32
    %278 = vector.broadcast %cst_50 : f32 to vector<2x128xf32>
    %279 = arith.addf %278, %277 : vector<2x128xf32>
    %280 = arith.divf %278, %279 : vector<2x128xf32>
    %281 = math.tanh %275 : vector<2x128xf32>
    %282 = vector.extract_strided_slice %280 {offsets = [0, 0], sizes = [2, 32], strides = [1, 1]} : vector<2x128xf32> to vector<2x32xf32>
    %283 = vector.extract_strided_slice %280 {offsets = [0, 32], sizes = [2, 32], strides = [1, 1]} : vector<2x128xf32> to vector<2x32xf32>
    %284 = vector.extract_strided_slice %281 {offsets = [0, 64], sizes = [2, 32], strides = [1, 1]} : vector<2x128xf32> to vector<2x32xf32>
    %285 = vector.extract_strided_slice %280 {offsets = [0, 96], sizes = [2, 32], strides = [1, 1]} : vector<2x128xf32> to vector<2x32xf32>
    %286 = arith.mulf %283, %252 : vector<2x32xf32>
    %287 = arith.mulf %282, %284 : vector<2x32xf32>
    %288 = arith.addf %286, %287 : vector<2x32xf32>
    %289 = math.tanh %288 : vector<2x32xf32>
    %290 = arith.mulf %285, %289 : vector<2x32xf32>
    %291 = tpu.concatenate %290, %272 in 1 : vector<2x32xf32>, vector<2x32xf32> -> vector<2x64xf32>
    %cst_51 = arith.constant dense<0.000000e+00> : vector<2x128xf32>
    %292 = tpu.matmul %291, %1, %cst_51 {dimension_numbers = #tpu.dot_dimension_numbers<[1], [0], [0], [1], [0, 0, 1, 1], [], []>} : vector<2x64xf32>, vector<64x128xf32>, vector<2x128xf32> -> vector<2x128xf32>
    %293 = arith.addf %292, %7 : vector<2x128xf32>
    %294 = arith.negf %293 : vector<2x128xf32>
    %295 = math.exp %294 : vector<2x128xf32>
    %cst_52 = arith.constant 1.000000e+00 : f32
    %296 = vector.broadcast %cst_52 : f32 to vector<2x128xf32>
    %297 = arith.addf %296, %295 : vector<2x128xf32>
    %298 = arith.divf %296, %297 : vector<2x128xf32>
    %299 = math.tanh %293 : vector<2x128xf32>
    %300 = vector.extract_strided_slice %298 {offsets = [0, 0], sizes = [2, 32], strides = [1, 1]} : vector<2x128xf32> to vector<2x32xf32>
    %301 = vector.extract_strided_slice %298 {offsets = [0, 32], sizes = [2, 32], strides = [1, 1]} : vector<2x128xf32> to vector<2x32xf32>
    %302 = vector.extract_strided_slice %299 {offsets = [0, 64], sizes = [2, 32], strides = [1, 1]} : vector<2x128xf32> to vector<2x32xf32>
    %303 = vector.extract_strided_slice %298 {offsets = [0, 96], sizes = [2, 32], strides = [1, 1]} : vector<2x128xf32> to vector<2x32xf32>
    %304 = arith.mulf %301, %270 : vector<2x32xf32>
    %305 = arith.mulf %300, %302 : vector<2x32xf32>
    %306 = arith.addf %304, %305 : vector<2x32xf32>
    %307 = math.tanh %306 : vector<2x32xf32>
    %308 = arith.mulf %303, %307 : vector<2x32xf32>
    %c0_53 = arith.constant 0 : index
    %c0_54 = arith.constant 0 : index
    %309 = vector.load %arg10[%c0_53, %c0_54] : memref<32x128xf32, #tpu.memory_space<vmem>>, vector<32x128xf32>
    %c0_55 = arith.constant 0 : index
    %c0_56 = arith.constant 0 : index
    %310 = vector.load %arg11[%c0_55, %c0_56] : memref<1x128xf32, #tpu.memory_space<vmem>>, vector<1x128xf32>
    %311 = vector.shape_cast %310 : vector<1x128xf32> to vector<1x128xf32>
    %312 = vector.broadcast %311 : vector<1x128xf32> to vector<2x128xf32>
    %cst_57 = arith.constant dense<0.000000e+00> : vector<2x128xf32>
    %313 = tpu.matmul %290, %0, %cst_57 {dimension_numbers = #tpu.dot_dimension_numbers<[1], [0], [0], [1], [0, 0, 1, 1], [], []>} : vector<2x32xf32>, vector<32x128xf32>, vector<2x128xf32> -> vector<2x128xf32>
    %314 = arith.addf %313, %4 : vector<2x128xf32>
    %315 = arith.negf %314 : vector<2x128xf32>
    %316 = math.exp %315 : vector<2x128xf32>
    %cst_58 = arith.constant 1.000000e+00 : f32
    %317 = vector.broadcast %cst_58 : f32 to vector<2x128xf32>
    %318 = arith.addf %317, %316 : vector<2x128xf32>
    %319 = arith.divf %317, %318 : vector<2x128xf32>
    %320 = math.tanh %314 : vector<2x128xf32>
    %321 = vector.extract_strided_slice %319 {offsets = [0, 0], sizes = [2, 32], strides = [1, 1]} : vector<2x128xf32> to vector<2x32xf32>
    %322 = vector.extract_strided_slice %319 {offsets = [0, 32], sizes = [2, 32], strides = [1, 1]} : vector<2x128xf32> to vector<2x32xf32>
    %323 = vector.extract_strided_slice %320 {offsets = [0, 64], sizes = [2, 32], strides = [1, 1]} : vector<2x128xf32> to vector<2x32xf32>
    %324 = vector.extract_strided_slice %319 {offsets = [0, 96], sizes = [2, 32], strides = [1, 1]} : vector<2x128xf32> to vector<2x32xf32>
    %325 = arith.mulf %322, %288 : vector<2x32xf32>
    %326 = arith.mulf %321, %323 : vector<2x32xf32>
    %327 = arith.addf %325, %326 : vector<2x32xf32>
    %328 = math.tanh %327 : vector<2x32xf32>
    %329 = arith.mulf %324, %328 : vector<2x32xf32>
    %330 = vector.extract_strided_slice %19 {offsets = [0, 0], sizes = [2, 128], strides = [1, 1]} : vector<16x128xf32> to vector<2x128xf32>
    %331 = tpu.concatenate %329, %308 in 1 : vector<2x32xf32>, vector<2x32xf32> -> vector<2x64xf32>
    %cst_59 = arith.constant dense<0.000000e+00> : vector<2x128xf32>
    %332 = tpu.matmul %331, %1, %cst_59 {dimension_numbers = #tpu.dot_dimension_numbers<[1], [0], [0], [1], [0, 0, 1, 1], [], []>} : vector<2x64xf32>, vector<64x128xf32>, vector<2x128xf32> -> vector<2x128xf32>
    %333 = arith.addf %330, %332 : vector<2x128xf32>
    %334 = arith.negf %333 : vector<2x128xf32>
    %335 = math.exp %334 : vector<2x128xf32>
    %cst_60 = arith.constant 1.000000e+00 : f32
    %336 = vector.broadcast %cst_60 : f32 to vector<2x128xf32>
    %337 = arith.addf %336, %335 : vector<2x128xf32>
    %338 = arith.divf %336, %337 : vector<2x128xf32>
    %339 = math.tanh %333 : vector<2x128xf32>
    %340 = vector.extract_strided_slice %338 {offsets = [0, 0], sizes = [2, 32], strides = [1, 1]} : vector<2x128xf32> to vector<2x32xf32>
    %341 = vector.extract_strided_slice %338 {offsets = [0, 32], sizes = [2, 32], strides = [1, 1]} : vector<2x128xf32> to vector<2x32xf32>
    %342 = vector.extract_strided_slice %339 {offsets = [0, 64], sizes = [2, 32], strides = [1, 1]} : vector<2x128xf32> to vector<2x32xf32>
    %343 = vector.extract_strided_slice %338 {offsets = [0, 96], sizes = [2, 32], strides = [1, 1]} : vector<2x128xf32> to vector<2x32xf32>
    %344 = arith.mulf %341, %306 : vector<2x32xf32>
    %345 = arith.mulf %340, %342 : vector<2x32xf32>
    %346 = arith.addf %344, %345 : vector<2x32xf32>
    %347 = math.tanh %346 : vector<2x32xf32>
    %348 = arith.mulf %343, %347 : vector<2x32xf32>
    %cst_61 = arith.constant dense<0.000000e+00> : vector<2x128xf32>
    %349 = tpu.matmul %348, %309, %cst_61 {dimension_numbers = #tpu.dot_dimension_numbers<[1], [0], [0], [1], [0, 0, 1, 1], [], []>} : vector<2x32xf32>, vector<32x128xf32>, vector<2x128xf32> -> vector<2x128xf32>
    %350 = arith.addf %349, %312 : vector<2x128xf32>
    %c0_62 = arith.constant 0 : index
    %c0_63 = arith.constant 0 : index
    %c0_64 = arith.constant 0 : index
    %351 = vector.load %arg12[%c0_62, %c0_63, %c0_64] : memref<8x2x128xf32, #tpu.memory_space<vmem>>, vector<1x2x128xf32>
    %352 = vector.shape_cast %351 : vector<1x2x128xf32> to vector<2x128xf32>
    %353 = vector.shape_cast %350 : vector<2x128xf32> to vector<1x2x128xf32>
    tpu.vector_store %arg12[%c0_62, %c0_63, %c0_64], %353 {strides = array<i32>} : memref<8x2x128xf32, #tpu.memory_space<vmem>>, vector<1x2x128xf32>,
    %cst_65 = arith.constant dense<0.000000e+00> : vector<2x128xf32>
    %354 = tpu.matmul %329, %0, %cst_65 {dimension_numbers = #tpu.dot_dimension_numbers<[1], [0], [0], [1], [0, 0, 1, 1], [], []>} : vector<2x32xf32>, vector<32x128xf32>, vector<2x128xf32> -> vector<2x128xf32>
    %355 = arith.addf %354, %4 : vector<2x128xf32>
    %356 = arith.negf %355 : vector<2x128xf32>
    %357 = math.exp %356 : vector<2x128xf32>
    %cst_66 = arith.constant 1.000000e+00 : f32
    %358 = vector.broadcast %cst_66 : f32 to vector<2x128xf32>
    %359 = arith.addf %358, %357 : vector<2x128xf32>
    %360 = arith.divf %358, %359 : vector<2x128xf32>
    %361 = math.tanh %355 : vector<2x128xf32>
    %362 = vector.extract_strided_slice %360 {offsets = [0, 0], sizes = [2, 32], strides = [1, 1]} : vector<2x128xf32> to vector<2x32xf32>
    %363 = vector.extract_strided_slice %360 {offsets = [0, 32], sizes = [2, 32], strides = [1, 1]} : vector<2x128xf32> to vector<2x32xf32>
    %364 = vector.extract_strided_slice %361 {offsets = [0, 64], sizes = [2, 32], strides = [1, 1]} : vector<2x128xf32> to vector<2x32xf32>
    %365 = vector.extract_strided_slice %360 {offsets = [0, 96], sizes = [2, 32], strides = [1, 1]} : vector<2x128xf32> to vector<2x32xf32>
    %366 = arith.mulf %363, %327 : vector<2x32xf32>
    %367 = arith.mulf %362, %364 : vector<2x32xf32>
    %368 = arith.addf %366, %367 : vector<2x32xf32>
    %369 = math.tanh %368 : vector<2x32xf32>
    %370 = arith.mulf %365, %369 : vector<2x32xf32>
    %371 = vector.extract_strided_slice %19 {offsets = [2, 0], sizes = [2, 128], strides = [1, 1]} : vector<16x128xf32> to vector<2x128xf32>
    %372 = tpu.concatenate %370, %348 in 1 : vector<2x32xf32>, vector<2x32xf32> -> vector<2x64xf32>
    %cst_67 = arith.constant dense<0.000000e+00> : vector<2x128xf32>
    %373 = tpu.matmul %372, %1, %cst_67 {dimension_numbers = #tpu.dot_dimension_numbers<[1], [0], [0], [1], [0, 0, 1, 1], [], []>} : vector<2x64xf32>, vector<64x128xf32>, vector<2x128xf32> -> vector<2x128xf32>
    %374 = arith.addf %371, %373 : vector<2x128xf32>
    %375 = arith.negf %374 : vector<2x128xf32>
    %376 = math.exp %375 : vector<2x128xf32>
    %cst_68 = arith.constant 1.000000e+00 : f32
    %377 = vector.broadcast %cst_68 : f32 to vector<2x128xf32>
    %378 = arith.addf %377, %376 : vector<2x128xf32>
    %379 = arith.divf %377, %378 : vector<2x128xf32>
    %380 = math.tanh %374 : vector<2x128xf32>
    %381 = vector.extract_strided_slice %379 {offsets = [0, 0], sizes = [2, 32], strides = [1, 1]} : vector<2x128xf32> to vector<2x32xf32>
    %382 = vector.extract_strided_slice %379 {offsets = [0, 32], sizes = [2, 32], strides = [1, 1]} : vector<2x128xf32> to vector<2x32xf32>
    %383 = vector.extract_strided_slice %380 {offsets = [0, 64], sizes = [2, 32], strides = [1, 1]} : vector<2x128xf32> to vector<2x32xf32>
    %384 = vector.extract_strided_slice %379 {offsets = [0, 96], sizes = [2, 32], strides = [1, 1]} : vector<2x128xf32> to vector<2x32xf32>
    %385 = arith.mulf %382, %346 : vector<2x32xf32>
    %386 = arith.mulf %381, %383 : vector<2x32xf32>
    %387 = arith.addf %385, %386 : vector<2x32xf32>
    %388 = math.tanh %387 : vector<2x32xf32>
    %389 = arith.mulf %384, %388 : vector<2x32xf32>
    %cst_69 = arith.constant dense<0.000000e+00> : vector<2x128xf32>
    %390 = tpu.matmul %389, %309, %cst_69 {dimension_numbers = #tpu.dot_dimension_numbers<[1], [0], [0], [1], [0, 0, 1, 1], [], []>} : vector<2x32xf32>, vector<32x128xf32>, vector<2x128xf32> -> vector<2x128xf32>
    %391 = arith.addf %390, %312 : vector<2x128xf32>
    %c1 = arith.constant 1 : index
    %c0_70 = arith.constant 0 : index
    %c0_71 = arith.constant 0 : index
    %392 = vector.load %arg12[%c1, %c0_70, %c0_71] : memref<8x2x128xf32, #tpu.memory_space<vmem>>, vector<1x2x128xf32>
    %393 = vector.shape_cast %392 : vector<1x2x128xf32> to vector<2x128xf32>
    %394 = vector.shape_cast %391 : vector<2x128xf32> to vector<1x2x128xf32>
    tpu.vector_store %arg12[%c1, %c0_70, %c0_71], %394 {strides = array<i32>} : memref<8x2x128xf32, #tpu.memory_space<vmem>>, vector<1x2x128xf32>,
    %cst_72 = arith.constant dense<0.000000e+00> : vector<2x128xf32>
    %395 = tpu.matmul %370, %0, %cst_72 {dimension_numbers = #tpu.dot_dimension_numbers<[1], [0], [0], [1], [0, 0, 1, 1], [], []>} : vector<2x32xf32>, vector<32x128xf32>, vector<2x128xf32> -> vector<2x128xf32>
    %396 = arith.addf %395, %4 : vector<2x128xf32>
    %397 = arith.negf %396 : vector<2x128xf32>
    %398 = math.exp %397 : vector<2x128xf32>
    %cst_73 = arith.constant 1.000000e+00 : f32
    %399 = vector.broadcast %cst_73 : f32 to vector<2x128xf32>
    %400 = arith.addf %399, %398 : vector<2x128xf32>
    %401 = arith.divf %399, %400 : vector<2x128xf32>
    %402 = math.tanh %396 : vector<2x128xf32>
    %403 = vector.extract_strided_slice %401 {offsets = [0, 0], sizes = [2, 32], strides = [1, 1]} : vector<2x128xf32> to vector<2x32xf32>
    %404 = vector.extract_strided_slice %401 {offsets = [0, 32], sizes = [2, 32], strides = [1, 1]} : vector<2x128xf32> to vector<2x32xf32>
    %405 = vector.extract_strided_slice %402 {offsets = [0, 64], sizes = [2, 32], strides = [1, 1]} : vector<2x128xf32> to vector<2x32xf32>
    %406 = vector.extract_strided_slice %401 {offsets = [0, 96], sizes = [2, 32], strides = [1, 1]} : vector<2x128xf32> to vector<2x32xf32>
    %407 = arith.mulf %404, %368 : vector<2x32xf32>
    %408 = arith.mulf %403, %405 : vector<2x32xf32>
    %409 = arith.addf %407, %408 : vector<2x32xf32>
    %410 = math.tanh %409 : vector<2x32xf32>
    %411 = arith.mulf %406, %410 : vector<2x32xf32>
    %412 = vector.extract_strided_slice %19 {offsets = [4, 0], sizes = [2, 128], strides = [1, 1]} : vector<16x128xf32> to vector<2x128xf32>
    %413 = tpu.concatenate %411, %389 in 1 : vector<2x32xf32>, vector<2x32xf32> -> vector<2x64xf32>
    %cst_74 = arith.constant dense<0.000000e+00> : vector<2x128xf32>
    %414 = tpu.matmul %413, %1, %cst_74 {dimension_numbers = #tpu.dot_dimension_numbers<[1], [0], [0], [1], [0, 0, 1, 1], [], []>} : vector<2x64xf32>, vector<64x128xf32>, vector<2x128xf32> -> vector<2x128xf32>
    %415 = arith.addf %412, %414 : vector<2x128xf32>
    %416 = arith.negf %415 : vector<2x128xf32>
    %417 = math.exp %416 : vector<2x128xf32>
    %cst_75 = arith.constant 1.000000e+00 : f32
    %418 = vector.broadcast %cst_75 : f32 to vector<2x128xf32>
    %419 = arith.addf %418, %417 : vector<2x128xf32>
    %420 = arith.divf %418, %419 : vector<2x128xf32>
    %421 = math.tanh %415 : vector<2x128xf32>
    %422 = vector.extract_strided_slice %420 {offsets = [0, 0], sizes = [2, 32], strides = [1, 1]} : vector<2x128xf32> to vector<2x32xf32>
    %423 = vector.extract_strided_slice %420 {offsets = [0, 32], sizes = [2, 32], strides = [1, 1]} : vector<2x128xf32> to vector<2x32xf32>
    %424 = vector.extract_strided_slice %421 {offsets = [0, 64], sizes = [2, 32], strides = [1, 1]} : vector<2x128xf32> to vector<2x32xf32>
    %425 = vector.extract_strided_slice %420 {offsets = [0, 96], sizes = [2, 32], strides = [1, 1]} : vector<2x128xf32> to vector<2x32xf32>
    %426 = arith.mulf %423, %387 : vector<2x32xf32>
    %427 = arith.mulf %422, %424 : vector<2x32xf32>
    %428 = arith.addf %426, %427 : vector<2x32xf32>
    %429 = math.tanh %428 : vector<2x32xf32>
    %430 = arith.mulf %425, %429 : vector<2x32xf32>
    %cst_76 = arith.constant dense<0.000000e+00> : vector<2x128xf32>
    %431 = tpu.matmul %430, %309, %cst_76 {dimension_numbers = #tpu.dot_dimension_numbers<[1], [0], [0], [1], [0, 0, 1, 1], [], []>} : vector<2x32xf32>, vector<32x128xf32>, vector<2x128xf32> -> vector<2x128xf32>
    %432 = arith.addf %431, %312 : vector<2x128xf32>
    %c2 = arith.constant 2 : index
    %c0_77 = arith.constant 0 : index
    %c0_78 = arith.constant 0 : index
    %433 = vector.load %arg12[%c2, %c0_77, %c0_78] : memref<8x2x128xf32, #tpu.memory_space<vmem>>, vector<1x2x128xf32>
    %434 = vector.shape_cast %433 : vector<1x2x128xf32> to vector<2x128xf32>
    %435 = vector.shape_cast %432 : vector<2x128xf32> to vector<1x2x128xf32>
    tpu.vector_store %arg12[%c2, %c0_77, %c0_78], %435 {strides = array<i32>} : memref<8x2x128xf32, #tpu.memory_space<vmem>>, vector<1x2x128xf32>,
    %cst_79 = arith.constant dense<0.000000e+00> : vector<2x128xf32>
    %436 = tpu.matmul %411, %0, %cst_79 {dimension_numbers = #tpu.dot_dimension_numbers<[1], [0], [0], [1], [0, 0, 1, 1], [], []>} : vector<2x32xf32>, vector<32x128xf32>, vector<2x128xf32> -> vector<2x128xf32>
    %437 = arith.addf %436, %4 : vector<2x128xf32>
    %438 = arith.negf %437 : vector<2x128xf32>
    %439 = math.exp %438 : vector<2x128xf32>
    %cst_80 = arith.constant 1.000000e+00 : f32
    %440 = vector.broadcast %cst_80 : f32 to vector<2x128xf32>
    %441 = arith.addf %440, %439 : vector<2x128xf32>
    %442 = arith.divf %440, %441 : vector<2x128xf32>
    %443 = math.tanh %437 : vector<2x128xf32>
    %444 = vector.extract_strided_slice %442 {offsets = [0, 0], sizes = [2, 32], strides = [1, 1]} : vector<2x128xf32> to vector<2x32xf32>
    %445 = vector.extract_strided_slice %442 {offsets = [0, 32], sizes = [2, 32], strides = [1, 1]} : vector<2x128xf32> to vector<2x32xf32>
    %446 = vector.extract_strided_slice %443 {offsets = [0, 64], sizes = [2, 32], strides = [1, 1]} : vector<2x128xf32> to vector<2x32xf32>
    %447 = vector.extract_strided_slice %442 {offsets = [0, 96], sizes = [2, 32], strides = [1, 1]} : vector<2x128xf32> to vector<2x32xf32>
    %448 = arith.mulf %445, %409 : vector<2x32xf32>
    %449 = arith.mulf %444, %446 : vector<2x32xf32>
    %450 = arith.addf %448, %449 : vector<2x32xf32>
    %451 = math.tanh %450 : vector<2x32xf32>
    %452 = arith.mulf %447, %451 : vector<2x32xf32>
    %453 = vector.extract_strided_slice %19 {offsets = [6, 0], sizes = [2, 128], strides = [1, 1]} : vector<16x128xf32> to vector<2x128xf32>
    %454 = tpu.concatenate %452, %430 in 1 : vector<2x32xf32>, vector<2x32xf32> -> vector<2x64xf32>
    %cst_81 = arith.constant dense<0.000000e+00> : vector<2x128xf32>
    %455 = tpu.matmul %454, %1, %cst_81 {dimension_numbers = #tpu.dot_dimension_numbers<[1], [0], [0], [1], [0, 0, 1, 1], [], []>} : vector<2x64xf32>, vector<64x128xf32>, vector<2x128xf32> -> vector<2x128xf32>
    %456 = arith.addf %453, %455 : vector<2x128xf32>
    %457 = arith.negf %456 : vector<2x128xf32>
    %458 = math.exp %457 : vector<2x128xf32>
    %cst_82 = arith.constant 1.000000e+00 : f32
    %459 = vector.broadcast %cst_82 : f32 to vector<2x128xf32>
    %460 = arith.addf %459, %458 : vector<2x128xf32>
    %461 = arith.divf %459, %460 : vector<2x128xf32>
    %462 = math.tanh %456 : vector<2x128xf32>
    %463 = vector.extract_strided_slice %461 {offsets = [0, 0], sizes = [2, 32], strides = [1, 1]} : vector<2x128xf32> to vector<2x32xf32>
    %464 = vector.extract_strided_slice %461 {offsets = [0, 32], sizes = [2, 32], strides = [1, 1]} : vector<2x128xf32> to vector<2x32xf32>
    %465 = vector.extract_strided_slice %462 {offsets = [0, 64], sizes = [2, 32], strides = [1, 1]} : vector<2x128xf32> to vector<2x32xf32>
    %466 = vector.extract_strided_slice %461 {offsets = [0, 96], sizes = [2, 32], strides = [1, 1]} : vector<2x128xf32> to vector<2x32xf32>
    %467 = arith.mulf %464, %428 : vector<2x32xf32>
    %468 = arith.mulf %463, %465 : vector<2x32xf32>
    %469 = arith.addf %467, %468 : vector<2x32xf32>
    %470 = math.tanh %469 : vector<2x32xf32>
    %471 = arith.mulf %466, %470 : vector<2x32xf32>
    %cst_83 = arith.constant dense<0.000000e+00> : vector<2x128xf32>
    %472 = tpu.matmul %471, %309, %cst_83 {dimension_numbers = #tpu.dot_dimension_numbers<[1], [0], [0], [1], [0, 0, 1, 1], [], []>} : vector<2x32xf32>, vector<32x128xf32>, vector<2x128xf32> -> vector<2x128xf32>
    %473 = arith.addf %472, %312 : vector<2x128xf32>
    %c3 = arith.constant 3 : index
    %c0_84 = arith.constant 0 : index
    %c0_85 = arith.constant 0 : index
    %474 = vector.load %arg12[%c3, %c0_84, %c0_85] : memref<8x2x128xf32, #tpu.memory_space<vmem>>, vector<1x2x128xf32>
    %475 = vector.shape_cast %474 : vector<1x2x128xf32> to vector<2x128xf32>
    %476 = vector.shape_cast %473 : vector<2x128xf32> to vector<1x2x128xf32>
    tpu.vector_store %arg12[%c3, %c0_84, %c0_85], %476 {strides = array<i32>} : memref<8x2x128xf32, #tpu.memory_space<vmem>>, vector<1x2x128xf32>,
    %cst_86 = arith.constant dense<0.000000e+00> : vector<2x128xf32>
    %477 = tpu.matmul %452, %0, %cst_86 {dimension_numbers = #tpu.dot_dimension_numbers<[1], [0], [0], [1], [0, 0, 1, 1], [], []>} : vector<2x32xf32>, vector<32x128xf32>, vector<2x128xf32> -> vector<2x128xf32>
    %478 = arith.addf %477, %4 : vector<2x128xf32>
    %479 = arith.negf %478 : vector<2x128xf32>
    %480 = math.exp %479 : vector<2x128xf32>
    %cst_87 = arith.constant 1.000000e+00 : f32
    %481 = vector.broadcast %cst_87 : f32 to vector<2x128xf32>
    %482 = arith.addf %481, %480 : vector<2x128xf32>
    %483 = arith.divf %481, %482 : vector<2x128xf32>
    %484 = math.tanh %478 : vector<2x128xf32>
    %485 = vector.extract_strided_slice %483 {offsets = [0, 0], sizes = [2, 32], strides = [1, 1]} : vector<2x128xf32> to vector<2x32xf32>
    %486 = vector.extract_strided_slice %483 {offsets = [0, 32], sizes = [2, 32], strides = [1, 1]} : vector<2x128xf32> to vector<2x32xf32>
    %487 = vector.extract_strided_slice %484 {offsets = [0, 64], sizes = [2, 32], strides = [1, 1]} : vector<2x128xf32> to vector<2x32xf32>
    %488 = vector.extract_strided_slice %483 {offsets = [0, 96], sizes = [2, 32], strides = [1, 1]} : vector<2x128xf32> to vector<2x32xf32>
    %489 = arith.mulf %486, %450 : vector<2x32xf32>
    %490 = arith.mulf %485, %487 : vector<2x32xf32>
    %491 = arith.addf %489, %490 : vector<2x32xf32>
    %492 = math.tanh %491 : vector<2x32xf32>
    %493 = arith.mulf %488, %492 : vector<2x32xf32>
    %494 = vector.extract_strided_slice %19 {offsets = [8, 0], sizes = [2, 128], strides = [1, 1]} : vector<16x128xf32> to vector<2x128xf32>
    %495 = tpu.concatenate %493, %471 in 1 : vector<2x32xf32>, vector<2x32xf32> -> vector<2x64xf32>
    %cst_88 = arith.constant dense<0.000000e+00> : vector<2x128xf32>
    %496 = tpu.matmul %495, %1, %cst_88 {dimension_numbers = #tpu.dot_dimension_numbers<[1], [0], [0], [1], [0, 0, 1, 1], [], []>} : vector<2x64xf32>, vector<64x128xf32>, vector<2x128xf32> -> vector<2x128xf32>
    %497 = arith.addf %494, %496 : vector<2x128xf32>
    %498 = arith.negf %497 : vector<2x128xf32>
    %499 = math.exp %498 : vector<2x128xf32>
    %cst_89 = arith.constant 1.000000e+00 : f32
    %500 = vector.broadcast %cst_89 : f32 to vector<2x128xf32>
    %501 = arith.addf %500, %499 : vector<2x128xf32>
    %502 = arith.divf %500, %501 : vector<2x128xf32>
    %503 = math.tanh %497 : vector<2x128xf32>
    %504 = vector.extract_strided_slice %502 {offsets = [0, 0], sizes = [2, 32], strides = [1, 1]} : vector<2x128xf32> to vector<2x32xf32>
    %505 = vector.extract_strided_slice %502 {offsets = [0, 32], sizes = [2, 32], strides = [1, 1]} : vector<2x128xf32> to vector<2x32xf32>
    %506 = vector.extract_strided_slice %503 {offsets = [0, 64], sizes = [2, 32], strides = [1, 1]} : vector<2x128xf32> to vector<2x32xf32>
    %507 = vector.extract_strided_slice %502 {offsets = [0, 96], sizes = [2, 32], strides = [1, 1]} : vector<2x128xf32> to vector<2x32xf32>
    %508 = arith.mulf %505, %469 : vector<2x32xf32>
    %509 = arith.mulf %504, %506 : vector<2x32xf32>
    %510 = arith.addf %508, %509 : vector<2x32xf32>
    %511 = math.tanh %510 : vector<2x32xf32>
    %512 = arith.mulf %507, %511 : vector<2x32xf32>
    %cst_90 = arith.constant dense<0.000000e+00> : vector<2x128xf32>
    %513 = tpu.matmul %512, %309, %cst_90 {dimension_numbers = #tpu.dot_dimension_numbers<[1], [0], [0], [1], [0, 0, 1, 1], [], []>} : vector<2x32xf32>, vector<32x128xf32>, vector<2x128xf32> -> vector<2x128xf32>
    %514 = arith.addf %513, %312 : vector<2x128xf32>
    %c4 = arith.constant 4 : index
    %c0_91 = arith.constant 0 : index
    %c0_92 = arith.constant 0 : index
    %515 = vector.load %arg12[%c4, %c0_91, %c0_92] : memref<8x2x128xf32, #tpu.memory_space<vmem>>, vector<1x2x128xf32>
    %516 = vector.shape_cast %515 : vector<1x2x128xf32> to vector<2x128xf32>
    %517 = vector.shape_cast %514 : vector<2x128xf32> to vector<1x2x128xf32>
    tpu.vector_store %arg12[%c4, %c0_91, %c0_92], %517 {strides = array<i32>} : memref<8x2x128xf32, #tpu.memory_space<vmem>>, vector<1x2x128xf32>,
    %cst_93 = arith.constant dense<0.000000e+00> : vector<2x128xf32>
    %518 = tpu.matmul %493, %0, %cst_93 {dimension_numbers = #tpu.dot_dimension_numbers<[1], [0], [0], [1], [0, 0, 1, 1], [], []>} : vector<2x32xf32>, vector<32x128xf32>, vector<2x128xf32> -> vector<2x128xf32>
    %519 = arith.addf %518, %4 : vector<2x128xf32>
    %520 = arith.negf %519 : vector<2x128xf32>
    %521 = math.exp %520 : vector<2x128xf32>
    %cst_94 = arith.constant 1.000000e+00 : f32
    %522 = vector.broadcast %cst_94 : f32 to vector<2x128xf32>
    %523 = arith.addf %522, %521 : vector<2x128xf32>
    %524 = arith.divf %522, %523 : vector<2x128xf32>
    %525 = math.tanh %519 : vector<2x128xf32>
    %526 = vector.extract_strided_slice %524 {offsets = [0, 0], sizes = [2, 32], strides = [1, 1]} : vector<2x128xf32> to vector<2x32xf32>
    %527 = vector.extract_strided_slice %524 {offsets = [0, 32], sizes = [2, 32], strides = [1, 1]} : vector<2x128xf32> to vector<2x32xf32>
    %528 = vector.extract_strided_slice %525 {offsets = [0, 64], sizes = [2, 32], strides = [1, 1]} : vector<2x128xf32> to vector<2x32xf32>
    %529 = vector.extract_strided_slice %524 {offsets = [0, 96], sizes = [2, 32], strides = [1, 1]} : vector<2x128xf32> to vector<2x32xf32>
    %530 = arith.mulf %527, %491 : vector<2x32xf32>
    %531 = arith.mulf %526, %528 : vector<2x32xf32>
    %532 = arith.addf %530, %531 : vector<2x32xf32>
    %533 = math.tanh %532 : vector<2x32xf32>
    %534 = arith.mulf %529, %533 : vector<2x32xf32>
    %535 = vector.extract_strided_slice %19 {offsets = [10, 0], sizes = [2, 128], strides = [1, 1]} : vector<16x128xf32> to vector<2x128xf32>
    %536 = tpu.concatenate %534, %512 in 1 : vector<2x32xf32>, vector<2x32xf32> -> vector<2x64xf32>
    %cst_95 = arith.constant dense<0.000000e+00> : vector<2x128xf32>
    %537 = tpu.matmul %536, %1, %cst_95 {dimension_numbers = #tpu.dot_dimension_numbers<[1], [0], [0], [1], [0, 0, 1, 1], [], []>} : vector<2x64xf32>, vector<64x128xf32>, vector<2x128xf32> -> vector<2x128xf32>
    %538 = arith.addf %535, %537 : vector<2x128xf32>
    %539 = arith.negf %538 : vector<2x128xf32>
    %540 = math.exp %539 : vector<2x128xf32>
    %cst_96 = arith.constant 1.000000e+00 : f32
    %541 = vector.broadcast %cst_96 : f32 to vector<2x128xf32>
    %542 = arith.addf %541, %540 : vector<2x128xf32>
    %543 = arith.divf %541, %542 : vector<2x128xf32>
    %544 = math.tanh %538 : vector<2x128xf32>
    %545 = vector.extract_strided_slice %543 {offsets = [0, 0], sizes = [2, 32], strides = [1, 1]} : vector<2x128xf32> to vector<2x32xf32>
    %546 = vector.extract_strided_slice %543 {offsets = [0, 32], sizes = [2, 32], strides = [1, 1]} : vector<2x128xf32> to vector<2x32xf32>
    %547 = vector.extract_strided_slice %544 {offsets = [0, 64], sizes = [2, 32], strides = [1, 1]} : vector<2x128xf32> to vector<2x32xf32>
    %548 = vector.extract_strided_slice %543 {offsets = [0, 96], sizes = [2, 32], strides = [1, 1]} : vector<2x128xf32> to vector<2x32xf32>
    %549 = arith.mulf %546, %510 : vector<2x32xf32>
    %550 = arith.mulf %545, %547 : vector<2x32xf32>
    %551 = arith.addf %549, %550 : vector<2x32xf32>
    %552 = math.tanh %551 : vector<2x32xf32>
    %553 = arith.mulf %548, %552 : vector<2x32xf32>
    %cst_97 = arith.constant dense<0.000000e+00> : vector<2x128xf32>
    %554 = tpu.matmul %553, %309, %cst_97 {dimension_numbers = #tpu.dot_dimension_numbers<[1], [0], [0], [1], [0, 0, 1, 1], [], []>} : vector<2x32xf32>, vector<32x128xf32>, vector<2x128xf32> -> vector<2x128xf32>
    %555 = arith.addf %554, %312 : vector<2x128xf32>
    %c5 = arith.constant 5 : index
    %c0_98 = arith.constant 0 : index
    %c0_99 = arith.constant 0 : index
    %556 = vector.load %arg12[%c5, %c0_98, %c0_99] : memref<8x2x128xf32, #tpu.memory_space<vmem>>, vector<1x2x128xf32>
    %557 = vector.shape_cast %556 : vector<1x2x128xf32> to vector<2x128xf32>
    %558 = vector.shape_cast %555 : vector<2x128xf32> to vector<1x2x128xf32>
    tpu.vector_store %arg12[%c5, %c0_98, %c0_99], %558 {strides = array<i32>} : memref<8x2x128xf32, #tpu.memory_space<vmem>>, vector<1x2x128xf32>,
    %cst_100 = arith.constant dense<0.000000e+00> : vector<2x128xf32>
    %559 = tpu.matmul %534, %0, %cst_100 {dimension_numbers = #tpu.dot_dimension_numbers<[1], [0], [0], [1], [0, 0, 1, 1], [], []>} : vector<2x32xf32>, vector<32x128xf32>, vector<2x128xf32> -> vector<2x128xf32>
    %560 = arith.addf %559, %4 : vector<2x128xf32>
    %561 = arith.negf %560 : vector<2x128xf32>
    %562 = math.exp %561 : vector<2x128xf32>
    %cst_101 = arith.constant 1.000000e+00 : f32
    %563 = vector.broadcast %cst_101 : f32 to vector<2x128xf32>
    %564 = arith.addf %563, %562 : vector<2x128xf32>
    %565 = arith.divf %563, %564 : vector<2x128xf32>
    %566 = math.tanh %560 : vector<2x128xf32>
    %567 = vector.extract_strided_slice %565 {offsets = [0, 0], sizes = [2, 32], strides = [1, 1]} : vector<2x128xf32> to vector<2x32xf32>
    %568 = vector.extract_strided_slice %565 {offsets = [0, 32], sizes = [2, 32], strides = [1, 1]} : vector<2x128xf32> to vector<2x32xf32>
    %569 = vector.extract_strided_slice %566 {offsets = [0, 64], sizes = [2, 32], strides = [1, 1]} : vector<2x128xf32> to vector<2x32xf32>
    %570 = vector.extract_strided_slice %565 {offsets = [0, 96], sizes = [2, 32], strides = [1, 1]} : vector<2x128xf32> to vector<2x32xf32>
    %571 = arith.mulf %568, %532 : vector<2x32xf32>
    %572 = arith.mulf %567, %569 : vector<2x32xf32>
    %573 = arith.addf %571, %572 : vector<2x32xf32>
    %574 = math.tanh %573 : vector<2x32xf32>
    %575 = arith.mulf %570, %574 : vector<2x32xf32>
    %576 = vector.extract_strided_slice %19 {offsets = [12, 0], sizes = [2, 128], strides = [1, 1]} : vector<16x128xf32> to vector<2x128xf32>
    %577 = tpu.concatenate %575, %553 in 1 : vector<2x32xf32>, vector<2x32xf32> -> vector<2x64xf32>
    %cst_102 = arith.constant dense<0.000000e+00> : vector<2x128xf32>
    %578 = tpu.matmul %577, %1, %cst_102 {dimension_numbers = #tpu.dot_dimension_numbers<[1], [0], [0], [1], [0, 0, 1, 1], [], []>} : vector<2x64xf32>, vector<64x128xf32>, vector<2x128xf32> -> vector<2x128xf32>
    %579 = arith.addf %576, %578 : vector<2x128xf32>
    %580 = arith.negf %579 : vector<2x128xf32>
    %581 = math.exp %580 : vector<2x128xf32>
    %cst_103 = arith.constant 1.000000e+00 : f32
    %582 = vector.broadcast %cst_103 : f32 to vector<2x128xf32>
    %583 = arith.addf %582, %581 : vector<2x128xf32>
    %584 = arith.divf %582, %583 : vector<2x128xf32>
    %585 = math.tanh %579 : vector<2x128xf32>
    %586 = vector.extract_strided_slice %584 {offsets = [0, 0], sizes = [2, 32], strides = [1, 1]} : vector<2x128xf32> to vector<2x32xf32>
    %587 = vector.extract_strided_slice %584 {offsets = [0, 32], sizes = [2, 32], strides = [1, 1]} : vector<2x128xf32> to vector<2x32xf32>
    %588 = vector.extract_strided_slice %585 {offsets = [0, 64], sizes = [2, 32], strides = [1, 1]} : vector<2x128xf32> to vector<2x32xf32>
    %589 = vector.extract_strided_slice %584 {offsets = [0, 96], sizes = [2, 32], strides = [1, 1]} : vector<2x128xf32> to vector<2x32xf32>
    %590 = arith.mulf %587, %551 : vector<2x32xf32>
    %591 = arith.mulf %586, %588 : vector<2x32xf32>
    %592 = arith.addf %590, %591 : vector<2x32xf32>
    %593 = math.tanh %592 : vector<2x32xf32>
    %594 = arith.mulf %589, %593 : vector<2x32xf32>
    %cst_104 = arith.constant dense<0.000000e+00> : vector<2x128xf32>
    %595 = tpu.matmul %594, %309, %cst_104 {dimension_numbers = #tpu.dot_dimension_numbers<[1], [0], [0], [1], [0, 0, 1, 1], [], []>} : vector<2x32xf32>, vector<32x128xf32>, vector<2x128xf32> -> vector<2x128xf32>
    %596 = arith.addf %595, %312 : vector<2x128xf32>
    %c6 = arith.constant 6 : index
    %c0_105 = arith.constant 0 : index
    %c0_106 = arith.constant 0 : index
    %597 = vector.load %arg12[%c6, %c0_105, %c0_106] : memref<8x2x128xf32, #tpu.memory_space<vmem>>, vector<1x2x128xf32>
    %598 = vector.shape_cast %597 : vector<1x2x128xf32> to vector<2x128xf32>
    %599 = vector.shape_cast %596 : vector<2x128xf32> to vector<1x2x128xf32>
    tpu.vector_store %arg12[%c6, %c0_105, %c0_106], %599 {strides = array<i32>} : memref<8x2x128xf32, #tpu.memory_space<vmem>>, vector<1x2x128xf32>,
    %cst_107 = arith.constant dense<0.000000e+00> : vector<2x128xf32>
    %600 = tpu.matmul %575, %0, %cst_107 {dimension_numbers = #tpu.dot_dimension_numbers<[1], [0], [0], [1], [0, 0, 1, 1], [], []>} : vector<2x32xf32>, vector<32x128xf32>, vector<2x128xf32> -> vector<2x128xf32>
    %601 = arith.addf %600, %4 : vector<2x128xf32>
    %602 = arith.negf %601 : vector<2x128xf32>
    %603 = math.exp %602 : vector<2x128xf32>
    %cst_108 = arith.constant 1.000000e+00 : f32
    %604 = vector.broadcast %cst_108 : f32 to vector<2x128xf32>
    %605 = arith.addf %604, %603 : vector<2x128xf32>
    %606 = arith.divf %604, %605 : vector<2x128xf32>
    %607 = math.tanh %601 : vector<2x128xf32>
    %608 = vector.extract_strided_slice %606 {offsets = [0, 0], sizes = [2, 32], strides = [1, 1]} : vector<2x128xf32> to vector<2x32xf32>
    %609 = vector.extract_strided_slice %606 {offsets = [0, 32], sizes = [2, 32], strides = [1, 1]} : vector<2x128xf32> to vector<2x32xf32>
    %610 = vector.extract_strided_slice %607 {offsets = [0, 64], sizes = [2, 32], strides = [1, 1]} : vector<2x128xf32> to vector<2x32xf32>
    %611 = vector.extract_strided_slice %606 {offsets = [0, 96], sizes = [2, 32], strides = [1, 1]} : vector<2x128xf32> to vector<2x32xf32>
    %612 = arith.mulf %609, %573 : vector<2x32xf32>
    %613 = arith.mulf %608, %610 : vector<2x32xf32>
    %614 = arith.addf %612, %613 : vector<2x32xf32>
    %615 = math.tanh %614 : vector<2x32xf32>
    %616 = arith.mulf %611, %615 : vector<2x32xf32>
    %617 = vector.extract_strided_slice %19 {offsets = [14, 0], sizes = [2, 128], strides = [1, 1]} : vector<16x128xf32> to vector<2x128xf32>
    %618 = tpu.concatenate %616, %594 in 1 : vector<2x32xf32>, vector<2x32xf32> -> vector<2x64xf32>
    %cst_109 = arith.constant dense<0.000000e+00> : vector<2x128xf32>
    %619 = tpu.matmul %618, %1, %cst_109 {dimension_numbers = #tpu.dot_dimension_numbers<[1], [0], [0], [1], [0, 0, 1, 1], [], []>} : vector<2x64xf32>, vector<64x128xf32>, vector<2x128xf32> -> vector<2x128xf32>
    %620 = arith.addf %617, %619 : vector<2x128xf32>
    %621 = arith.negf %620 : vector<2x128xf32>
    %622 = math.exp %621 : vector<2x128xf32>
    %cst_110 = arith.constant 1.000000e+00 : f32
    %623 = vector.broadcast %cst_110 : f32 to vector<2x128xf32>
    %624 = arith.addf %623, %622 : vector<2x128xf32>
    %625 = arith.divf %623, %624 : vector<2x128xf32>
    %626 = math.tanh %620 : vector<2x128xf32>
    %627 = vector.extract_strided_slice %625 {offsets = [0, 0], sizes = [2, 32], strides = [1, 1]} : vector<2x128xf32> to vector<2x32xf32>
    %628 = vector.extract_strided_slice %625 {offsets = [0, 32], sizes = [2, 32], strides = [1, 1]} : vector<2x128xf32> to vector<2x32xf32>
    %629 = vector.extract_strided_slice %626 {offsets = [0, 64], sizes = [2, 32], strides = [1, 1]} : vector<2x128xf32> to vector<2x32xf32>
    %630 = vector.extract_strided_slice %625 {offsets = [0, 96], sizes = [2, 32], strides = [1, 1]} : vector<2x128xf32> to vector<2x32xf32>
    %631 = arith.mulf %628, %592 : vector<2x32xf32>
    %632 = arith.mulf %627, %629 : vector<2x32xf32>
    %633 = arith.addf %631, %632 : vector<2x32xf32>
    %634 = math.tanh %633 : vector<2x32xf32>
    %635 = arith.mulf %630, %634 : vector<2x32xf32>
    %cst_111 = arith.constant dense<0.000000e+00> : vector<2x128xf32>
    %636 = tpu.matmul %635, %309, %cst_111 {dimension_numbers = #tpu.dot_dimension_numbers<[1], [0], [0], [1], [0, 0, 1, 1], [], []>} : vector<2x32xf32>, vector<32x128xf32>, vector<2x128xf32> -> vector<2x128xf32>
    %637 = arith.addf %636, %312 : vector<2x128xf32>
    %c7 = arith.constant 7 : index
    %c0_112 = arith.constant 0 : index
    %c0_113 = arith.constant 0 : index
    %638 = vector.load %arg12[%c7, %c0_112, %c0_113] : memref<8x2x128xf32, #tpu.memory_space<vmem>>, vector<1x2x128xf32>
    %639 = vector.shape_cast %638 : vector<1x2x128xf32> to vector<2x128xf32>
    %640 = vector.shape_cast %637 : vector<2x128xf32> to vector<1x2x128xf32>
    tpu.vector_store %arg12[%c7, %c0_112, %c0_113], %640 {strides = array<i32>} : memref<8x2x128xf32, #tpu.memory_space<vmem>>, vector<1x2x128xf32>,
    %641 = tpu.concatenate %616, %614, %635, %633 in 1 : vector<2x32xf32>, vector<2x32xf32>, vector<2x32xf32>, vector<2x32xf32> -> vector<2x128xf32>
    %c0_114 = arith.constant 0 : index
    %c0_115 = arith.constant 0 : index
    %642 = vector.load %arg13[%c0_114, %c0_115] : memref<2x128xf32, #tpu.memory_space<vmem>>, vector<2x128xf32>
    tpu.vector_store %arg13[%c0_114, %c0_115], %641 {strides = array<i32>} : memref<2x128xf32, #tpu.memory_space<vmem>>, vector<2x128xf32>,
    return
  }
}

</mosaic_0001>

<llo_original>
// kernel: new_seq2seq_forward.1
$region0: #{new_seq2seq_forward.1}
  #allocation0 [shape = 'u32[]', space=smem, size = 0x4, offset = 0x4, fixed_abs, tag = 'smem constant byte address 0x4 - core index']
  #allocation1 [shape = 'u32[144,128]{1,0:T(1,128)}', space=vmem, size = 0x12000, scoped, tag = 'internal scratch']
  %s0 = inlined_call_operand.vmem [shape: f32[16,16], index: 0, kind: input, shape index: {}]
  %s1 = inlined_call_operand.vmem [shape: f32[16,16], index: 1, kind: input, shape index: {}]
  %s2 = inlined_call_operand.vmem [shape: f32[16,128], index: 2, kind: input, shape index: {}]
  %s3 = inlined_call_operand.vmem [shape: f32[1,128], index: 3, kind: input, shape index: {}]
  %s4 = inlined_call_operand.vmem [shape: f32[16,128], index: 4, kind: input, shape index: {}]
  %s5 = inlined_call_operand.vmem [shape: f32[1,128], index: 5, kind: input, shape index: {}]
  %s6 = inlined_call_operand.vmem [shape: f32[32,128], index: 6, kind: input, shape index: {}]
  %s7 = inlined_call_operand.vmem [shape: f32[1,128], index: 7, kind: input, shape index: {}]
  %s8 = inlined_call_operand.vmem [shape: f32[64,128], index: 8, kind: input, shape index: {}]
  %s9 = inlined_call_operand.vmem [shape: f32[1,128], index: 9, kind: input, shape index: {}]
  %s10 = inlined_call_operand.vmem [shape: f32[32,128], index: 10, kind: input, shape index: {}]
  %s11 = inlined_call_operand.vmem [shape: f32[1,128], index: 11, kind: input, shape index: {}]
  %s12 = inlined_call_operand.hbm [shape: f32[8,2,128], index: 12, kind: output, shape index: {0}]
  %s13 = inlined_call_operand.vmem [shape: f32[2,128], index: 13, kind: output, shape index: {1}]
  %14 = xla_tuple %s12, %s13
  %s15 = sld [smem:[#allocation0]]
  $region66: #{new_seq2seq_forward.1} parent=0
    _
  %s17 = ssub.s32 1, %s15
  %s18 = scalar_select 0, %s17, %s15
  $region1: #{new_seq2seq_forward.1} parent=0
    #allocation2 [shape = 'u8[8192]{0}', space=vmem, size = 0x2000, scoped, tag = 'output window, operand 0, single buffered']
    #allocation3 [shape = 's32[1]{0}', space=sflag, size = 0x4, scoped, tag = 'scoped memory for new_seq2seq_forward.1']
    %19 = vsyncpa [#allocation3], 0
    // Predicated region
    $region2: #{new_seq2seq_forward.1} parent=1 // pred_check
      _
    $region3: #{new_seq2seq_forward.1} parent=1 // pred_check_branch
      %21 = sbr.rel (0) target = $region5
    $region4: #{new_seq2seq_forward.1} parent=1 // pred_region
      _
    $region5: #{new_seq2seq_forward.1} parent=1 // pred_fallthru
      _
    // Predicated region
    $region6: #{new_seq2seq_forward.1} parent=1 // pred_check
      _
    $region7: #{new_seq2seq_forward.1} parent=1 // pred_check_branch
      %23 = sbr.rel (0) target = $region9
    $region8: #{new_seq2seq_forward.1} parent=1 // pred_region
      _
    $region9: #{new_seq2seq_forward.1} parent=1 // pred_fallthru
      _
    // Predicated region
    $region10: #{new_seq2seq_forward.1} parent=1 // pred_check
      _
    $region11: #{new_seq2seq_forward.1} parent=1 // pred_check_branch
      %25 = sbr.rel (0) target = $region13
    $region12: #{new_seq2seq_forward.1} parent=1 // pred_region
      _
    $region13: #{new_seq2seq_forward.1} parent=1 // pred_fallthru
      _
    // Predicated region
    $region14: #{new_seq2seq_forward.1} parent=1 // pred_check
      _
    $region15: #{new_seq2seq_forward.1} parent=1 // pred_check_branch
      %27 = sbr.rel (0) target = $region17
    $region16: #{new_seq2seq_forward.1} parent=1 // pred_region
      _
    $region17: #{new_seq2seq_forward.1} parent=1 // pred_fallthru
      _
    // Predicated region
    $region18: #{new_seq2seq_forward.1} parent=1 // pred_check
      _
    $region19: #{new_seq2seq_forward.1} parent=1 // pred_check_branch
      %29 = sbr.rel (0) target = $region21
    $region20: #{new_seq2seq_forward.1} parent=1 // pred_region
      _
    $region21: #{new_seq2seq_forward.1} parent=1 // pred_fallthru
      _
    // Predicated region
    $region22: #{new_seq2seq_forward.1} parent=1 // pred_check
      _
    $region23: #{new_seq2seq_forward.1} parent=1 // pred_check_branch
      %31 = sbr.rel (0) target = $region25
    $region24: #{new_seq2seq_forward.1} parent=1 // pred_region
      _
    $region25: #{new_seq2seq_forward.1} parent=1 // pred_fallthru
      _
    // Predicated region
    $region26: #{new_seq2seq_forward.1} parent=1 // pred_check
      _
    $region27: #{new_seq2seq_forward.1} parent=1 // pred_check_branch
      %33 = sbr.rel (0) target = $region29
    $region28: #{new_seq2seq_forward.1} parent=1 // pred_region
      _
    $region29: #{new_seq2seq_forward.1} parent=1 // pred_fallthru
      _
    // Predicated region
    $region30: #{new_seq2seq_forward.1} parent=1 // pred_check
      _
    $region31: #{new_seq2seq_forward.1} parent=1 // pred_check_branch
      %35 = sbr.rel (0) target = $region33
    $region32: #{new_seq2seq_forward.1} parent=1 // pred_region
      _
    $region33: #{new_seq2seq_forward.1} parent=1 // pred_fallthru
      _
    // Predicated region
    $region34: #{new_seq2seq_forward.1} parent=1 // pred_check
      _
    $region35: #{new_seq2seq_forward.1} parent=1 // pred_check_branch
      %37 = sbr.rel (0) target = $region37
    $region36: #{new_seq2seq_forward.1} parent=1 // pred_region
      _
    $region37: #{new_seq2seq_forward.1} parent=1 // pred_fallthru
      _
    // Predicated region
    $region38: #{new_seq2seq_forward.1} parent=1 // pred_check
      _
    $region39: #{new_seq2seq_forward.1} parent=1 // pred_check_branch
      %39 = sbr.rel (0) target = $region41
    $region40: #{new_seq2seq_forward.1} parent=1 // pred_region
      _
    $region41: #{new_seq2seq_forward.1} parent=1 // pred_fallthru
      _
    // Predicated region
    $region42: #{new_seq2seq_forward.1} parent=1 // pred_check
      _
    $region43: #{new_seq2seq_forward.1} parent=1 // pred_check_branch
      %41 = sbr.rel (0) target = $region45
    $region44: #{new_seq2seq_forward.1} parent=1 // pred_region
      _
    $region45: #{new_seq2seq_forward.1} parent=1 // pred_fallthru
      _
    // Predicated region
    $region46: #{new_seq2seq_forward.1} parent=1 // pred_check
      _
    $region47: #{new_seq2seq_forward.1} parent=1 // pred_check_branch
      %43 = sbr.rel (0) target = $region49
    $region48: #{new_seq2seq_forward.1} parent=1 // pred_region
      _
    $region49: #{new_seq2seq_forward.1} parent=1 // pred_fallthru
      _
    %v44 = vld [vmem:[%s6] sm:$0xff]
    %v45 = vld [vmem:[%s6 + $0x8] sm:$0xff]
    %v46 = vld [vmem:[%s6 + $0x10] sm:$0xff]
    %v47 = vld [vmem:[%s6 + $0x18] sm:$0xff]
    %v48 = vld [vmem:[%s8] sm:$0xff]
    %v49 = vld [vmem:[%s8 + $0x8] sm:$0xff]
    %v50 = vld [vmem:[%s8 + $0x10] sm:$0xff]
    %v51 = vld [vmem:[%s8 + $0x18] sm:$0xff]
    %v52 = vld [vmem:[%s8 + $0x20] sm:$0xff]
    %v53 = vld [vmem:[%s8 + $0x28] sm:$0xff]
    %v54 = vld [vmem:[%s8 + $0x30] sm:$0xff]
    %v55 = vld [vmem:[%s8 + $0x38] sm:$0xff]
    %v56 = vld [vmem:[%s7] sm:$0x1]
    %v58 = vlaneseq
    %v59 = vshrl.u32 %v58, 7
    %v60 = vsub.s32 0, %v59
    %v61 = vrot.slane %v56, %v60
    %v63 = vld [vmem:[%s9] sm:$0x1]
    %v65 = vlaneseq
    %v66 = vshrl.u32 %v65, 7
    %v67 = vsub.s32 0, %v66
    %v68 = vrot.slane %v63, %v67
    %v70 = vld [vmem:[%s0] sm:$0xff]
    %v71 = vld [vmem:[%s0 + $0x8] sm:$0xff]
    %v72 = vld [vmem:[%s2] sm:$0xff]
    %v73 = vld [vmem:[%s2 + $0x8] sm:$0xff]
    %v74 = vld [vmem:[%s3] sm:$0x1]
    %v76 = vlaneseq
    %v77 = vshrl.u32 %v76, 7
    %v78 = vsub.s32 0, %v77
    %v79 = vrot.slane %v74, %v78
    %vm81 = vcmask 130048
    %v83 = vsel %vm81, %v70, 0
    %v86 = vsel %vm81, %v71, 0
    %88 = vmatprep.subr.mxu0 0.0
    %89 = vmatpush1.msra.mxu0 0.0
    %90 = vmatprep.subr.mxu0 0.0
    %91 = vmatpush1.msra.mxu0 0.0
    %92 = vmatprep.subr.mxu0 0.0
    %93 = vmatpush1.msra.mxu0 0.0
    %94 = vmatprep.subr.mxu0 0.0
    %95 = vmatpush1.msra.mxu0 0.0
    %96 = vmatprep.subr.mxu0 0.0
    %97 = vmatpush1.msra.mxu0 0.0
    %98 = vmatprep.subr.mxu0 0.0
    %99 = vmatpush1.msra.mxu0 0.0
    %100 = vmatprep.subr.mxu0 0.0
    %101 = vmatpush1.msra.mxu0 0.0
    %102 = vmatprep.subr.mxu0 0.0
    %103 = vmatpush1.msra.mxu0 0.0
    %104 = vmatprep.subr.mxu0 0.0
    %105 = vmatpush1.msra.mxu0 0.0
    %106 = vmatprep.subr.mxu0 0.0
    %107 = vmatpush1.msra.mxu0 0.0
    %108 = vmatprep.subr.mxu0 0.0
    %109 = vmatpush1.msra.mxu0 0.0
    %110 = vmatprep.subr.mxu0 0.0
    %111 = vmatpush1.msra.mxu0 0.0
    %112 = vmatprep.subr.mxu0 0.0
    %113 = vmatpush1.msra.mxu0 0.0
    %114 = vmatprep.subr.mxu0 0.0
    %115 = vmatpush1.msra.mxu0 0.0
    %116 = vmatprep.subr.mxu0 0.0
    %117 = vmatpush1.msra.mxu0 %v73
    %118 = vmatprep.subr.mxu0 0.0
    %119 = vmatpush1.msra.mxu0 %v72
    %120 = vmatprep.subr.mxu0 0.0
    %121 = vmatpush2.msra.mxu0 0.0
    %122 = vmatprep.subr.mxu0 0.0
    %123 = vmatpush2.msra.mxu0 0.0
    %124 = vmatprep.subr.mxu0 0.0
    %125 = vmatpush2.msra.mxu0 0.0
    %126 = vmatprep.subr.mxu0 0.0
    %127 = vmatpush2.msra.mxu0 0.0
    %128 = vmatprep.subr.mxu0 0.0
    %129 = vmatpush2.msra.mxu0 0.0
    %130 = vmatprep.subr.mxu0 0.0
    %131 = vmatpush2.msra.mxu0 0.0
    %132 = vmatprep.subr.mxu0 0.0
    %133 = vmatpush2.msra.mxu0 0.0
    %134 = vmatprep.subr.mxu0 0.0
    %135 = vmatpush2.msra.mxu0 0.0
    %136 = vmatprep.subr.mxu0 0.0
    %137 = vmatpush2.msra.mxu0 0.0
    %138 = vmatprep.subr.mxu0 0.0
    %139 = vmatpush2.msra.mxu0 0.0
    %140 = vmatprep.subr.mxu0 0.0
    %141 = vmatpush2.msra.mxu0 0.0
    %142 = vmatprep.subr.mxu0 0.0
    %143 = vmatpush2.msra.mxu0 0.0
    %144 = vmatprep.subr.mxu0 0.0
    %145 = vmatpush2.msra.mxu0 0.0
    %146 = vmatprep.subr.mxu0 0.0
    %147 = vmatpush2.msra.mxu0 0.0
    %148 = vmatprep.subr.mxu0 0.0
    %149 = vmatpush2.msra.mxu0 0.0
    %150 = vmatprep.subr.mxu0 0.0
    %151 = vmatpush2.msra.mxu0 0.0
    %152 = vmatprep.mubr.f32.mxu0 0.0
    %153 = vmatmul.mubr.f32.gmra.mxu0 %v83
    %v154 = vpop.f32.mrf.mxu0
    %v155 = vadd.f32 %v79, %v154
    %v156 = vpop.f32.mrf.mxu0
    %157 = vmatprep.mubr.f32.mxu0 0.0
    %158 = vmatmul.mubr.f32.gmra.mxu0 %v86
    %v159 = vpop.f32.mrf.mxu0
    %v160 = vadd.f32 %v79, %v159
    %v161 = vpop.f32.mrf.mxu0
    %162 = vdwg.mxu0
    %v163 = vld [vmem:[%s1] sm:$0xff]
    %v164 = vld [vmem:[%s1 + $0x8] sm:$0xff]
    %v165 = vld [vmem:[%s4] sm:$0xff]
    %v166 = vld [vmem:[%s4 + $0x8] sm:$0xff]
    %v167 = vld [vmem:[%s5] sm:$0x1]
    %v169 = vlaneseq
    %v170 = vshrl.u32 %v169, 7
    %v171 = vsub.s32 0, %v170
    %v172 = vrot.slane %v167, %v171
    %v175 = vsel %vm81, %v163, 0
    %v178 = vsel %vm81, %v164, 0
    %180 = vmatprep.subr.mxu0 0.0
    %181 = vmatpush1.msra.mxu0 0.0
    %182 = vmatprep.subr.mxu0 0.0
    %183 = vmatpush1.msra.mxu0 0.0
    %184 = vmatprep.subr.mxu0 0.0
    %185 = vmatpush1.msra.mxu0 0.0
    %186 = vmatprep.subr.mxu0 0.0
    %187 = vmatpush1.msra.mxu0 0.0
    %188 = vmatprep.subr.mxu0 0.0
    %189 = vmatpush1.msra.mxu0 0.0
    %190 = vmatprep.subr.mxu0 0.0
    %191 = vmatpush1.msra.mxu0 0.0
    %192 = vmatprep.subr.mxu0 0.0
    %193 = vmatpush1.msra.mxu0 0.0
    %194 = vmatprep.subr.mxu0 0.0
    %195 = vmatpush1.msra.mxu0 0.0
    %196 = vmatprep.subr.mxu0 0.0
    %197 = vmatpush1.msra.mxu0 0.0
    %198 = vmatprep.subr.mxu0 0.0
    %199 = vmatpush1.msra.mxu0 0.0
    %200 = vmatprep.subr.mxu0 0.0
    %201 = vmatpush1.msra.mxu0 0.0
    %202 = vmatprep.subr.mxu0 0.0
    %203 = vmatpush1.msra.mxu0 0.0
    %204 = vmatprep.subr.mxu0 0.0
    %205 = vmatpush1.msra.mxu0 0.0
    %206 = vmatprep.subr.mxu0 0.0
    %207 = vmatpush1.msra.mxu0 0.0
    %208 = vmatprep.subr.mxu0 0.0
    %209 = vmatpush1.msra.mxu0 %v166
    %210 = vmatprep.subr.mxu0 0.0
    %211 = vmatpush1.msra.mxu0 %v165
    %212 = vmatprep.subr.mxu0 0.0
    %213 = vmatpush2.msra.mxu0 0.0
    %214 = vmatprep.subr.mxu0 0.0
    %215 = vmatpush2.msra.mxu0 0.0
    %216 = vmatprep.subr.mxu0 0.0
    %217 = vmatpush2.msra.mxu0 0.0
    %218 = vmatprep.subr.mxu0 0.0
    %219 = vmatpush2.msra.mxu0 0.0
    %220 = vmatprep.subr.mxu0 0.0
    %221 = vmatpush2.msra.mxu0 0.0
    %222 = vmatprep.subr.mxu0 0.0
    %223 = vmatpush2.msra.mxu0 0.0
    %224 = vmatprep.subr.mxu0 0.0
    %225 = vmatpush2.msra.mxu0 0.0
    %226 = vmatprep.subr.mxu0 0.0
    %227 = vmatpush2.msra.mxu0 0.0
    %228 = vmatprep.subr.mxu0 0.0
    %229 = vmatpush2.msra.mxu0 0.0
    %230 = vmatprep.subr.mxu0 0.0
    %231 = vmatpush2.msra.mxu0 0.0
    %232 = vmatprep.subr.mxu0 0.0
    %233 = vmatpush2.msra.mxu0 0.0
    %234 = vmatprep.subr.mxu0 0.0
    %235 = vmatpush2.msra.mxu0 0.0
    %236 = vmatprep.subr.mxu0 0.0
    %237 = vmatpush2.msra.mxu0 0.0
    %238 = vmatprep.subr.mxu0 0.0
    %239 = vmatpush2.msra.mxu0 0.0
    %240 = vmatprep.subr.mxu0 0.0
    %241 = vmatpush2.msra.mxu0 0.0
    %242 = vmatprep.subr.mxu0 0.0
    %243 = vmatpush2.msra.mxu0 0.0
    %244 = vmatprep.mubr.f32.mxu0 0.0
    %245 = vmatmul.mubr.f32.gmra.mxu0 %v175
    %v246 = vpop.f32.mrf.mxu0
    %v247 = vadd.f32 %v172, %v246
    %v248 = vpop.f32.mrf.mxu0
    %249 = vmatprep.mubr.f32.mxu0 0.0
    %250 = vmatmul.mubr.f32.gmra.mxu0 %v178
    %v251 = vpop.f32.mrf.mxu0
    %v252 = vadd.f32 %v172, %v251
    %v253 = vpop.f32.mrf.mxu0
    %254 = vdwg.mxu0
    %vm255 = vcmask 261120
    %v257 = vsel %vm255, 0.0, 0
    %259 = vmatprep.subr.mxu0 0.0
    %260 = vmatpush1.msra.mxu0 0.0
    %261 = vmatprep.subr.mxu0 0.0
    %262 = vmatpush1.msra.mxu0 0.0
    %263 = vmatprep.subr.mxu0 0.0
    %264 = vmatpush1.msra.mxu0 0.0
    %265 = vmatprep.subr.mxu0 0.0
    %266 = vmatpush1.msra.mxu0 0.0
    %267 = vmatprep.subr.mxu0 0.0
    %268 = vmatpush1.msra.mxu0 0.0
    %269 = vmatprep.subr.mxu0 0.0
    %270 = vmatpush1.msra.mxu0 0.0
    %271 = vmatprep.subr.mxu0 0.0
    %272 = vmatpush1.msra.mxu0 0.0
    %273 = vmatprep.subr.mxu0 0.0
    %274 = vmatpush1.msra.mxu0 0.0
    %275 = vmatprep.subr.mxu0 0.0
    %276 = vmatpush1.msra.mxu0 0.0
    %277 = vmatprep.subr.mxu0 0.0
    %278 = vmatpush1.msra.mxu0 0.0
    %279 = vmatprep.subr.mxu0 0.0
    %280 = vmatpush1.msra.mxu0 0.0
    %281 = vmatprep.subr.mxu0 0.0
    %282 = vmatpush1.msra.mxu0 0.0
    %283 = vmatprep.subr.mxu0 0.0
    %284 = vmatpush1.msra.mxu0 %v47
    %285 = vmatprep.subr.mxu0 0.0
    %286 = vmatpush1.msra.mxu0 %v46
    %287 = vmatprep.subr.mxu0 0.0
    %288 = vmatpush1.msra.mxu0 %v45
    %289 = vmatprep.subr.mxu0 0.0
    %290 = vmatpush1.msra.mxu0 %v44
    %291 = vmatprep.subr.mxu0 0.0
    %292 = vmatpush2.msra.mxu0 0.0
    %293 = vmatprep.subr.mxu0 0.0
    %294 = vmatpush2.msra.mxu0 0.0
    %295 = vmatprep.subr.mxu0 0.0
    %296 = vmatpush2.msra.mxu0 0.0
    %297 = vmatprep.subr.mxu0 0.0
    %298 = vmatpush2.msra.mxu0 0.0
    %299 = vmatprep.subr.mxu0 0.0
    %300 = vmatpush2.msra.mxu0 0.0
    %301 = vmatprep.subr.mxu0 0.0
    %302 = vmatpush2.msra.mxu0 0.0
    %303 = vmatprep.subr.mxu0 0.0
    %304 = vmatpush2.msra.mxu0 0.0
    %305 = vmatprep.subr.mxu0 0.0
    %306 = vmatpush2.msra.mxu0 0.0
    %307 = vmatprep.subr.mxu0 0.0
    %308 = vmatpush2.msra.mxu0 0.0
    %309 = vmatprep.subr.mxu0 0.0
    %310 = vmatpush2.msra.mxu0 0.0
    %311 = vmatprep.subr.mxu0 0.0
    %312 = vmatpush2.msra.mxu0 0.0
    %313 = vmatprep.subr.mxu0 0.0
    %314 = vmatpush2.msra.mxu0 0.0
    %315 = vmatprep.subr.mxu0 0.0
    %316 = vmatpush2.msra.mxu0 0.0
    %317 = vmatprep.subr.mxu0 0.0
    %318 = vmatpush2.msra.mxu0 0.0
    %319 = vmatprep.subr.mxu0 0.0
    %320 = vmatpush2.msra.mxu0 0.0
    %321 = vmatprep.subr.mxu0 0.0
    %322 = vmatpush2.msra.mxu0 0.0
    %323 = vmatprep.mubr.f32.mxu0 0.0
    %324 = vmatmul.mubr.f32.gmra.mxu0 %v257
    %v325 = vpop.f32.mrf.mxu0
    %v326 = vadd.f32 0.0, %v325
    %v327 = vpop.f32.mrf.mxu0
    %328 = vdwg.mxu0
    %v329 = vadd.f32 %v155, %v326
    %v330 = vxor.u32 %v329, 2147483648
    %v331 = vmul.f32 %v330, 1.442695
    %v332 = vpow.pop %v331
    %v333 = vadd.f32 %v332, 1.0
    %v334 = vrcp.pop %v333
    %v335 = vmul.f32 1.0, %v334
    %v336 = vtanh.pop %v329
    %v337 = vmul.f32 %v335, 0.0
    %339 = vrot.lane.b32.xlu0 %v336, 64
    %v340 = vpop.permute.xlu0 %339
    %v342 = vmul.f32 %v335, %v340
    %344 = vrot.lane.b32.xlu0 %v342, 32
    %v345 = vpop.permute.xlu0 %344
    %v347 = vadd.f32 %v337, %v345
    %v348 = vtanh.pop %v347
    %350 = vrot.lane.b32.xlu0 %v348, 64
    %v351 = vpop.permute.xlu0 %350
    %v353 = vmul.f32 %v335, %v351
    %355 = vrot.lane.b32.xlu0 %v353, 32
    %v356 = vpop.permute.xlu0 %355
    %v358 = vsel %vm255, %v356, 0.0
    %vm359 = vcmask 523264
    %v361 = vsel %vm359, %v358, 0
    %363 = vmatprep.subr.mxu0 0.0
    %364 = vmatpush1.msra.mxu0 0.0
    %365 = vmatprep.subr.mxu0 0.0
    %366 = vmatpush1.msra.mxu0 0.0
    %367 = vmatprep.subr.mxu0 0.0
    %368 = vmatpush1.msra.mxu0 0.0
    %369 = vmatprep.subr.mxu0 0.0
    %370 = vmatpush1.msra.mxu0 0.0
    %371 = vmatprep.subr.mxu0 0.0
    %372 = vmatpush1.msra.mxu0 0.0
    %373 = vmatprep.subr.mxu0 0.0
    %374 = vmatpush1.msra.mxu0 0.0
    %375 = vmatprep.subr.mxu0 0.0
    %376 = vmatpush1.msra.mxu0 0.0
    %377 = vmatprep.subr.mxu0 0.0
    %378 = vmatpush1.msra.mxu0 0.0
    %379 = vmatprep.subr.mxu0 0.0
    %380 = vmatpush1.msra.mxu0 %v55
    %381 = vmatprep.subr.mxu0 0.0
    %382 = vmatpush1.msra.mxu0 %v54
    %383 = vmatprep.subr.mxu0 0.0
    %384 = vmatpush1.msra.mxu0 %v53
    %385 = vmatprep.subr.mxu0 0.0
    %386 = vmatpush1.msra.mxu0 %v52
    %387 = vmatprep.subr.mxu0 0.0
    %388 = vmatpush1.msra.mxu0 %v51
    %389 = vmatprep.subr.mxu0 0.0
    %390 = vmatpush1.msra.mxu0 %v50
    %391 = vmatprep.subr.mxu0 0.0
    %392 = vmatpush1.msra.mxu0 %v49
    %393 = vmatprep.subr.mxu0 0.0
    %394 = vmatpush1.msra.mxu0 %v48
    %395 = vmatprep.subr.mxu0 0.0
    %396 = vmatpush2.msra.mxu0 0.0
    %397 = vmatprep.subr.mxu0 0.0
    %398 = vmatpush2.msra.mxu0 0.0
    %399 = vmatprep.subr.mxu0 0.0
    %400 = vmatpush2.msra.mxu0 0.0
    %401 = vmatprep.subr.mxu0 0.0
    %402 = vmatpush2.msra.mxu0 0.0
    %403 = vmatprep.subr.mxu0 0.0
    %404 = vmatpush2.msra.mxu0 0.0
    %405 = vmatprep.subr.mxu0 0.0
    %406 = vmatpush2.msra.mxu0 0.0
    %407 = vmatprep.subr.mxu0 0.0
    %408 = vmatpush2.msra.mxu0 0.0
    %409 = vmatprep.subr.mxu0 0.0
    %410 = vmatpush2.msra.mxu0 0.0
    %411 = vmatprep.subr.mxu0 0.0
    %412 = vmatpush2.msra.mxu0 0.0
    %413 = vmatprep.subr.mxu0 0.0
    %414 = vmatpush2.msra.mxu0 0.0
    %415 = vmatprep.subr.mxu0 0.0
    %416 = vmatpush2.msra.mxu0 0.0
    %417 = vmatprep.subr.mxu0 0.0
    %418 = vmatpush2.msra.mxu0 0.0
    %419 = vmatprep.subr.mxu0 0.0
    %420 = vmatpush2.msra.mxu0 0.0
    %421 = vmatprep.subr.mxu0 0.0
    %422 = vmatpush2.msra.mxu0 0.0
    %423 = vmatprep.subr.mxu0 0.0
    %424 = vmatpush2.msra.mxu0 0.0
    %425 = vmatprep.subr.mxu0 0.0
    %426 = vmatpush2.msra.mxu0 0.0
    %427 = vmatprep.mubr.f32.mxu0 0.0
    %428 = vmatmul.mubr.f32.gmra.mxu0 %v361
    %v429 = vpop.f32.mrf.mxu0
    %v430 = vadd.f32 %v68, %v429
    %v431 = vpop.f32.mrf.mxu0
    %432 = vdwg.mxu0
    %v433 = vxor.u32 %v430, 2147483648
    %v434 = vmul.f32 %v433, 1.442695
    %v435 = vpow.pop %v434
    %v436 = vadd.f32 %v435, 1.0
    %v437 = vrcp.pop %v436
    %v438 = vmul.f32 1.0, %v437
    %v439 = vtanh.pop %v430
    %v440 = vmul.f32 %v438, 0.0
    %442 = vrot.lane.b32.xlu0 %v439, 64
    %v443 = vpop.permute.xlu0 %442
    %v445 = vmul.f32 %v438, %v443
    %447 = vrot.lane.b32.xlu0 %v445, 32
    %v448 = vpop.permute.xlu0 %447
    %v450 = vadd.f32 %v440, %v448
    %v451 = vtanh.pop %v450
    %453 = vrot.lane.b32.xlu0 %v451, 64
    %v454 = vpop.permute.xlu0 %453
    %v456 = vmul.f32 %v438, %v454
    %v457 = vsel %vm255, %v356, 0
    %459 = vmatprep.subr.mxu0 0.0
    %460 = vmatpush1.msra.mxu0 0.0
    %461 = vmatprep.subr.mxu0 0.0
    %462 = vmatpush1.msra.mxu0 0.0
    %463 = vmatprep.subr.mxu0 0.0
    %464 = vmatpush1.msra.mxu0 0.0
    %465 = vmatprep.subr.mxu0 0.0
    %466 = vmatpush1.msra.mxu0 0.0
    %467 = vmatprep.subr.mxu0 0.0
    %468 = vmatpush1.msra.mxu0 0.0
    %469 = vmatprep.subr.mxu0 0.0
    %470 = vmatpush1.msra.mxu0 0.0
    %471 = vmatprep.subr.mxu0 0.0
    %472 = vmatpush1.msra.mxu0 0.0
    %473 = vmatprep.subr.mxu0 0.0
    %474 = vmatpush1.msra.mxu0 0.0
    %475 = vmatprep.subr.mxu0 0.0
    %476 = vmatpush1.msra.mxu0 0.0
    %477 = vmatprep.subr.mxu0 0.0
    %478 = vmatpush1.msra.mxu0 0.0
    %479 = vmatprep.subr.mxu0 0.0
    %480 = vmatpush1.msra.mxu0 0.0
    %481 = vmatprep.subr.mxu0 0.0
    %482 = vmatpush1.msra.mxu0 0.0
    %483 = vmatprep.subr.mxu0 0.0
    %484 = vmatpush1.msra.mxu0 %v47
    %485 = vmatprep.subr.mxu0 0.0
    %486 = vmatpush1.msra.mxu0 %v46
    %487 = vmatprep.subr.mxu0 0.0
    %488 = vmatpush1.msra.mxu0 %v45
    %489 = vmatprep.subr.mxu0 0.0
    %490 = vmatpush1.msra.mxu0 %v44
    %491 = vmatprep.subr.mxu0 0.0
    %492 = vmatpush2.msra.mxu0 0.0
    %493 = vmatprep.subr.mxu0 0.0
    %494 = vmatpush2.msra.mxu0 0.0
    %495 = vmatprep.subr.mxu0 0.0
    %496 = vmatpush2.msra.mxu0 0.0
    %497 = vmatprep.subr.mxu0 0.0
    %498 = vmatpush2.msra.mxu0 0.0
    %499 = vmatprep.subr.mxu0 0.0
    %500 = vmatpush2.msra.mxu0 0.0
    %501 = vmatprep.subr.mxu0 0.0
    %502 = vmatpush2.msra.mxu0 0.0
    %503 = vmatprep.subr.mxu0 0.0
    %504 = vmatpush2.msra.mxu0 0.0
    %505 = vmatprep.subr.mxu0 0.0
    %506 = vmatpush2.msra.mxu0 0.0
    %507 = vmatprep.subr.mxu0 0.0
    %508 = vmatpush2.msra.mxu0 0.0
    %509 = vmatprep.subr.mxu0 0.0
    %510 = vmatpush2.msra.mxu0 0.0
    %511 = vmatprep.subr.mxu0 0.0
    %512 = vmatpush2.msra.mxu0 0.0
    %513 = vmatprep.subr.mxu0 0.0
    %514 = vmatpush2.msra.mxu0 0.0
    %515 = vmatprep.subr.mxu0 0.0
    %516 = vmatpush2.msra.mxu0 0.0
    %517 = vmatprep.subr.mxu0 0.0
    %518 = vmatpush2.msra.mxu0 0.0
    %519 = vmatprep.subr.mxu0 0.0
    %520 = vmatpush2.msra.mxu0 0.0
    %521 = vmatprep.subr.mxu0 0.0
    %522 = vmatpush2.msra.mxu0 0.0
    %523 = vmatprep.mubr.f32.mxu0 0.0
    %524 = vmatmul.mubr.f32.gmra.mxu0 %v457
    %v525 = vpop.f32.mrf.mxu0
    %v526 = vadd.f32 0.0, %v525
    %v527 = vpop.f32.mrf.mxu0
    %528 = vdwg.mxu0
    %v530 = vrot.slane %v526, 6
    %v532 = vadd.f32 %v155, %v530
    %v533 = vxor.u32 %v532, 2147483648
    %v534 = vmul.f32 %v533, 1.442695
    %v535 = vpow.pop %v534
    %v536 = vadd.f32 %v535, 1.0
    %v537 = vrcp.pop %v536
    %v538 = vmul.f32 1.0, %v537
    %v539 = vtanh.pop %v532
    %v541 = vrot.slane %v347, 6
    %v543 = vmul.f32 %v538, %v541
    %545 = vrot.lane.b32.xlu0 %v539, 64
    %v546 = vpop.permute.xlu0 %545
    %v548 = vmul.f32 %v538, %v546
    %550 = vrot.lane.b32.xlu0 %v548, 32
    %v551 = vpop.permute.xlu0 %550
    %v553 = vadd.f32 %v543, %v551
    %v554 = vtanh.pop %v553
    %556 = vrot.lane.b32.xlu0 %v554, 64
    %v557 = vpop.permute.xlu0 %556
    %v559 = vmul.f32 %v538, %v557
    %561 = vrot.lane.b32.xlu0 %v559, 32
    %v562 = vpop.permute.xlu0 %561
    %v565 = vrot.slane %v456, 6
    %566 = vrot.lane.b32.xlu0 %v565, 64
    %v567 = vpop.permute.xlu0 %566
    %v569 = vsel %vm255, %v562, %v567
    %v571 = vrot.slane %v569, 2
    %v572 = vsel %vm359, %v571, 0
    %574 = vmatprep.subr.mxu0 0.0
    %575 = vmatpush1.msra.mxu0 0.0
    %576 = vmatprep.subr.mxu0 0.0
    %577 = vmatpush1.msra.mxu0 0.0
    %578 = vmatprep.subr.mxu0 0.0
    %579 = vmatpush1.msra.mxu0 0.0
    %580 = vmatprep.subr.mxu0 0.0
    %581 = vmatpush1.msra.mxu0 0.0
    %582 = vmatprep.subr.mxu0 0.0
    %583 = vmatpush1.msra.mxu0 0.0
    %584 = vmatprep.subr.mxu0 0.0
    %585 = vmatpush1.msra.mxu0 0.0
    %586 = vmatprep.subr.mxu0 0.0
    %587 = vmatpush1.msra.mxu0 0.0
    %588 = vmatprep.subr.mxu0 0.0
    %589 = vmatpush1.msra.mxu0 0.0
    %590 = vmatprep.subr.mxu0 0.0
    %591 = vmatpush1.msra.mxu0 %v55
    %592 = vmatprep.subr.mxu0 0.0
    %593 = vmatpush1.msra.mxu0 %v54
    %594 = vmatprep.subr.mxu0 0.0
    %595 = vmatpush1.msra.mxu0 %v53
    %596 = vmatprep.subr.mxu0 0.0
    %597 = vmatpush1.msra.mxu0 %v52
    %598 = vmatprep.subr.mxu0 0.0
    %599 = vmatpush1.msra.mxu0 %v51
    %600 = vmatprep.subr.mxu0 0.0
    %601 = vmatpush1.msra.mxu0 %v50
    %602 = vmatprep.subr.mxu0 0.0
    %603 = vmatpush1.msra.mxu0 %v49
    %604 = vmatprep.subr.mxu0 0.0
    %605 = vmatpush1.msra.mxu0 %v48
    %606 = vmatprep.subr.mxu0 0.0
    %607 = vmatpush2.msra.mxu0 0.0
    %608 = vmatprep.subr.mxu0 0.0
    %609 = vmatpush2.msra.mxu0 0.0
    %610 = vmatprep.subr.mxu0 0.0
    %611 = vmatpush2.msra.mxu0 0.0
    %612 = vmatprep.subr.mxu0 0.0
    %613 = vmatpush2.msra.mxu0 0.0
    %614 = vmatprep.subr.mxu0 0.0
    %615 = vmatpush2.msra.mxu0 0.0
    %616 = vmatprep.subr.mxu0 0.0
    %617 = vmatpush2.msra.mxu0 0.0
    %618 = vmatprep.subr.mxu0 0.0
    %619 = vmatpush2.msra.mxu0 0.0
    %620 = vmatprep.subr.mxu0 0.0
    %621 = vmatpush2.msra.mxu0 0.0
    %622 = vmatprep.subr.mxu0 0.0
    %623 = vmatpush2.msra.mxu0 0.0
    %624 = vmatprep.subr.mxu0 0.0
    %625 = vmatpush2.msra.mxu0 0.0
    %626 = vmatprep.subr.mxu0 0.0
    %627 = vmatpush2.msra.mxu0 0.0
    %628 = vmatprep.subr.mxu0 0.0
    %629 = vmatpush2.msra.mxu0 0.0
    %630 = vmatprep.subr.mxu0 0.0
    %631 = vmatpush2.msra.mxu0 0.0
    %632 = vmatprep.subr.mxu0 0.0
    %633 = vmatpush2.msra.mxu0 0.0
    %634 = vmatprep.subr.mxu0 0.0
    %635 = vmatpush2.msra.mxu0 0.0
    %636 = vmatprep.subr.mxu0 0.0
    %637 = vmatpush2.msra.mxu0 0.0
    %638 = vmatprep.mubr.f32.mxu0 0.0
    %639 = vmatmul.mubr.f32.gmra.mxu0 %v572
    %v640 = vpop.f32.mrf.mxu0
    %v641 = vadd.f32 %v68, %v640
    %v642 = vpop.f32.mrf.mxu0
    %643 = vdwg.mxu0
    %v644 = vxor.u32 %v641, 2147483648
    %v645 = vmul.f32 %v644, 1.442695
    %v646 = vpow.pop %v645
    %v647 = vadd.f32 %v646, 1.0
    %v648 = vrcp.pop %v647
    %v649 = vmul.f32 1.0, %v648
    %v650 = vtanh.pop %v641
    %v651 = vmul.f32 %v649, %v450
    %653 = vrot.lane.b32.xlu0 %v650, 64
    %v654 = vpop.permute.xlu0 %653
    %v656 = vmul.f32 %v649, %v654
    %658 = vrot.lane.b32.xlu0 %v656, 32
    %v659 = vpop.permute.xlu0 %658
    %v661 = vadd.f32 %v651, %v659
    %v662 = vtanh.pop %v661
    %664 = vrot.lane.b32.xlu0 %v662, 64
    %v665 = vpop.permute.xlu0 %664
    %v667 = vmul.f32 %v649, %v665
    %v668 = vrot.slane %v559, 2
    %669 = vrot.lane.b32.xlu0 %v668, 32
    %v670 = vpop.permute.xlu0 %669
    %v671 = vsel %vm255, %v670, 0
    %673 = vmatprep.subr.mxu0 0.0
    %674 = vmatpush1.msra.mxu0 0.0
    %675 = vmatprep.subr.mxu0 0.0
    %676 = vmatpush1.msra.mxu0 0.0
    %677 = vmatprep.subr.mxu0 0.0
    %678 = vmatpush1.msra.mxu0 0.0
    %679 = vmatprep.subr.mxu0 0.0
    %680 = vmatpush1.msra.mxu0 0.0
    %681 = vmatprep.subr.mxu0 0.0
    %682 = vmatpush1.msra.mxu0 0.0
    %683 = vmatprep.subr.mxu0 0.0
    %684 = vmatpush1.msra.mxu0 0.0
    %685 = vmatprep.subr.mxu0 0.0
    %686 = vmatpush1.msra.mxu0 0.0
    %687 = vmatprep.subr.mxu0 0.0
    %688 = vmatpush1.msra.mxu0 0.0
    %689 = vmatprep.subr.mxu0 0.0
    %690 = vmatpush1.msra.mxu0 0.0
    %691 = vmatprep.subr.mxu0 0.0
    %692 = vmatpush1.msra.mxu0 0.0
    %693 = vmatprep.subr.mxu0 0.0
    %694 = vmatpush1.msra.mxu0 0.0
    %695 = vmatprep.subr.mxu0 0.0
    %696 = vmatpush1.msra.mxu0 0.0
    %697 = vmatprep.subr.mxu0 0.0
    %698 = vmatpush1.msra.mxu0 %v47
    %699 = vmatprep.subr.mxu0 0.0
    %700 = vmatpush1.msra.mxu0 %v46
    %701 = vmatprep.subr.mxu0 0.0
    %702 = vmatpush1.msra.mxu0 %v45
    %703 = vmatprep.subr.mxu0 0.0
    %704 = vmatpush1.msra.mxu0 %v44
    %705 = vmatprep.subr.mxu0 0.0
    %706 = vmatpush2.msra.mxu0 0.0
    %707 = vmatprep.subr.mxu0 0.0
    %708 = vmatpush2.msra.mxu0 0.0
    %709 = vmatprep.subr.mxu0 0.0
    %710 = vmatpush2.msra.mxu0 0.0
    %711 = vmatprep.subr.mxu0 0.0
    %712 = vmatpush2.msra.mxu0 0.0
    %713 = vmatprep.subr.mxu0 0.0
    %714 = vmatpush2.msra.mxu0 0.0
    %715 = vmatprep.subr.mxu0 0.0
    %716 = vmatpush2.msra.mxu0 0.0
    %717 = vmatprep.subr.mxu0 0.0
    %718 = vmatpush2.msra.mxu0 0.0
    %719 = vmatprep.subr.mxu0 0.0
    %720 = vmatpush2.msra.mxu0 0.0
    %721 = vmatprep.subr.mxu0 0.0
    %722 = vmatpush2.msra.mxu0 0.0
    %723 = vmatprep.subr.mxu0 0.0
    %724 = vmatpush2.msra.mxu0 0.0
    %725 = vmatprep.subr.mxu0 0.0
    %726 = vmatpush2.msra.mxu0 0.0
    %727 = vmatprep.subr.mxu0 0.0
    %728 = vmatpush2.msra.mxu0 0.0
    %729 = vmatprep.subr.mxu0 0.0
    %730 = vmatpush2.msra.mxu0 0.0
    %731 = vmatprep.subr.mxu0 0.0
    %732 = vmatpush2.msra.mxu0 0.0
    %733 = vmatprep.subr.mxu0 0.0
    %734 = vmatpush2.msra.mxu0 0.0
    %735 = vmatprep.subr.mxu0 0.0
    %736 = vmatpush2.msra.mxu0 0.0
    %737 = vmatprep.mubr.f32.mxu0 0.0
    %738 = vmatmul.mubr.f32.gmra.mxu0 %v671
    %v739 = vpop.f32.mrf.mxu0
    %v740 = vadd.f32 0.0, %v739
    %v741 = vpop.f32.mrf.mxu0
    %742 = vdwg.mxu0
    %v744 = vrot.slane %v740, 4
    %v746 = vadd.f32 %v155, %v744
    %v747 = vxor.u32 %v746, 2147483648
    %v748 = vmul.f32 %v747, 1.442695
    %v749 = vpow.pop %v748
    %v750 = vadd.f32 %v749, 1.0
    %v751 = vrcp.pop %v750
    %v752 = vmul.f32 1.0, %v751
    %v753 = vtanh.pop %v746
    %v755 = vrot.slane %v553, 6
    %v757 = vmul.f32 %v752, %v755
    %759 = vrot.lane.b32.xlu0 %v753, 64
    %v760 = vpop.permute.xlu0 %759
    %v762 = vmul.f32 %v752, %v760
    %764 = vrot.lane.b32.xlu0 %v762, 32
    %v765 = vpop.permute.xlu0 %764
    %v767 = vadd.f32 %v757, %v765
    %v768 = vtanh.pop %v767
    %770 = vrot.lane.b32.xlu0 %v768, 64
    %v771 = vpop.permute.xlu0 %770
    %v773 = vmul.f32 %v752, %v771
    %775 = vrot.lane.b32.xlu0 %v773, 32
    %v776 = vpop.permute.xlu0 %775
    %v779 = vrot.slane %v667, 4
    %780 = vrot.lane.b32.xlu0 %v779, 64
    %v781 = vpop.permute.xlu0 %780
    %v783 = vsel %vm255, %v776, %v781
    %v785 = vrot.slane %v783, 4
    %v786 = vsel %vm359, %v785, 0
    %788 = vmatprep.subr.mxu0 0.0
    %789 = vmatpush1.msra.mxu0 0.0
    %790 = vmatprep.subr.mxu0 0.0
    %791 = vmatpush1.msra.mxu0 0.0
    %792 = vmatprep.subr.mxu0 0.0
    %793 = vmatpush1.msra.mxu0 0.0
    %794 = vmatprep.subr.mxu0 0.0
    %795 = vmatpush1.msra.mxu0 0.0
    %796 = vmatprep.subr.mxu0 0.0
    %797 = vmatpush1.msra.mxu0 0.0
    %798 = vmatprep.subr.mxu0 0.0
    %799 = vmatpush1.msra.mxu0 0.0
    %800 = vmatprep.subr.mxu0 0.0
    %801 = vmatpush1.msra.mxu0 0.0
    %802 = vmatprep.subr.mxu0 0.0
    %803 = vmatpush1.msra.mxu0 0.0
    %804 = vmatprep.subr.mxu0 0.0
    %805 = vmatpush1.msra.mxu0 %v55
    %806 = vmatprep.subr.mxu0 0.0
    %807 = vmatpush1.msra.mxu0 %v54
    %808 = vmatprep.subr.mxu0 0.0
    %809 = vmatpush1.msra.mxu0 %v53
    %810 = vmatprep.subr.mxu0 0.0
    %811 = vmatpush1.msra.mxu0 %v52
    %812 = vmatprep.subr.mxu0 0.0
    %813 = vmatpush1.msra.mxu0 %v51
    %814 = vmatprep.subr.mxu0 0.0
    %815 = vmatpush1.msra.mxu0 %v50
    %816 = vmatprep.subr.mxu0 0.0
    %817 = vmatpush1.msra.mxu0 %v49
    %818 = vmatprep.subr.mxu0 0.0
    %819 = vmatpush1.msra.mxu0 %v48
    %820 = vmatprep.subr.mxu0 0.0
    %821 = vmatpush2.msra.mxu0 0.0
    %822 = vmatprep.subr.mxu0 0.0
    %823 = vmatpush2.msra.mxu0 0.0
    %824 = vmatprep.subr.mxu0 0.0
    %825 = vmatpush2.msra.mxu0 0.0
    %826 = vmatprep.subr.mxu0 0.0
    %827 = vmatpush2.msra.mxu0 0.0
    %828 = vmatprep.subr.mxu0 0.0
    %829 = vmatpush2.msra.mxu0 0.0
    %830 = vmatprep.subr.mxu0 0.0
    %831 = vmatpush2.msra.mxu0 0.0
    %832 = vmatprep.subr.mxu0 0.0
    %833 = vmatpush2.msra.mxu0 0.0
    %834 = vmatprep.subr.mxu0 0.0
    %835 = vmatpush2.msra.mxu0 0.0
    %836 = vmatprep.subr.mxu0 0.0
    %837 = vmatpush2.msra.mxu0 0.0
    %838 = vmatprep.subr.mxu0 0.0
    %839 = vmatpush2.msra.mxu0 0.0
    %840 = vmatprep.subr.mxu0 0.0
    %841 = vmatpush2.msra.mxu0 0.0
    %842 = vmatprep.subr.mxu0 0.0
    %843 = vmatpush2.msra.mxu0 0.0
    %844 = vmatprep.subr.mxu0 0.0
    %845 = vmatpush2.msra.mxu0 0.0
    %846 = vmatprep.subr.mxu0 0.0
    %847 = vmatpush2.msra.mxu0 0.0
    %848 = vmatprep.subr.mxu0 0.0
    %849 = vmatpush2.msra.mxu0 0.0
    %850 = vmatprep.subr.mxu0 0.0
    %851 = vmatpush2.msra.mxu0 0.0
    %852 = vmatprep.mubr.f32.mxu0 0.0
    %853 = vmatmul.mubr.f32.gmra.mxu0 %v786
    %v854 = vpop.f32.mrf.mxu0
    %v855 = vadd.f32 %v68, %v854
    %v856 = vpop.f32.mrf.mxu0
    %857 = vdwg.mxu0
    %v858 = vxor.u32 %v855, 2147483648
    %v859 = vmul.f32 %v858, 1.442695
    %v860 = vpow.pop %v859
    %v861 = vadd.f32 %v860, 1.0
    %v862 = vrcp.pop %v861
    %v863 = vmul.f32 1.0, %v862
    %v864 = vtanh.pop %v855
    %v865 = vmul.f32 %v863, %v661
    %867 = vrot.lane.b32.xlu0 %v864, 64
    %v868 = vpop.permute.xlu0 %867
    %v870 = vmul.f32 %v863, %v868
    %872 = vrot.lane.b32.xlu0 %v870, 32
    %v873 = vpop.permute.xlu0 %872
    %v875 = vadd.f32 %v865, %v873
    %v876 = vtanh.pop %v875
    %878 = vrot.lane.b32.xlu0 %v876, 64
    %v879 = vpop.permute.xlu0 %878
    %v881 = vmul.f32 %v863, %v879
    %v882 = vrot.slane %v773, 4
    %883 = vrot.lane.b32.xlu0 %v882, 32
    %v884 = vpop.permute.xlu0 %883
    %v885 = vsel %vm255, %v884, 0
    %887 = vmatprep.subr.mxu0 0.0
    %888 = vmatpush1.msra.mxu0 0.0
    %889 = vmatprep.subr.mxu0 0.0
    %890 = vmatpush1.msra.mxu0 0.0
    %891 = vmatprep.subr.mxu0 0.0
    %892 = vmatpush1.msra.mxu0 0.0
    %893 = vmatprep.subr.mxu0 0.0
    %894 = vmatpush1.msra.mxu0 0.0
    %895 = vmatprep.subr.mxu0 0.0
    %896 = vmatpush1.msra.mxu0 0.0
    %897 = vmatprep.subr.mxu0 0.0
    %898 = vmatpush1.msra.mxu0 0.0
    %899 = vmatprep.subr.mxu0 0.0
    %900 = vmatpush1.msra.mxu0 0.0
    %901 = vmatprep.subr.mxu0 0.0
    %902 = vmatpush1.msra.mxu0 0.0
    %903 = vmatprep.subr.mxu0 0.0
    %904 = vmatpush1.msra.mxu0 0.0
    %905 = vmatprep.subr.mxu0 0.0
    %906 = vmatpush1.msra.mxu0 0.0
    %907 = vmatprep.subr.mxu0 0.0
    %908 = vmatpush1.msra.mxu0 0.0
    %909 = vmatprep.subr.mxu0 0.0
    %910 = vmatpush1.msra.mxu0 0.0
    %911 = vmatprep.subr.mxu0 0.0
    %912 = vmatpush1.msra.mxu0 %v47
    %913 = vmatprep.subr.mxu0 0.0
    %914 = vmatpush1.msra.mxu0 %v46
    %915 = vmatprep.subr.mxu0 0.0
    %916 = vmatpush1.msra.mxu0 %v45
    %917 = vmatprep.subr.mxu0 0.0
    %918 = vmatpush1.msra.mxu0 %v44
    %919 = vmatprep.subr.mxu0 0.0
    %920 = vmatpush2.msra.mxu0 0.0
    %921 = vmatprep.subr.mxu0 0.0
    %922 = vmatpush2.msra.mxu0 0.0
    %923 = vmatprep.subr.mxu0 0.0
    %924 = vmatpush2.msra.mxu0 0.0
    %925 = vmatprep.subr.mxu0 0.0
    %926 = vmatpush2.msra.mxu0 0.0
    %927 = vmatprep.subr.mxu0 0.0
    %928 = vmatpush2.msra.mxu0 0.0
    %929 = vmatprep.subr.mxu0 0.0
    %930 = vmatpush2.msra.mxu0 0.0
    %931 = vmatprep.subr.mxu0 0.0
    %932 = vmatpush2.msra.mxu0 0.0
    %933 = vmatprep.subr.mxu0 0.0
    %934 = vmatpush2.msra.mxu0 0.0
    %935 = vmatprep.subr.mxu0 0.0
    %936 = vmatpush2.msra.mxu0 0.0
    %937 = vmatprep.subr.mxu0 0.0
    %938 = vmatpush2.msra.mxu0 0.0
    %939 = vmatprep.subr.mxu0 0.0
    %940 = vmatpush2.msra.mxu0 0.0
    %941 = vmatprep.subr.mxu0 0.0
    %942 = vmatpush2.msra.mxu0 0.0
    %943 = vmatprep.subr.mxu0 0.0
    %944 = vmatpush2.msra.mxu0 0.0
    %945 = vmatprep.subr.mxu0 0.0
    %946 = vmatpush2.msra.mxu0 0.0
    %947 = vmatprep.subr.mxu0 0.0
    %948 = vmatpush2.msra.mxu0 0.0
    %949 = vmatprep.subr.mxu0 0.0
    %950 = vmatpush2.msra.mxu0 0.0
    %951 = vmatprep.mubr.f32.mxu0 0.0
    %952 = vmatmul.mubr.f32.gmra.mxu0 %v885
    %v953 = vpop.f32.mrf.mxu0
    %v954 = vadd.f32 0.0, %v953
    %v955 = vpop.f32.mrf.mxu0
    %956 = vdwg.mxu0
    %v958 = vrot.slane %v954, 2
    %v960 = vadd.f32 %v155, %v958
    %v961 = vxor.u32 %v960, 2147483648
    %v962 = vmul.f32 %v961, 1.442695
    %v963 = vpow.pop %v962
    %v964 = vadd.f32 %v963, 1.0
    %v965 = vrcp.pop %v964
    %v966 = vmul.f32 1.0, %v965
    %v967 = vtanh.pop %v960
    %v969 = vrot.slane %v767, 6
    %v971 = vmul.f32 %v966, %v969
    %973 = vrot.lane.b32.xlu0 %v967, 64
    %v974 = vpop.permute.xlu0 %973
    %v976 = vmul.f32 %v966, %v974
    %978 = vrot.lane.b32.xlu0 %v976, 32
    %v979 = vpop.permute.xlu0 %978
    %v981 = vadd.f32 %v971, %v979
    %v982 = vtanh.pop %v981
    %984 = vrot.lane.b32.xlu0 %v982, 64
    %v985 = vpop.permute.xlu0 %984
    %v987 = vmul.f32 %v966, %v985
    %989 = vrot.lane.b32.xlu0 %v987, 32
    %v990 = vpop.permute.xlu0 %989
    %v993 = vrot.slane %v881, 2
    %994 = vrot.lane.b32.xlu0 %v993, 64
    %v995 = vpop.permute.xlu0 %994
    %v997 = vsel %vm255, %v990, %v995
    %v999 = vrot.slane %v997, 6
    %v1000 = vsel %vm359, %v999, 0
    %1002 = vmatprep.subr.mxu0 0.0
    %1003 = vmatpush1.msra.mxu0 0.0
    %1004 = vmatprep.subr.mxu0 0.0
    %1005 = vmatpush1.msra.mxu0 0.0
    %1006 = vmatprep.subr.mxu0 0.0
    %1007 = vmatpush1.msra.mxu0 0.0
    %1008 = vmatprep.subr.mxu0 0.0
    %1009 = vmatpush1.msra.mxu0 0.0
    %1010 = vmatprep.subr.mxu0 0.0
    %1011 = vmatpush1.msra.mxu0 0.0
    %1012 = vmatprep.subr.mxu0 0.0
    %1013 = vmatpush1.msra.mxu0 0.0
    %1014 = vmatprep.subr.mxu0 0.0
    %1015 = vmatpush1.msra.mxu0 0.0
    %1016 = vmatprep.subr.mxu0 0.0
    %1017 = vmatpush1.msra.mxu0 0.0
    %1018 = vmatprep.subr.mxu0 0.0
    %1019 = vmatpush1.msra.mxu0 %v55
    %1020 = vmatprep.subr.mxu0 0.0
    %1021 = vmatpush1.msra.mxu0 %v54
    %1022 = vmatprep.subr.mxu0 0.0
    %1023 = vmatpush1.msra.mxu0 %v53
    %1024 = vmatprep.subr.mxu0 0.0
    %1025 = vmatpush1.msra.mxu0 %v52
    %1026 = vmatprep.subr.mxu0 0.0
    %1027 = vmatpush1.msra.mxu0 %v51
    %1028 = vmatprep.subr.mxu0 0.0
    %1029 = vmatpush1.msra.mxu0 %v50
    %1030 = vmatprep.subr.mxu0 0.0
    %1031 = vmatpush1.msra.mxu0 %v49
    %1032 = vmatprep.subr.mxu0 0.0
    %1033 = vmatpush1.msra.mxu0 %v48
    %1034 = vmatprep.subr.mxu0 0.0
    %1035 = vmatpush2.msra.mxu0 0.0
    %1036 = vmatprep.subr.mxu0 0.0
    %1037 = vmatpush2.msra.mxu0 0.0
    %1038 = vmatprep.subr.mxu0 0.0
    %1039 = vmatpush2.msra.mxu0 0.0
    %1040 = vmatprep.subr.mxu0 0.0
    %1041 = vmatpush2.msra.mxu0 0.0
    %1042 = vmatprep.subr.mxu0 0.0
    %1043 = vmatpush2.msra.mxu0 0.0
    %1044 = vmatprep.subr.mxu0 0.0
    %1045 = vmatpush2.msra.mxu0 0.0
    %1046 = vmatprep.subr.mxu0 0.0
    %1047 = vmatpush2.msra.mxu0 0.0
    %1048 = vmatprep.subr.mxu0 0.0
    %1049 = vmatpush2.msra.mxu0 0.0
    %1050 = vmatprep.subr.mxu0 0.0
    %1051 = vmatpush2.msra.mxu0 0.0
    %1052 = vmatprep.subr.mxu0 0.0
    %1053 = vmatpush2.msra.mxu0 0.0
    %1054 = vmatprep.subr.mxu0 0.0
    %1055 = vmatpush2.msra.mxu0 0.0
    %1056 = vmatprep.subr.mxu0 0.0
    %1057 = vmatpush2.msra.mxu0 0.0
    %1058 = vmatprep.subr.mxu0 0.0
    %1059 = vmatpush2.msra.mxu0 0.0
    %1060 = vmatprep.subr.mxu0 0.0
    %1061 = vmatpush2.msra.mxu0 0.0
    %1062 = vmatprep.subr.mxu0 0.0
    %1063 = vmatpush2.msra.mxu0 0.0
    %1064 = vmatprep.subr.mxu0 0.0
    %1065 = vmatpush2.msra.mxu0 0.0
    %1066 = vmatprep.mubr.f32.mxu0 0.0
    %1067 = vmatmul.mubr.f32.gmra.mxu0 %v1000
    %v1068 = vpop.f32.mrf.mxu0
    %v1069 = vadd.f32 %v68, %v1068
    %v1070 = vpop.f32.mrf.mxu0
    %1071 = vdwg.mxu0
    %v1072 = vxor.u32 %v1069, 2147483648
    %v1073 = vmul.f32 %v1072, 1.442695
    %v1074 = vpow.pop %v1073
    %v1075 = vadd.f32 %v1074, 1.0
    %v1076 = vrcp.pop %v1075
    %v1077 = vmul.f32 1.0, %v1076
    %v1078 = vtanh.pop %v1069
    %v1079 = vmul.f32 %v1077, %v875
    %1081 = vrot.lane.b32.xlu0 %v1078, 64
    %v1082 = vpop.permute.xlu0 %1081
    %v1084 = vmul.f32 %v1077, %v1082
    %1086 = vrot.lane.b32.xlu0 %v1084, 32
    %v1087 = vpop.permute.xlu0 %1086
    %v1089 = vadd.f32 %v1079, %v1087
    %v1090 = vtanh.pop %v1089
    %1092 = vrot.lane.b32.xlu0 %v1090, 64
    %v1093 = vpop.permute.xlu0 %1092
    %v1095 = vmul.f32 %v1077, %v1093
    %v1096 = vrot.slane %v987, 6
    %1097 = vrot.lane.b32.xlu0 %v1096, 32
    %v1098 = vpop.permute.xlu0 %1097
    %v1099 = vsel %vm255, %v1098, 0
    %1101 = vmatprep.subr.mxu0 0.0
    %1102 = vmatpush1.msra.mxu0 0.0
    %1103 = vmatprep.subr.mxu0 0.0
    %1104 = vmatpush1.msra.mxu0 0.0
    %1105 = vmatprep.subr.mxu0 0.0
    %1106 = vmatpush1.msra.mxu0 0.0
    %1107 = vmatprep.subr.mxu0 0.0
    %1108 = vmatpush1.msra.mxu0 0.0
    %1109 = vmatprep.subr.mxu0 0.0
    %1110 = vmatpush1.msra.mxu0 0.0
    %1111 = vmatprep.subr.mxu0 0.0
    %1112 = vmatpush1.msra.mxu0 0.0
    %1113 = vmatprep.subr.mxu0 0.0
    %1114 = vmatpush1.msra.mxu0 0.0
    %1115 = vmatprep.subr.mxu0 0.0
    %1116 = vmatpush1.msra.mxu0 0.0
    %1117 = vmatprep.subr.mxu0 0.0
    %1118 = vmatpush1.msra.mxu0 0.0
    %1119 = vmatprep.subr.mxu0 0.0
    %1120 = vmatpush1.msra.mxu0 0.0
    %1121 = vmatprep.subr.mxu0 0.0
    %1122 = vmatpush1.msra.mxu0 0.0
    %1123 = vmatprep.subr.mxu0 0.0
    %1124 = vmatpush1.msra.mxu0 0.0
    %1125 = vmatprep.subr.mxu0 0.0
    %1126 = vmatpush1.msra.mxu0 %v47
    %1127 = vmatprep.subr.mxu0 0.0
    %1128 = vmatpush1.msra.mxu0 %v46
    %1129 = vmatprep.subr.mxu0 0.0
    %1130 = vmatpush1.msra.mxu0 %v45
    %1131 = vmatprep.subr.mxu0 0.0
    %1132 = vmatpush1.msra.mxu0 %v44
    %1133 = vmatprep.subr.mxu0 0.0
    %1134 = vmatpush2.msra.mxu0 0.0
    %1135 = vmatprep.subr.mxu0 0.0
    %1136 = vmatpush2.msra.mxu0 0.0
    %1137 = vmatprep.subr.mxu0 0.0
    %1138 = vmatpush2.msra.mxu0 0.0
    %1139 = vmatprep.subr.mxu0 0.0
    %1140 = vmatpush2.msra.mxu0 0.0
    %1141 = vmatprep.subr.mxu0 0.0
    %1142 = vmatpush2.msra.mxu0 0.0
    %1143 = vmatprep.subr.mxu0 0.0
    %1144 = vmatpush2.msra.mxu0 0.0
    %1145 = vmatprep.subr.mxu0 0.0
    %1146 = vmatpush2.msra.mxu0 0.0
    %1147 = vmatprep.subr.mxu0 0.0
    %1148 = vmatpush2.msra.mxu0 0.0
    %1149 = vmatprep.subr.mxu0 0.0
    %1150 = vmatpush2.msra.mxu0 0.0
    %1151 = vmatprep.subr.mxu0 0.0
    %1152 = vmatpush2.msra.mxu0 0.0
    %1153 = vmatprep.subr.mxu0 0.0
    %1154 = vmatpush2.msra.mxu0 0.0
    %1155 = vmatprep.subr.mxu0 0.0
    %1156 = vmatpush2.msra.mxu0 0.0
    %1157 = vmatprep.subr.mxu0 0.0
    %1158 = vmatpush2.msra.mxu0 0.0
    %1159 = vmatprep.subr.mxu0 0.0
    %1160 = vmatpush2.msra.mxu0 0.0
    %1161 = vmatprep.subr.mxu0 0.0
    %1162 = vmatpush2.msra.mxu0 0.0
    %1163 = vmatprep.subr.mxu0 0.0
    %1164 = vmatpush2.msra.mxu0 0.0
    %1165 = vmatprep.mubr.f32.mxu0 0.0
    %1166 = vmatmul.mubr.f32.gmra.mxu0 %v1099
    %v1167 = vpop.f32.mrf.mxu0
    %v1168 = vadd.f32 0.0, %v1167
    %v1169 = vpop.f32.mrf.mxu0
    %1170 = vdwg.mxu0
    %v1171 = vadd.f32 %v160, %v1168
    %v1172 = vxor.u32 %v1171, 2147483648
    %v1173 = vmul.f32 %v1172, 1.442695
    %v1174 = vpow.pop %v1173
    %v1175 = vadd.f32 %v1174, 1.0
    %v1176 = vrcp.pop %v1175
    %v1177 = vmul.f32 1.0, %v1176
    %v1178 = vtanh.pop %v1171
    %v1180 = vrot.slane %v981, 6
    %v1182 = vmul.f32 %v1177, %v1180
    %1184 = vrot.lane.b32.xlu0 %v1178, 64
    %v1185 = vpop.permute.xlu0 %1184
    %v1187 = vmul.f32 %v1177, %v1185
    %1189 = vrot.lane.b32.xlu0 %v1187, 32
    %v1190 = vpop.permute.xlu0 %1189
    %v1192 = vadd.f32 %v1182, %v1190
    %v1193 = vtanh.pop %v1192
    %1195 = vrot.lane.b32.xlu0 %v1193, 64
    %v1196 = vpop.permute.xlu0 %1195
    %v1198 = vmul.f32 %v1177, %v1196
    %1200 = vrot.lane.b32.xlu0 %v1198, 32
    %v1201 = vpop.permute.xlu0 %1200
    %1204 = vrot.lane.b32.xlu0 %v1095, 64
    %v1205 = vpop.permute.xlu0 %1204
    %v1207 = vsel %vm255, %v1201, %v1205
    %v1209 = vsel %vm359, %v1207, 0
    %1211 = vmatprep.subr.mxu0 0.0
    %1212 = vmatpush1.msra.mxu0 0.0
    %1213 = vmatprep.subr.mxu0 0.0
    %1214 = vmatpush1.msra.mxu0 0.0
    %1215 = vmatprep.subr.mxu0 0.0
    %1216 = vmatpush1.msra.mxu0 0.0
    %1217 = vmatprep.subr.mxu0 0.0
    %1218 = vmatpush1.msra.mxu0 0.0
    %1219 = vmatprep.subr.mxu0 0.0
    %1220 = vmatpush1.msra.mxu0 0.0
    %1221 = vmatprep.subr.mxu0 0.0
    %1222 = vmatpush1.msra.mxu0 0.0
    %1223 = vmatprep.subr.mxu0 0.0
    %1224 = vmatpush1.msra.mxu0 0.0
    %1225 = vmatprep.subr.mxu0 0.0
    %1226 = vmatpush1.msra.mxu0 0.0
    %1227 = vmatprep.subr.mxu0 0.0
    %1228 = vmatpush1.msra.mxu0 %v55
    %1229 = vmatprep.subr.mxu0 0.0
    %1230 = vmatpush1.msra.mxu0 %v54
    %1231 = vmatprep.subr.mxu0 0.0
    %1232 = vmatpush1.msra.mxu0 %v53
    %1233 = vmatprep.subr.mxu0 0.0
    %1234 = vmatpush1.msra.mxu0 %v52
    %1235 = vmatprep.subr.mxu0 0.0
    %1236 = vmatpush1.msra.mxu0 %v51
    %1237 = vmatprep.subr.mxu0 0.0
    %1238 = vmatpush1.msra.mxu0 %v50
    %1239 = vmatprep.subr.mxu0 0.0
    %1240 = vmatpush1.msra.mxu0 %v49
    %1241 = vmatprep.subr.mxu0 0.0
    %1242 = vmatpush1.msra.mxu0 %v48
    %1243 = vmatprep.subr.mxu0 0.0
    %1244 = vmatpush2.msra.mxu0 0.0
    %1245 = vmatprep.subr.mxu0 0.0
    %1246 = vmatpush2.msra.mxu0 0.0
    %1247 = vmatprep.subr.mxu0 0.0
    %1248 = vmatpush2.msra.mxu0 0.0
    %1249 = vmatprep.subr.mxu0 0.0
    %1250 = vmatpush2.msra.mxu0 0.0
    %1251 = vmatprep.subr.mxu0 0.0
    %1252 = vmatpush2.msra.mxu0 0.0
    %1253 = vmatprep.subr.mxu0 0.0
    %1254 = vmatpush2.msra.mxu0 0.0
    %1255 = vmatprep.subr.mxu0 0.0
    %1256 = vmatpush2.msra.mxu0 0.0
    %1257 = vmatprep.subr.mxu0 0.0
    %1258 = vmatpush2.msra.mxu0 0.0
    %1259 = vmatprep.subr.mxu0 0.0
    %1260 = vmatpush2.msra.mxu0 0.0
    %1261 = vmatprep.subr.mxu0 0.0
    %1262 = vmatpush2.msra.mxu0 0.0
    %1263 = vmatprep.subr.mxu0 0.0
    %1264 = vmatpush2.msra.mxu0 0.0
    %1265 = vmatprep.subr.mxu0 0.0
    %1266 = vmatpush2.msra.mxu0 0.0
    %1267 = vmatprep.subr.mxu0 0.0
    %1268 = vmatpush2.msra.mxu0 0.0
    %1269 = vmatprep.subr.mxu0 0.0
    %1270 = vmatpush2.msra.mxu0 0.0
    %1271 = vmatprep.subr.mxu0 0.0
    %1272 = vmatpush2.msra.mxu0 0.0
    %1273 = vmatprep.subr.mxu0 0.0
    %1274 = vmatpush2.msra.mxu0 0.0
    %1275 = vmatprep.mubr.f32.mxu0 0.0
    %1276 = vmatmul.mubr.f32.gmra.mxu0 %v1209
    %v1277 = vpop.f32.mrf.mxu0
    %v1278 = vadd.f32 %v68, %v1277
    %v1279 = vpop.f32.mrf.mxu0
    %1280 = vdwg.mxu0
    %v1281 = vxor.u32 %v1278, 2147483648
    %v1282 = vmul.f32 %v1281, 1.442695
    %v1283 = vpow.pop %v1282
    %v1284 = vadd.f32 %v1283, 1.0
    %v1285 = vrcp.pop %v1284
    %v1286 = vmul.f32 1.0, %v1285
    %v1287 = vtanh.pop %v1278
    %v1288 = vmul.f32 %v1286, %v1089
    %1290 = vrot.lane.b32.xlu0 %v1287, 64
    %v1291 = vpop.permute.xlu0 %1290
    %v1293 = vmul.f32 %v1286, %v1291
    %1295 = vrot.lane.b32.xlu0 %v1293, 32
    %v1296 = vpop.permute.xlu0 %1295
    %v1298 = vadd.f32 %v1288, %v1296
    %v1299 = vtanh.pop %v1298
    %1301 = vrot.lane.b32.xlu0 %v1299, 64
    %v1302 = vpop.permute.xlu0 %1301
    %v1304 = vmul.f32 %v1286, %v1302
    %v1305 = vsel %vm255, %v1201, 0
    %1307 = vmatprep.subr.mxu0 0.0
    %1308 = vmatpush1.msra.mxu0 0.0
    %1309 = vmatprep.subr.mxu0 0.0
    %1310 = vmatpush1.msra.mxu0 0.0
    %1311 = vmatprep.subr.mxu0 0.0
    %1312 = vmatpush1.msra.mxu0 0.0
    %1313 = vmatprep.subr.mxu0 0.0
    %1314 = vmatpush1.msra.mxu0 0.0
    %1315 = vmatprep.subr.mxu0 0.0
    %1316 = vmatpush1.msra.mxu0 0.0
    %1317 = vmatprep.subr.mxu0 0.0
    %1318 = vmatpush1.msra.mxu0 0.0
    %1319 = vmatprep.subr.mxu0 0.0
    %1320 = vmatpush1.msra.mxu0 0.0
    %1321 = vmatprep.subr.mxu0 0.0
    %1322 = vmatpush1.msra.mxu0 0.0
    %1323 = vmatprep.subr.mxu0 0.0
    %1324 = vmatpush1.msra.mxu0 0.0
    %1325 = vmatprep.subr.mxu0 0.0
    %1326 = vmatpush1.msra.mxu0 0.0
    %1327 = vmatprep.subr.mxu0 0.0
    %1328 = vmatpush1.msra.mxu0 0.0
    %1329 = vmatprep.subr.mxu0 0.0
    %1330 = vmatpush1.msra.mxu0 0.0
    %1331 = vmatprep.subr.mxu0 0.0
    %1332 = vmatpush1.msra.mxu0 %v47
    %1333 = vmatprep.subr.mxu0 0.0
    %1334 = vmatpush1.msra.mxu0 %v46
    %1335 = vmatprep.subr.mxu0 0.0
    %1336 = vmatpush1.msra.mxu0 %v45
    %1337 = vmatprep.subr.mxu0 0.0
    %1338 = vmatpush1.msra.mxu0 %v44
    %1339 = vmatprep.subr.mxu0 0.0
    %1340 = vmatpush2.msra.mxu0 0.0
    %1341 = vmatprep.subr.mxu0 0.0
    %1342 = vmatpush2.msra.mxu0 0.0
    %1343 = vmatprep.subr.mxu0 0.0
    %1344 = vmatpush2.msra.mxu0 0.0
    %1345 = vmatprep.subr.mxu0 0.0
    %1346 = vmatpush2.msra.mxu0 0.0
    %1347 = vmatprep.subr.mxu0 0.0
    %1348 = vmatpush2.msra.mxu0 0.0
    %1349 = vmatprep.subr.mxu0 0.0
    %1350 = vmatpush2.msra.mxu0 0.0
    %1351 = vmatprep.subr.mxu0 0.0
    %1352 = vmatpush2.msra.mxu0 0.0
    %1353 = vmatprep.subr.mxu0 0.0
    %1354 = vmatpush2.msra.mxu0 0.0
    %1355 = vmatprep.subr.mxu0 0.0
    %1356 = vmatpush2.msra.mxu0 0.0
    %1357 = vmatprep.subr.mxu0 0.0
    %1358 = vmatpush2.msra.mxu0 0.0
    %1359 = vmatprep.subr.mxu0 0.0
    %1360 = vmatpush2.msra.mxu0 0.0
    %1361 = vmatprep.subr.mxu0 0.0
    %1362 = vmatpush2.msra.mxu0 0.0
    %1363 = vmatprep.subr.mxu0 0.0
    %1364 = vmatpush2.msra.mxu0 0.0
    %1365 = vmatprep.subr.mxu0 0.0
    %1366 = vmatpush2.msra.mxu0 0.0
    %1367 = vmatprep.subr.mxu0 0.0
    %1368 = vmatpush2.msra.mxu0 0.0
    %1369 = vmatprep.subr.mxu0 0.0
    %1370 = vmatpush2.msra.mxu0 0.0
    %1371 = vmatprep.mubr.f32.mxu0 0.0
    %1372 = vmatmul.mubr.f32.gmra.mxu0 %v1305
    %v1373 = vpop.f32.mrf.mxu0
    %v1374 = vadd.f32 0.0, %v1373
    %v1375 = vpop.f32.mrf.mxu0
    %1376 = vdwg.mxu0
    %v1378 = vrot.slane %v1374, 6
    %v1380 = vadd.f32 %v160, %v1378
    %v1381 = vxor.u32 %v1380, 2147483648
    %v1382 = vmul.f32 %v1381, 1.442695
    %v1383 = vpow.pop %v1382
    %v1384 = vadd.f32 %v1383, 1.0
    %v1385 = vrcp.pop %v1384
    %v1386 = vmul.f32 1.0, %v1385
    %v1387 = vtanh.pop %v1380
    %v1389 = vrot.slane %v1192, 6
    %v1391 = vmul.f32 %v1386, %v1389
    %1393 = vrot.lane.b32.xlu0 %v1387, 64
    %v1394 = vpop.permute.xlu0 %1393
    %v1396 = vmul.f32 %v1386, %v1394
    %1398 = vrot.lane.b32.xlu0 %v1396, 32
    %v1399 = vpop.permute.xlu0 %1398
    %v1401 = vadd.f32 %v1391, %v1399
    %v1402 = vtanh.pop %v1401
    %1404 = vrot.lane.b32.xlu0 %v1402, 64
    %v1405 = vpop.permute.xlu0 %1404
    %v1407 = vmul.f32 %v1386, %v1405
    %1409 = vrot.lane.b32.xlu0 %v1407, 32
    %v1410 = vpop.permute.xlu0 %1409
    %v1413 = vrot.slane %v1304, 6
    %1414 = vrot.lane.b32.xlu0 %v1413, 64
    %v1415 = vpop.permute.xlu0 %1414
    %v1417 = vsel %vm255, %v1410, %v1415
    %v1419 = vrot.slane %v1417, 2
    %v1420 = vsel %vm359, %v1419, 0
    %1422 = vmatprep.subr.mxu0 0.0
    %1423 = vmatpush1.msra.mxu0 0.0
    %1424 = vmatprep.subr.mxu0 0.0
    %1425 = vmatpush1.msra.mxu0 0.0
    %1426 = vmatprep.subr.mxu0 0.0
    %1427 = vmatpush1.msra.mxu0 0.0
    %1428 = vmatprep.subr.mxu0 0.0
    %1429 = vmatpush1.msra.mxu0 0.0
    %1430 = vmatprep.subr.mxu0 0.0
    %1431 = vmatpush1.msra.mxu0 0.0
    %1432 = vmatprep.subr.mxu0 0.0
    %1433 = vmatpush1.msra.mxu0 0.0
    %1434 = vmatprep.subr.mxu0 0.0
    %1435 = vmatpush1.msra.mxu0 0.0
    %1436 = vmatprep.subr.mxu0 0.0
    %1437 = vmatpush1.msra.mxu0 0.0
    %1438 = vmatprep.subr.mxu0 0.0
    %1439 = vmatpush1.msra.mxu0 %v55
    %1440 = vmatprep.subr.mxu0 0.0
    %1441 = vmatpush1.msra.mxu0 %v54
    %1442 = vmatprep.subr.mxu0 0.0
    %1443 = vmatpush1.msra.mxu0 %v53
    %1444 = vmatprep.subr.mxu0 0.0
    %1445 = vmatpush1.msra.mxu0 %v52
    %1446 = vmatprep.subr.mxu0 0.0
    %1447 = vmatpush1.msra.mxu0 %v51
    %1448 = vmatprep.subr.mxu0 0.0
    %1449 = vmatpush1.msra.mxu0 %v50
    %1450 = vmatprep.subr.mxu0 0.0
    %1451 = vmatpush1.msra.mxu0 %v49
    %1452 = vmatprep.subr.mxu0 0.0
    %1453 = vmatpush1.msra.mxu0 %v48
    %1454 = vmatprep.subr.mxu0 0.0
    %1455 = vmatpush2.msra.mxu0 0.0
    %1456 = vmatprep.subr.mxu0 0.0
    %1457 = vmatpush2.msra.mxu0 0.0
    %1458 = vmatprep.subr.mxu0 0.0
    %1459 = vmatpush2.msra.mxu0 0.0
    %1460 = vmatprep.subr.mxu0 0.0
    %1461 = vmatpush2.msra.mxu0 0.0
    %1462 = vmatprep.subr.mxu0 0.0
    %1463 = vmatpush2.msra.mxu0 0.0
    %1464 = vmatprep.subr.mxu0 0.0
    %1465 = vmatpush2.msra.mxu0 0.0
    %1466 = vmatprep.subr.mxu0 0.0
    %1467 = vmatpush2.msra.mxu0 0.0
    %1468 = vmatprep.subr.mxu0 0.0
    %1469 = vmatpush2.msra.mxu0 0.0
    %1470 = vmatprep.subr.mxu0 0.0
    %1471 = vmatpush2.msra.mxu0 0.0
    %1472 = vmatprep.subr.mxu0 0.0
    %1473 = vmatpush2.msra.mxu0 0.0
    %1474 = vmatprep.subr.mxu0 0.0
    %1475 = vmatpush2.msra.mxu0 0.0
    %1476 = vmatprep.subr.mxu0 0.0
    %1477 = vmatpush2.msra.mxu0 0.0
    %1478 = vmatprep.subr.mxu0 0.0
    %1479 = vmatpush2.msra.mxu0 0.0
    %1480 = vmatprep.subr.mxu0 0.0
    %1481 = vmatpush2.msra.mxu0 0.0
    %1482 = vmatprep.subr.mxu0 0.0
    %1483 = vmatpush2.msra.mxu0 0.0
    %1484 = vmatprep.subr.mxu0 0.0
    %1485 = vmatpush2.msra.mxu0 0.0
    %1486 = vmatprep.mubr.f32.mxu0 0.0
    %1487 = vmatmul.mubr.f32.gmra.mxu0 %v1420
    %v1488 = vpop.f32.mrf.mxu0
    %v1489 = vadd.f32 %v68, %v1488
    %v1490 = vpop.f32.mrf.mxu0
    %1491 = vdwg.mxu0
    %v1492 = vxor.u32 %v1489, 2147483648
    %v1493 = vmul.f32 %v1492, 1.442695
    %v1494 = vpow.pop %v1493
    %v1495 = vadd.f32 %v1494, 1.0
    %v1496 = vrcp.pop %v1495
    %v1497 = vmul.f32 1.0, %v1496
    %v1498 = vtanh.pop %v1489
    %v1499 = vmul.f32 %v1497, %v1298
    %1501 = vrot.lane.b32.xlu0 %v1498, 64
    %v1502 = vpop.permute.xlu0 %1501
    %v1504 = vmul.f32 %v1497, %v1502
    %1506 = vrot.lane.b32.xlu0 %v1504, 32
    %v1507 = vpop.permute.xlu0 %1506
    %v1509 = vadd.f32 %v1499, %v1507
    %v1510 = vtanh.pop %v1509
    %1512 = vrot.lane.b32.xlu0 %v1510, 64
    %v1513 = vpop.permute.xlu0 %1512
    %v1515 = vmul.f32 %v1497, %v1513
    %v1516 = vrot.slane %v1407, 2
    %1517 = vrot.lane.b32.xlu0 %v1516, 32
    %v1518 = vpop.permute.xlu0 %1517
    %v1519 = vsel %vm255, %v1518, 0
    %1521 = vmatprep.subr.mxu0 0.0
    %1522 = vmatpush1.msra.mxu0 0.0
    %1523 = vmatprep.subr.mxu0 0.0
    %1524 = vmatpush1.msra.mxu0 0.0
    %1525 = vmatprep.subr.mxu0 0.0
    %1526 = vmatpush1.msra.mxu0 0.0
    %1527 = vmatprep.subr.mxu0 0.0
    %1528 = vmatpush1.msra.mxu0 0.0
    %1529 = vmatprep.subr.mxu0 0.0
    %1530 = vmatpush1.msra.mxu0 0.0
    %1531 = vmatprep.subr.mxu0 0.0
    %1532 = vmatpush1.msra.mxu0 0.0
    %1533 = vmatprep.subr.mxu0 0.0
    %1534 = vmatpush1.msra.mxu0 0.0
    %1535 = vmatprep.subr.mxu0 0.0
    %1536 = vmatpush1.msra.mxu0 0.0
    %1537 = vmatprep.subr.mxu0 0.0
    %1538 = vmatpush1.msra.mxu0 0.0
    %1539 = vmatprep.subr.mxu0 0.0
    %1540 = vmatpush1.msra.mxu0 0.0
    %1541 = vmatprep.subr.mxu0 0.0
    %1542 = vmatpush1.msra.mxu0 0.0
    %1543 = vmatprep.subr.mxu0 0.0
    %1544 = vmatpush1.msra.mxu0 0.0
    %1545 = vmatprep.subr.mxu0 0.0
    %1546 = vmatpush1.msra.mxu0 %v47
    %1547 = vmatprep.subr.mxu0 0.0
    %1548 = vmatpush1.msra.mxu0 %v46
    %1549 = vmatprep.subr.mxu0 0.0
    %1550 = vmatpush1.msra.mxu0 %v45
    %1551 = vmatprep.subr.mxu0 0.0
    %1552 = vmatpush1.msra.mxu0 %v44
    %1553 = vmatprep.subr.mxu0 0.0
    %1554 = vmatpush2.msra.mxu0 0.0
    %1555 = vmatprep.subr.mxu0 0.0
    %1556 = vmatpush2.msra.mxu0 0.0
    %1557 = vmatprep.subr.mxu0 0.0
    %1558 = vmatpush2.msra.mxu0 0.0
    %1559 = vmatprep.subr.mxu0 0.0
    %1560 = vmatpush2.msra.mxu0 0.0
    %1561 = vmatprep.subr.mxu0 0.0
    %1562 = vmatpush2.msra.mxu0 0.0
    %1563 = vmatprep.subr.mxu0 0.0
    %1564 = vmatpush2.msra.mxu0 0.0
    %1565 = vmatprep.subr.mxu0 0.0
    %1566 = vmatpush2.msra.mxu0 0.0
    %1567 = vmatprep.subr.mxu0 0.0
    %1568 = vmatpush2.msra.mxu0 0.0
    %1569 = vmatprep.subr.mxu0 0.0
    %1570 = vmatpush2.msra.mxu0 0.0
    %1571 = vmatprep.subr.mxu0 0.0
    %1572 = vmatpush2.msra.mxu0 0.0
    %1573 = vmatprep.subr.mxu0 0.0
    %1574 = vmatpush2.msra.mxu0 0.0
    %1575 = vmatprep.subr.mxu0 0.0
    %1576 = vmatpush2.msra.mxu0 0.0
    %1577 = vmatprep.subr.mxu0 0.0
    %1578 = vmatpush2.msra.mxu0 0.0
    %1579 = vmatprep.subr.mxu0 0.0
    %1580 = vmatpush2.msra.mxu0 0.0
    %1581 = vmatprep.subr.mxu0 0.0
    %1582 = vmatpush2.msra.mxu0 0.0
    %1583 = vmatprep.subr.mxu0 0.0
    %1584 = vmatpush2.msra.mxu0 0.0
    %1585 = vmatprep.mubr.f32.mxu0 0.0
    %1586 = vmatmul.mubr.f32.gmra.mxu0 %v1519
    %v1587 = vpop.f32.mrf.mxu0
    %v1588 = vadd.f32 0.0, %v1587
    %v1589 = vpop.f32.mrf.mxu0
    %1590 = vdwg.mxu0
    %v1592 = vrot.slane %v1588, 4
    %v1594 = vadd.f32 %v160, %v1592
    %v1595 = vxor.u32 %v1594, 2147483648
    %v1596 = vmul.f32 %v1595, 1.442695
    %v1597 = vpow.pop %v1596
    %v1598 = vadd.f32 %v1597, 1.0
    %v1599 = vrcp.pop %v1598
    %v1600 = vmul.f32 1.0, %v1599
    %v1601 = vtanh.pop %v1594
    %v1603 = vrot.slane %v1401, 6
    %v1605 = vmul.f32 %v1600, %v1603
    %1607 = vrot.lane.b32.xlu0 %v1601, 64
    %v1608 = vpop.permute.xlu0 %1607
    %v1610 = vmul.f32 %v1600, %v1608
    %1612 = vrot.lane.b32.xlu0 %v1610, 32
    %v1613 = vpop.permute.xlu0 %1612
    %v1615 = vadd.f32 %v1605, %v1613
    %v1616 = vtanh.pop %v1615
    %1618 = vrot.lane.b32.xlu0 %v1616, 64
    %v1619 = vpop.permute.xlu0 %1618
    %v1621 = vmul.f32 %v1600, %v1619
    %1623 = vrot.lane.b32.xlu0 %v1621, 32
    %v1624 = vpop.permute.xlu0 %1623
    %v1627 = vrot.slane %v1515, 4
    %1628 = vrot.lane.b32.xlu0 %v1627, 64
    %v1629 = vpop.permute.xlu0 %1628
    %v1631 = vsel %vm255, %v1624, %v1629
    %v1633 = vrot.slane %v1631, 4
    %v1634 = vsel %vm359, %v1633, 0
    %1636 = vmatprep.subr.mxu0 0.0
    %1637 = vmatpush1.msra.mxu0 0.0
    %1638 = vmatprep.subr.mxu0 0.0
    %1639 = vmatpush1.msra.mxu0 0.0
    %1640 = vmatprep.subr.mxu0 0.0
    %1641 = vmatpush1.msra.mxu0 0.0
    %1642 = vmatprep.subr.mxu0 0.0
    %1643 = vmatpush1.msra.mxu0 0.0
    %1644 = vmatprep.subr.mxu0 0.0
    %1645 = vmatpush1.msra.mxu0 0.0
    %1646 = vmatprep.subr.mxu0 0.0
    %1647 = vmatpush1.msra.mxu0 0.0
    %1648 = vmatprep.subr.mxu0 0.0
    %1649 = vmatpush1.msra.mxu0 0.0
    %1650 = vmatprep.subr.mxu0 0.0
    %1651 = vmatpush1.msra.mxu0 0.0
    %1652 = vmatprep.subr.mxu0 0.0
    %1653 = vmatpush1.msra.mxu0 %v55
    %1654 = vmatprep.subr.mxu0 0.0
    %1655 = vmatpush1.msra.mxu0 %v54
    %1656 = vmatprep.subr.mxu0 0.0
    %1657 = vmatpush1.msra.mxu0 %v53
    %1658 = vmatprep.subr.mxu0 0.0
    %1659 = vmatpush1.msra.mxu0 %v52
    %1660 = vmatprep.subr.mxu0 0.0
    %1661 = vmatpush1.msra.mxu0 %v51
    %1662 = vmatprep.subr.mxu0 0.0
    %1663 = vmatpush1.msra.mxu0 %v50
    %1664 = vmatprep.subr.mxu0 0.0
    %1665 = vmatpush1.msra.mxu0 %v49
    %1666 = vmatprep.subr.mxu0 0.0
    %1667 = vmatpush1.msra.mxu0 %v48
    %1668 = vmatprep.subr.mxu0 0.0
    %1669 = vmatpush2.msra.mxu0 0.0
    %1670 = vmatprep.subr.mxu0 0.0
    %1671 = vmatpush2.msra.mxu0 0.0
    %1672 = vmatprep.subr.mxu0 0.0
    %1673 = vmatpush2.msra.mxu0 0.0
    %1674 = vmatprep.subr.mxu0 0.0
    %1675 = vmatpush2.msra.mxu0 0.0
    %1676 = vmatprep.subr.mxu0 0.0
    %1677 = vmatpush2.msra.mxu0 0.0
    %1678 = vmatprep.subr.mxu0 0.0
    %1679 = vmatpush2.msra.mxu0 0.0
    %1680 = vmatprep.subr.mxu0 0.0
    %1681 = vmatpush2.msra.mxu0 0.0
    %1682 = vmatprep.subr.mxu0 0.0
    %1683 = vmatpush2.msra.mxu0 0.0
    %1684 = vmatprep.subr.mxu0 0.0
    %1685 = vmatpush2.msra.mxu0 0.0
    %1686 = vmatprep.subr.mxu0 0.0
    %1687 = vmatpush2.msra.mxu0 0.0
    %1688 = vmatprep.subr.mxu0 0.0
    %1689 = vmatpush2.msra.mxu0 0.0
    %1690 = vmatprep.subr.mxu0 0.0
    %1691 = vmatpush2.msra.mxu0 0.0
    %1692 = vmatprep.subr.mxu0 0.0
    %1693 = vmatpush2.msra.mxu0 0.0
    %1694 = vmatprep.subr.mxu0 0.0
    %1695 = vmatpush2.msra.mxu0 0.0
    %1696 = vmatprep.subr.mxu0 0.0
    %1697 = vmatpush2.msra.mxu0 0.0
    %1698 = vmatprep.subr.mxu0 0.0
    %1699 = vmatpush2.msra.mxu0 0.0
    %1700 = vmatprep.mubr.f32.mxu0 0.0
    %1701 = vmatmul.mubr.f32.gmra.mxu0 %v1634
    %v1702 = vpop.f32.mrf.mxu0
    %v1703 = vadd.f32 %v68, %v1702
    %v1704 = vpop.f32.mrf.mxu0
    %1705 = vdwg.mxu0
    %v1706 = vxor.u32 %v1703, 2147483648
    %v1707 = vmul.f32 %v1706, 1.442695
    %v1708 = vpow.pop %v1707
    %v1709 = vadd.f32 %v1708, 1.0
    %v1710 = vrcp.pop %v1709
    %v1711 = vmul.f32 1.0, %v1710
    %v1712 = vtanh.pop %v1703
    %v1713 = vmul.f32 %v1711, %v1509
    %1715 = vrot.lane.b32.xlu0 %v1712, 64
    %v1716 = vpop.permute.xlu0 %1715
    %v1718 = vmul.f32 %v1711, %v1716
    %1720 = vrot.lane.b32.xlu0 %v1718, 32
    %v1721 = vpop.permute.xlu0 %1720
    %v1723 = vadd.f32 %v1713, %v1721
    %v1724 = vtanh.pop %v1723
    %1726 = vrot.lane.b32.xlu0 %v1724, 64
    %v1727 = vpop.permute.xlu0 %1726
    %v1729 = vmul.f32 %v1711, %v1727
    %v1730 = vrot.slane %v1621, 4
    %1731 = vrot.lane.b32.xlu0 %v1730, 32
    %v1732 = vpop.permute.xlu0 %1731
    %v1733 = vsel %vm255, %v1732, 0
    %1735 = vmatprep.subr.mxu0 0.0
    %1736 = vmatpush1.msra.mxu0 0.0
    %1737 = vmatprep.subr.mxu0 0.0
    %1738 = vmatpush1.msra.mxu0 0.0
    %1739 = vmatprep.subr.mxu0 0.0
    %1740 = vmatpush1.msra.mxu0 0.0
    %1741 = vmatprep.subr.mxu0 0.0
    %1742 = vmatpush1.msra.mxu0 0.0
    %1743 = vmatprep.subr.mxu0 0.0
    %1744 = vmatpush1.msra.mxu0 0.0
    %1745 = vmatprep.subr.mxu0 0.0
    %1746 = vmatpush1.msra.mxu0 0.0
    %1747 = vmatprep.subr.mxu0 0.0
    %1748 = vmatpush1.msra.mxu0 0.0
    %1749 = vmatprep.subr.mxu0 0.0
    %1750 = vmatpush1.msra.mxu0 0.0
    %1751 = vmatprep.subr.mxu0 0.0
    %1752 = vmatpush1.msra.mxu0 0.0
    %1753 = vmatprep.subr.mxu0 0.0
    %1754 = vmatpush1.msra.mxu0 0.0
    %1755 = vmatprep.subr.mxu0 0.0
    %1756 = vmatpush1.msra.mxu0 0.0
    %1757 = vmatprep.subr.mxu0 0.0
    %1758 = vmatpush1.msra.mxu0 0.0
    %1759 = vmatprep.subr.mxu0 0.0
    %1760 = vmatpush1.msra.mxu0 %v47
    %1761 = vmatprep.subr.mxu0 0.0
    %1762 = vmatpush1.msra.mxu0 %v46
    %1763 = vmatprep.subr.mxu0 0.0
    %1764 = vmatpush1.msra.mxu0 %v45
    %1765 = vmatprep.subr.mxu0 0.0
    %1766 = vmatpush1.msra.mxu0 %v44
    %1767 = vmatprep.subr.mxu0 0.0
    %1768 = vmatpush2.msra.mxu0 0.0
    %1769 = vmatprep.subr.mxu0 0.0
    %1770 = vmatpush2.msra.mxu0 0.0
    %1771 = vmatprep.subr.mxu0 0.0
    %1772 = vmatpush2.msra.mxu0 0.0
    %1773 = vmatprep.subr.mxu0 0.0
    %1774 = vmatpush2.msra.mxu0 0.0
    %1775 = vmatprep.subr.mxu0 0.0
    %1776 = vmatpush2.msra.mxu0 0.0
    %1777 = vmatprep.subr.mxu0 0.0
    %1778 = vmatpush2.msra.mxu0 0.0
    %1779 = vmatprep.subr.mxu0 0.0
    %1780 = vmatpush2.msra.mxu0 0.0
    %1781 = vmatprep.subr.mxu0 0.0
    %1782 = vmatpush2.msra.mxu0 0.0
    %1783 = vmatprep.subr.mxu0 0.0
    %1784 = vmatpush2.msra.mxu0 0.0
    %1785 = vmatprep.subr.mxu0 0.0
    %1786 = vmatpush2.msra.mxu0 0.0
    %1787 = vmatprep.subr.mxu0 0.0
    %1788 = vmatpush2.msra.mxu0 0.0
    %1789 = vmatprep.subr.mxu0 0.0
    %1790 = vmatpush2.msra.mxu0 0.0
    %1791 = vmatprep.subr.mxu0 0.0
    %1792 = vmatpush2.msra.mxu0 0.0
    %1793 = vmatprep.subr.mxu0 0.0
    %1794 = vmatpush2.msra.mxu0 0.0
    %1795 = vmatprep.subr.mxu0 0.0
    %1796 = vmatpush2.msra.mxu0 0.0
    %1797 = vmatprep.subr.mxu0 0.0
    %1798 = vmatpush2.msra.mxu0 0.0
    %1799 = vmatprep.mubr.f32.mxu0 0.0
    %1800 = vmatmul.mubr.f32.gmra.mxu0 %v1733
    %v1801 = vpop.f32.mrf.mxu0
    %v1802 = vadd.f32 0.0, %v1801
    %v1803 = vpop.f32.mrf.mxu0
    %1804 = vdwg.mxu0
    %v1806 = vrot.slane %v1802, 2
    %v1808 = vadd.f32 %v160, %v1806
    %v1809 = vxor.u32 %v1808, 2147483648
    %v1810 = vmul.f32 %v1809, 1.442695
    %v1811 = vpow.pop %v1810
    %v1812 = vadd.f32 %v1811, 1.0
    %v1813 = vrcp.pop %v1812
    %v1814 = vmul.f32 1.0, %v1813
    %v1815 = vtanh.pop %v1808
    %v1817 = vrot.slane %v1615, 6
    %v1819 = vmul.f32 %v1814, %v1817
    %1821 = vrot.lane.b32.xlu0 %v1815, 64
    %v1822 = vpop.permute.xlu0 %1821
    %v1824 = vmul.f32 %v1814, %v1822
    %1826 = vrot.lane.b32.xlu0 %v1824, 32
    %v1827 = vpop.permute.xlu0 %1826
    %v1829 = vadd.f32 %v1819, %v1827
    %v1830 = vtanh.pop %v1829
    %1832 = vrot.lane.b32.xlu0 %v1830, 64
    %v1833 = vpop.permute.xlu0 %1832
    %v1835 = vmul.f32 %v1814, %v1833
    %1837 = vrot.lane.b32.xlu0 %v1835, 32
    %v1838 = vpop.permute.xlu0 %1837
    %v1841 = vrot.slane %v1729, 2
    %1842 = vrot.lane.b32.xlu0 %v1841, 64
    %v1843 = vpop.permute.xlu0 %1842
    %v1845 = vsel %vm255, %v1838, %v1843
    %v1847 = vrot.slane %v1845, 6
    %v1848 = vsel %vm359, %v1847, 0
    %1850 = vmatprep.subr.mxu0 0.0
    %1851 = vmatpush1.msra.mxu0 0.0
    %1852 = vmatprep.subr.mxu0 0.0
    %1853 = vmatpush1.msra.mxu0 0.0
    %1854 = vmatprep.subr.mxu0 0.0
    %1855 = vmatpush1.msra.mxu0 0.0
    %1856 = vmatprep.subr.mxu0 0.0
    %1857 = vmatpush1.msra.mxu0 0.0
    %1858 = vmatprep.subr.mxu0 0.0
    %1859 = vmatpush1.msra.mxu0 0.0
    %1860 = vmatprep.subr.mxu0 0.0
    %1861 = vmatpush1.msra.mxu0 0.0
    %1862 = vmatprep.subr.mxu0 0.0
    %1863 = vmatpush1.msra.mxu0 0.0
    %1864 = vmatprep.subr.mxu0 0.0
    %1865 = vmatpush1.msra.mxu0 0.0
    %1866 = vmatprep.subr.mxu0 0.0
    %1867 = vmatpush1.msra.mxu0 %v55
    %1868 = vmatprep.subr.mxu0 0.0
    %1869 = vmatpush1.msra.mxu0 %v54
    %1870 = vmatprep.subr.mxu0 0.0
    %1871 = vmatpush1.msra.mxu0 %v53
    %1872 = vmatprep.subr.mxu0 0.0
    %1873 = vmatpush1.msra.mxu0 %v52
    %1874 = vmatprep.subr.mxu0 0.0
    %1875 = vmatpush1.msra.mxu0 %v51
    %1876 = vmatprep.subr.mxu0 0.0
    %1877 = vmatpush1.msra.mxu0 %v50
    %1878 = vmatprep.subr.mxu0 0.0
    %1879 = vmatpush1.msra.mxu0 %v49
    %1880 = vmatprep.subr.mxu0 0.0
    %1881 = vmatpush1.msra.mxu0 %v48
    %1882 = vmatprep.subr.mxu0 0.0
    %1883 = vmatpush2.msra.mxu0 0.0
    %1884 = vmatprep.subr.mxu0 0.0
    %1885 = vmatpush2.msra.mxu0 0.0
    %1886 = vmatprep.subr.mxu0 0.0
    %1887 = vmatpush2.msra.mxu0 0.0
    %1888 = vmatprep.subr.mxu0 0.0
    %1889 = vmatpush2.msra.mxu0 0.0
    %1890 = vmatprep.subr.mxu0 0.0
    %1891 = vmatpush2.msra.mxu0 0.0
    %1892 = vmatprep.subr.mxu0 0.0
    %1893 = vmatpush2.msra.mxu0 0.0
    %1894 = vmatprep.subr.mxu0 0.0
    %1895 = vmatpush2.msra.mxu0 0.0
    %1896 = vmatprep.subr.mxu0 0.0
    %1897 = vmatpush2.msra.mxu0 0.0
    %1898 = vmatprep.subr.mxu0 0.0
    %1899 = vmatpush2.msra.mxu0 0.0
    %1900 = vmatprep.subr.mxu0 0.0
    %1901 = vmatpush2.msra.mxu0 0.0
    %1902 = vmatprep.subr.mxu0 0.0
    %1903 = vmatpush2.msra.mxu0 0.0
    %1904 = vmatprep.subr.mxu0 0.0
    %1905 = vmatpush2.msra.mxu0 0.0
    %1906 = vmatprep.subr.mxu0 0.0
    %1907 = vmatpush2.msra.mxu0 0.0
    %1908 = vmatprep.subr.mxu0 0.0
    %1909 = vmatpush2.msra.mxu0 0.0
    %1910 = vmatprep.subr.mxu0 0.0
    %1911 = vmatpush2.msra.mxu0 0.0
    %1912 = vmatprep.subr.mxu0 0.0
    %1913 = vmatpush2.msra.mxu0 0.0
    %1914 = vmatprep.mubr.f32.mxu0 0.0
    %1915 = vmatmul.mubr.f32.gmra.mxu0 %v1848
    %v1916 = vpop.f32.mrf.mxu0
    %v1917 = vadd.f32 %v68, %v1916
    %v1918 = vpop.f32.mrf.mxu0
    %1919 = vdwg.mxu0
    %v1920 = vxor.u32 %v1917, 2147483648
    %v1921 = vmul.f32 %v1920, 1.442695
    %v1922 = vpow.pop %v1921
    %v1923 = vadd.f32 %v1922, 1.0
    %v1924 = vrcp.pop %v1923
    %v1925 = vmul.f32 1.0, %v1924
    %v1926 = vtanh.pop %v1917
    %v1927 = vmul.f32 %v1925, %v1723
    %1929 = vrot.lane.b32.xlu0 %v1926, 64
    %v1930 = vpop.permute.xlu0 %1929
    %v1932 = vmul.f32 %v1925, %v1930
    %1934 = vrot.lane.b32.xlu0 %v1932, 32
    %v1935 = vpop.permute.xlu0 %1934
    %v1937 = vadd.f32 %v1927, %v1935
    %v1938 = vtanh.pop %v1937
    %1940 = vrot.lane.b32.xlu0 %v1938, 64
    %v1941 = vpop.permute.xlu0 %1940
    %v1943 = vmul.f32 %v1925, %v1941
    %v1944 = vld [vmem:[%s10] sm:$0xff]
    %v1945 = vld [vmem:[%s10 + $0x8] sm:$0xff]
    %v1946 = vld [vmem:[%s10 + $0x10] sm:$0xff]
    %v1947 = vld [vmem:[%s10 + $0x18] sm:$0xff]
    %v1948 = vld [vmem:[%s11] sm:$0x1]
    %v1950 = vlaneseq
    %v1951 = vshrl.u32 %v1950, 7
    %v1952 = vsub.s32 0, %v1951
    %v1953 = vrot.slane %v1948, %v1952
    %v1955 = vrot.slane %v1835, 6
    %1956 = vrot.lane.b32.xlu0 %v1955, 32
    %v1957 = vpop.permute.xlu0 %1956
    %v1958 = vsel %vm255, %v1957, 0
    %1960 = vmatprep.subr.mxu0 0.0
    %1961 = vmatpush1.msra.mxu0 0.0
    %1962 = vmatprep.subr.mxu0 0.0
    %1963 = vmatpush1.msra.mxu0 0.0
    %1964 = vmatprep.subr.mxu0 0.0
    %1965 = vmatpush1.msra.mxu0 0.0
    %1966 = vmatprep.subr.mxu0 0.0
    %1967 = vmatpush1.msra.mxu0 0.0
    %1968 = vmatprep.subr.mxu0 0.0
    %1969 = vmatpush1.msra.mxu0 0.0
    %1970 = vmatprep.subr.mxu0 0.0
    %1971 = vmatpush1.msra.mxu0 0.0
    %1972 = vmatprep.subr.mxu0 0.0
    %1973 = vmatpush1.msra.mxu0 0.0
    %1974 = vmatprep.subr.mxu0 0.0
    %1975 = vmatpush1.msra.mxu0 0.0
    %1976 = vmatprep.subr.mxu0 0.0
    %1977 = vmatpush1.msra.mxu0 0.0
    %1978 = vmatprep.subr.mxu0 0.0
    %1979 = vmatpush1.msra.mxu0 0.0
    %1980 = vmatprep.subr.mxu0 0.0
    %1981 = vmatpush1.msra.mxu0 0.0
    %1982 = vmatprep.subr.mxu0 0.0
    %1983 = vmatpush1.msra.mxu0 0.0
    %1984 = vmatprep.subr.mxu0 0.0
    %1985 = vmatpush1.msra.mxu0 %v47
    %1986 = vmatprep.subr.mxu0 0.0
    %1987 = vmatpush1.msra.mxu0 %v46
    %1988 = vmatprep.subr.mxu0 0.0
    %1989 = vmatpush1.msra.mxu0 %v45
    %1990 = vmatprep.subr.mxu0 0.0
    %1991 = vmatpush1.msra.mxu0 %v44
    %1992 = vmatprep.subr.mxu0 0.0
    %1993 = vmatpush2.msra.mxu0 0.0
    %1994 = vmatprep.subr.mxu0 0.0
    %1995 = vmatpush2.msra.mxu0 0.0
    %1996 = vmatprep.subr.mxu0 0.0
    %1997 = vmatpush2.msra.mxu0 0.0
    %1998 = vmatprep.subr.mxu0 0.0
    %1999 = vmatpush2.msra.mxu0 0.0
    %2000 = vmatprep.subr.mxu0 0.0
    %2001 = vmatpush2.msra.mxu0 0.0
    %2002 = vmatprep.subr.mxu0 0.0
    %2003 = vmatpush2.msra.mxu0 0.0
    %2004 = vmatprep.subr.mxu0 0.0
    %2005 = vmatpush2.msra.mxu0 0.0
    %2006 = vmatprep.subr.mxu0 0.0
    %2007 = vmatpush2.msra.mxu0 0.0
    %2008 = vmatprep.subr.mxu0 0.0
    %2009 = vmatpush2.msra.mxu0 0.0
    %2010 = vmatprep.subr.mxu0 0.0
    %2011 = vmatpush2.msra.mxu0 0.0
    %2012 = vmatprep.subr.mxu0 0.0
    %2013 = vmatpush2.msra.mxu0 0.0
    %2014 = vmatprep.subr.mxu0 0.0
    %2015 = vmatpush2.msra.mxu0 0.0
    %2016 = vmatprep.subr.mxu0 0.0
    %2017 = vmatpush2.msra.mxu0 0.0
    %2018 = vmatprep.subr.mxu0 0.0
    %2019 = vmatpush2.msra.mxu0 0.0
    %2020 = vmatprep.subr.mxu0 0.0
    %2021 = vmatpush2.msra.mxu0 0.0
    %2022 = vmatprep.subr.mxu0 0.0
    %2023 = vmatpush2.msra.mxu0 0.0
    %2024 = vmatprep.mubr.f32.mxu0 0.0
    %2025 = vmatmul.mubr.f32.gmra.mxu0 %v1958
    %v2026 = vpop.f32.mrf.mxu0
    %v2027 = vadd.f32 %v61, %v2026
    %v2028 = vpop.f32.mrf.mxu0
    %2029 = vdwg.mxu0
    %v2030 = vxor.u32 %v2027, 2147483648
    %v2031 = vmul.f32 %v2030, 1.442695
    %v2032 = vpow.pop %v2031
    %v2033 = vadd.f32 %v2032, 1.0
    %v2034 = vrcp.pop %v2033
    %v2035 = vmul.f32 1.0, %v2034
    %v2036 = vtanh.pop %v2027
    %v2038 = vrot.slane %v1829, 6
    %v2040 = vmul.f32 %v2035, %v2038
    %2042 = vrot.lane.b32.xlu0 %v2036, 64
    %v2043 = vpop.permute.xlu0 %2042
    %v2045 = vmul.f32 %v2035, %v2043
    %2047 = vrot.lane.b32.xlu0 %v2045, 32
    %v2048 = vpop.permute.xlu0 %2047
    %v2050 = vadd.f32 %v2040, %v2048
    %v2051 = vtanh.pop %v2050
    %2053 = vrot.lane.b32.xlu0 %v2051, 64
    %v2054 = vpop.permute.xlu0 %2053
    %v2056 = vmul.f32 %v2035, %v2054
    %2058 = vrot.lane.b32.xlu0 %v2056, 32
    %v2059 = vpop.permute.xlu0 %2058
    %2062 = vrot.lane.b32.xlu0 %v1943, 64
    %v2063 = vpop.permute.xlu0 %2062
    %v2065 = vsel %vm255, %v2059, %v2063
    %v2067 = vsel %vm359, %v2065, 0
    %2069 = vmatprep.subr.mxu0 0.0
    %2070 = vmatpush1.msra.mxu0 0.0
    %2071 = vmatprep.subr.mxu0 0.0
    %2072 = vmatpush1.msra.mxu0 0.0
    %2073 = vmatprep.subr.mxu0 0.0
    %2074 = vmatpush1.msra.mxu0 0.0
    %2075 = vmatprep.subr.mxu0 0.0
    %2076 = vmatpush1.msra.mxu0 0.0
    %2077 = vmatprep.subr.mxu0 0.0
    %2078 = vmatpush1.msra.mxu0 0.0
    %2079 = vmatprep.subr.mxu0 0.0
    %2080 = vmatpush1.msra.mxu0 0.0
    %2081 = vmatprep.subr.mxu0 0.0
    %2082 = vmatpush1.msra.mxu0 0.0
    %2083 = vmatprep.subr.mxu0 0.0
    %2084 = vmatpush1.msra.mxu0 0.0
    %2085 = vmatprep.subr.mxu0 0.0
    %2086 = vmatpush1.msra.mxu0 %v55
    %2087 = vmatprep.subr.mxu0 0.0
    %2088 = vmatpush1.msra.mxu0 %v54
    %2089 = vmatprep.subr.mxu0 0.0
    %2090 = vmatpush1.msra.mxu0 %v53
    %2091 = vmatprep.subr.mxu0 0.0
    %2092 = vmatpush1.msra.mxu0 %v52
    %2093 = vmatprep.subr.mxu0 0.0
    %2094 = vmatpush1.msra.mxu0 %v51
    %2095 = vmatprep.subr.mxu0 0.0
    %2096 = vmatpush1.msra.mxu0 %v50
    %2097 = vmatprep.subr.mxu0 0.0
    %2098 = vmatpush1.msra.mxu0 %v49
    %2099 = vmatprep.subr.mxu0 0.0
    %2100 = vmatpush1.msra.mxu0 %v48
    %2101 = vmatprep.subr.mxu0 0.0
    %2102 = vmatpush2.msra.mxu0 0.0
    %2103 = vmatprep.subr.mxu0 0.0
    %2104 = vmatpush2.msra.mxu0 0.0
    %2105 = vmatprep.subr.mxu0 0.0
    %2106 = vmatpush2.msra.mxu0 0.0
    %2107 = vmatprep.subr.mxu0 0.0
    %2108 = vmatpush2.msra.mxu0 0.0
    %2109 = vmatprep.subr.mxu0 0.0
    %2110 = vmatpush2.msra.mxu0 0.0
    %2111 = vmatprep.subr.mxu0 0.0
    %2112 = vmatpush2.msra.mxu0 0.0
    %2113 = vmatprep.subr.mxu0 0.0
    %2114 = vmatpush2.msra.mxu0 0.0
    %2115 = vmatprep.subr.mxu0 0.0
    %2116 = vmatpush2.msra.mxu0 0.0
    %2117 = vmatprep.subr.mxu0 0.0
    %2118 = vmatpush2.msra.mxu0 0.0
    %2119 = vmatprep.subr.mxu0 0.0
    %2120 = vmatpush2.msra.mxu0 0.0
    %2121 = vmatprep.subr.mxu0 0.0
    %2122 = vmatpush2.msra.mxu0 0.0
    %2123 = vmatprep.subr.mxu0 0.0
    %2124 = vmatpush2.msra.mxu0 0.0
    %2125 = vmatprep.subr.mxu0 0.0
    %2126 = vmatpush2.msra.mxu0 0.0
    %2127 = vmatprep.subr.mxu0 0.0
    %2128 = vmatpush2.msra.mxu0 0.0
    %2129 = vmatprep.subr.mxu0 0.0
    %2130 = vmatpush2.msra.mxu0 0.0
    %2131 = vmatprep.subr.mxu0 0.0
    %2132 = vmatpush2.msra.mxu0 0.0
    %2133 = vmatprep.mubr.f32.mxu0 0.0
    %2134 = vmatmul.mubr.f32.gmra.mxu0 %v2067
    %v2135 = vpop.f32.mrf.mxu0
    %v2136 = vadd.f32 0.0, %v2135
    %v2137 = vpop.f32.mrf.mxu0
    %2138 = vdwg.mxu0
    %v2139 = vadd.f32 %v247, %v2136
    %v2140 = vxor.u32 %v2139, 2147483648
    %v2141 = vmul.f32 %v2140, 1.442695
    %v2142 = vpow.pop %v2141
    %v2143 = vadd.f32 %v2142, 1.0
    %v2144 = vrcp.pop %v2143
    %v2145 = vmul.f32 1.0, %v2144
    %v2146 = vtanh.pop %v2139
    %v2147 = vmul.f32 %v2145, %v1937
    %2149 = vrot.lane.b32.xlu0 %v2146, 64
    %v2150 = vpop.permute.xlu0 %2149
    %v2152 = vmul.f32 %v2145, %v2150
    %2154 = vrot.lane.b32.xlu0 %v2152, 32
    %v2155 = vpop.permute.xlu0 %2154
    %v2157 = vadd.f32 %v2147, %v2155
    %v2158 = vtanh.pop %v2157
    %2160 = vrot.lane.b32.xlu0 %v2158, 64
    %v2161 = vpop.permute.xlu0 %2160
    %v2163 = vmul.f32 %v2145, %v2161
    %2165 = vrot.lane.b32.xlu0 %v2163, 32
    %v2166 = vpop.permute.xlu0 %2165
    %v2167 = vsel %vm255, %v2166, 0
    %2169 = vmatprep.subr.mxu0 0.0
    %2170 = vmatpush1.msra.mxu0 0.0
    %2171 = vmatprep.subr.mxu0 0.0
    %2172 = vmatpush1.msra.mxu0 0.0
    %2173 = vmatprep.subr.mxu0 0.0
    %2174 = vmatpush1.msra.mxu0 0.0
    %2175 = vmatprep.subr.mxu0 0.0
    %2176 = vmatpush1.msra.mxu0 0.0
    %2177 = vmatprep.subr.mxu0 0.0
    %2178 = vmatpush1.msra.mxu0 0.0
    %2179 = vmatprep.subr.mxu0 0.0
    %2180 = vmatpush1.msra.mxu0 0.0
    %2181 = vmatprep.subr.mxu0 0.0
    %2182 = vmatpush1.msra.mxu0 0.0
    %2183 = vmatprep.subr.mxu0 0.0
    %2184 = vmatpush1.msra.mxu0 0.0
    %2185 = vmatprep.subr.mxu0 0.0
    %2186 = vmatpush1.msra.mxu0 0.0
    %2187 = vmatprep.subr.mxu0 0.0
    %2188 = vmatpush1.msra.mxu0 0.0
    %2189 = vmatprep.subr.mxu0 0.0
    %2190 = vmatpush1.msra.mxu0 0.0
    %2191 = vmatprep.subr.mxu0 0.0
    %2192 = vmatpush1.msra.mxu0 0.0
    %2193 = vmatprep.subr.mxu0 0.0
    %2194 = vmatpush1.msra.mxu0 %v1947
    %2195 = vmatprep.subr.mxu0 0.0
    %2196 = vmatpush1.msra.mxu0 %v1946
    %2197 = vmatprep.subr.mxu0 0.0
    %2198 = vmatpush1.msra.mxu0 %v1945
    %2199 = vmatprep.subr.mxu0 0.0
    %2200 = vmatpush1.msra.mxu0 %v1944
    %2201 = vmatprep.subr.mxu0 0.0
    %2202 = vmatpush2.msra.mxu0 0.0
    %2203 = vmatprep.subr.mxu0 0.0
    %2204 = vmatpush2.msra.mxu0 0.0
    %2205 = vmatprep.subr.mxu0 0.0
    %2206 = vmatpush2.msra.mxu0 0.0
    %2207 = vmatprep.subr.mxu0 0.0
    %2208 = vmatpush2.msra.mxu0 0.0
    %2209 = vmatprep.subr.mxu0 0.0
    %2210 = vmatpush2.msra.mxu0 0.0
    %2211 = vmatprep.subr.mxu0 0.0
    %2212 = vmatpush2.msra.mxu0 0.0
    %2213 = vmatprep.subr.mxu0 0.0
    %2214 = vmatpush2.msra.mxu0 0.0
    %2215 = vmatprep.subr.mxu0 0.0
    %2216 = vmatpush2.msra.mxu0 0.0
    %2217 = vmatprep.subr.mxu0 0.0
    %2218 = vmatpush2.msra.mxu0 0.0
    %2219 = vmatprep.subr.mxu0 0.0
    %2220 = vmatpush2.msra.mxu0 0.0
    %2221 = vmatprep.subr.mxu0 0.0
    %2222 = vmatpush2.msra.mxu0 0.0
    %2223 = vmatprep.subr.mxu0 0.0
    %2224 = vmatpush2.msra.mxu0 0.0
    %2225 = vmatprep.subr.mxu0 0.0
    %2226 = vmatpush2.msra.mxu0 0.0
    %2227 = vmatprep.subr.mxu0 0.0
    %2228 = vmatpush2.msra.mxu0 0.0
    %2229 = vmatprep.subr.mxu0 0.0
    %2230 = vmatpush2.msra.mxu0 0.0
    %2231 = vmatprep.subr.mxu0 0.0
    %2232 = vmatpush2.msra.mxu0 0.0
    %2233 = vmatprep.mubr.f32.mxu0 0.0
    %2234 = vmatmul.mubr.f32.gmra.mxu0 %v2167
    %v2235 = vpop.f32.mrf.mxu0
    %v2236 = vadd.f32 %v1953, %v2235
    %v2237 = vpop.f32.mrf.mxu0
    %2238 = vdwg.mxu0
    %2239 = vst [vmem:[#allocation2] sm:$0x3] %v2236
    %v2240 = vsel %vm255, %v2059, 0
    %2242 = vmatprep.subr.mxu0 0.0
    %2243 = vmatpush1.msra.mxu0 0.0
    %2244 = vmatprep.subr.mxu0 0.0
    %2245 = vmatpush1.msra.mxu0 0.0
    %2246 = vmatprep.subr.mxu0 0.0
    %2247 = vmatpush1.msra.mxu0 0.0
    %2248 = vmatprep.subr.mxu0 0.0
    %2249 = vmatpush1.msra.mxu0 0.0
    %2250 = vmatprep.subr.mxu0 0.0
    %2251 = vmatpush1.msra.mxu0 0.0
    %2252 = vmatprep.subr.mxu0 0.0
    %2253 = vmatpush1.msra.mxu0 0.0
    %2254 = vmatprep.subr.mxu0 0.0
    %2255 = vmatpush1.msra.mxu0 0.0
    %2256 = vmatprep.subr.mxu0 0.0
    %2257 = vmatpush1.msra.mxu0 0.0
    %2258 = vmatprep.subr.mxu0 0.0
    %2259 = vmatpush1.msra.mxu0 0.0
    %2260 = vmatprep.subr.mxu0 0.0
    %2261 = vmatpush1.msra.mxu0 0.0
    %2262 = vmatprep.subr.mxu0 0.0
    %2263 = vmatpush1.msra.mxu0 0.0
    %2264 = vmatprep.subr.mxu0 0.0
    %2265 = vmatpush1.msra.mxu0 0.0
    %2266 = vmatprep.subr.mxu0 0.0
    %2267 = vmatpush1.msra.mxu0 %v47
    %2268 = vmatprep.subr.mxu0 0.0
    %2269 = vmatpush1.msra.mxu0 %v46
    %2270 = vmatprep.subr.mxu0 0.0
    %2271 = vmatpush1.msra.mxu0 %v45
    %2272 = vmatprep.subr.mxu0 0.0
    %2273 = vmatpush1.msra.mxu0 %v44
    %2274 = vmatprep.subr.mxu0 0.0
    %2275 = vmatpush2.msra.mxu0 0.0
    %2276 = vmatprep.subr.mxu0 0.0
    %2277 = vmatpush2.msra.mxu0 0.0
    %2278 = vmatprep.subr.mxu0 0.0
    %2279 = vmatpush2.msra.mxu0 0.0
    %2280 = vmatprep.subr.mxu0 0.0
    %2281 = vmatpush2.msra.mxu0 0.0
    %2282 = vmatprep.subr.mxu0 0.0
    %2283 = vmatpush2.msra.mxu0 0.0
    %2284 = vmatprep.subr.mxu0 0.0
    %2285 = vmatpush2.msra.mxu0 0.0
    %2286 = vmatprep.subr.mxu0 0.0
    %2287 = vmatpush2.msra.mxu0 0.0
    %2288 = vmatprep.subr.mxu0 0.0
    %2289 = vmatpush2.msra.mxu0 0.0
    %2290 = vmatprep.subr.mxu0 0.0
    %2291 = vmatpush2.msra.mxu0 0.0
    %2292 = vmatprep.subr.mxu0 0.0
    %2293 = vmatpush2.msra.mxu0 0.0
    %2294 = vmatprep.subr.mxu0 0.0
    %2295 = vmatpush2.msra.mxu0 0.0
    %2296 = vmatprep.subr.mxu0 0.0
    %2297 = vmatpush2.msra.mxu0 0.0
    %2298 = vmatprep.subr.mxu0 0.0
    %2299 = vmatpush2.msra.mxu0 0.0
    %2300 = vmatprep.subr.mxu0 0.0
    %2301 = vmatpush2.msra.mxu0 0.0
    %2302 = vmatprep.subr.mxu0 0.0
    %2303 = vmatpush2.msra.mxu0 0.0
    %2304 = vmatprep.subr.mxu0 0.0
    %2305 = vmatpush2.msra.mxu0 0.0
    %2306 = vmatprep.mubr.f32.mxu0 0.0
    %2307 = vmatmul.mubr.f32.gmra.mxu0 %v2240
    %v2308 = vpop.f32.mrf.mxu0
    %v2309 = vadd.f32 %v61, %v2308
    %v2310 = vpop.f32.mrf.mxu0
    %2311 = vdwg.mxu0
    %v2312 = vxor.u32 %v2309, 2147483648
    %v2313 = vmul.f32 %v2312, 1.442695
    %v2314 = vpow.pop %v2313
    %v2315 = vadd.f32 %v2314, 1.0
    %v2316 = vrcp.pop %v2315
    %v2317 = vmul.f32 1.0, %v2316
    %v2318 = vtanh.pop %v2309
    %v2319 = vmul.f32 %v2317, %v2050
    %2321 = vrot.lane.b32.xlu0 %v2318, 64
    %v2322 = vpop.permute.xlu0 %2321
    %v2324 = vmul.f32 %v2317, %v2322
    %2326 = vrot.lane.b32.xlu0 %v2324, 32
    %v2327 = vpop.permute.xlu0 %2326
    %v2329 = vadd.f32 %v2319, %v2327
    %v2330 = vtanh.pop %v2329
    %2332 = vrot.lane.b32.xlu0 %v2330, 64
    %v2333 = vpop.permute.xlu0 %2332
    %v2335 = vmul.f32 %v2317, %v2333
    %2337 = vrot.lane.b32.xlu0 %v2335, 32
    %v2338 = vpop.permute.xlu0 %2337
    %2340 = vrot.lane.b32.xlu0 %v2163, 64
    %v2341 = vpop.permute.xlu0 %2340
    %v2343 = vsel %vm255, %v2338, %v2341
    %v2345 = vsel %vm359, %v2343, 0
    %2347 = vmatprep.subr.mxu0 0.0
    %2348 = vmatpush1.msra.mxu0 0.0
    %2349 = vmatprep.subr.mxu0 0.0
    %2350 = vmatpush1.msra.mxu0 0.0
    %2351 = vmatprep.subr.mxu0 0.0
    %2352 = vmatpush1.msra.mxu0 0.0
    %2353 = vmatprep.subr.mxu0 0.0
    %2354 = vmatpush1.msra.mxu0 0.0
    %2355 = vmatprep.subr.mxu0 0.0
    %2356 = vmatpush1.msra.mxu0 0.0
    %2357 = vmatprep.subr.mxu0 0.0
    %2358 = vmatpush1.msra.mxu0 0.0
    %2359 = vmatprep.subr.mxu0 0.0
    %2360 = vmatpush1.msra.mxu0 0.0
    %2361 = vmatprep.subr.mxu0 0.0
    %2362 = vmatpush1.msra.mxu0 0.0
    %2363 = vmatprep.subr.mxu0 0.0
    %2364 = vmatpush1.msra.mxu0 %v55
    %2365 = vmatprep.subr.mxu0 0.0
    %2366 = vmatpush1.msra.mxu0 %v54
    %2367 = vmatprep.subr.mxu0 0.0
    %2368 = vmatpush1.msra.mxu0 %v53
    %2369 = vmatprep.subr.mxu0 0.0
    %2370 = vmatpush1.msra.mxu0 %v52
    %2371 = vmatprep.subr.mxu0 0.0
    %2372 = vmatpush1.msra.mxu0 %v51
    %2373 = vmatprep.subr.mxu0 0.0
    %2374 = vmatpush1.msra.mxu0 %v50
    %2375 = vmatprep.subr.mxu0 0.0
    %2376 = vmatpush1.msra.mxu0 %v49
    %2377 = vmatprep.subr.mxu0 0.0
    %2378 = vmatpush1.msra.mxu0 %v48
    %2379 = vmatprep.subr.mxu0 0.0
    %2380 = vmatpush2.msra.mxu0 0.0
    %2381 = vmatprep.subr.mxu0 0.0
    %2382 = vmatpush2.msra.mxu0 0.0
    %2383 = vmatprep.subr.mxu0 0.0
    %2384 = vmatpush2.msra.mxu0 0.0
    %2385 = vmatprep.subr.mxu0 0.0
    %2386 = vmatpush2.msra.mxu0 0.0
    %2387 = vmatprep.subr.mxu0 0.0
    %2388 = vmatpush2.msra.mxu0 0.0
    %2389 = vmatprep.subr.mxu0 0.0
    %2390 = vmatpush2.msra.mxu0 0.0
    %2391 = vmatprep.subr.mxu0 0.0
    %2392 = vmatpush2.msra.mxu0 0.0
    %2393 = vmatprep.subr.mxu0 0.0
    %2394 = vmatpush2.msra.mxu0 0.0
    %2395 = vmatprep.subr.mxu0 0.0
    %2396 = vmatpush2.msra.mxu0 0.0
    %2397 = vmatprep.subr.mxu0 0.0
    %2398 = vmatpush2.msra.mxu0 0.0
    %2399 = vmatprep.subr.mxu0 0.0
    %2400 = vmatpush2.msra.mxu0 0.0
    %2401 = vmatprep.subr.mxu0 0.0
    %2402 = vmatpush2.msra.mxu0 0.0
    %2403 = vmatprep.subr.mxu0 0.0
    %2404 = vmatpush2.msra.mxu0 0.0
    %2405 = vmatprep.subr.mxu0 0.0
    %2406 = vmatpush2.msra.mxu0 0.0
    %2407 = vmatprep.subr.mxu0 0.0
    %2408 = vmatpush2.msra.mxu0 0.0
    %2409 = vmatprep.subr.mxu0 0.0
    %2410 = vmatpush2.msra.mxu0 0.0
    %2411 = vmatprep.mubr.f32.mxu0 0.0
    %2412 = vmatmul.mubr.f32.gmra.mxu0 %v2345
    %v2413 = vpop.f32.mrf.mxu0
    %v2414 = vadd.f32 0.0, %v2413
    %v2415 = vpop.f32.mrf.mxu0
    %2416 = vdwg.mxu0
    %v2418 = vrot.slane %v2414, 6
    %v2420 = vadd.f32 %v247, %v2418
    %v2421 = vxor.u32 %v2420, 2147483648
    %v2422 = vmul.f32 %v2421, 1.442695
    %v2423 = vpow.pop %v2422
    %v2424 = vadd.f32 %v2423, 1.0
    %v2425 = vrcp.pop %v2424
    %v2426 = vmul.f32 1.0, %v2425
    %v2427 = vtanh.pop %v2420
    %v2429 = vrot.slane %v2157, 6
    %v2431 = vmul.f32 %v2426, %v2429
    %2433 = vrot.lane.b32.xlu0 %v2427, 64
    %v2434 = vpop.permute.xlu0 %2433
    %v2436 = vmul.f32 %v2426, %v2434
    %2438 = vrot.lane.b32.xlu0 %v2436, 32
    %v2439 = vpop.permute.xlu0 %2438
    %v2441 = vadd.f32 %v2431, %v2439
    %v2442 = vtanh.pop %v2441
    %2444 = vrot.lane.b32.xlu0 %v2442, 64
    %v2445 = vpop.permute.xlu0 %2444
    %v2447 = vmul.f32 %v2426, %v2445
    %v2449 = vrot.slane %v2447, 2
    %2450 = vrot.lane.b32.xlu0 %v2449, 32
    %v2451 = vpop.permute.xlu0 %2450
    %v2452 = vsel %vm255, %v2451, 0
    %2454 = vmatprep.subr.mxu0 0.0
    %2455 = vmatpush1.msra.mxu0 0.0
    %2456 = vmatprep.subr.mxu0 0.0
    %2457 = vmatpush1.msra.mxu0 0.0
    %2458 = vmatprep.subr.mxu0 0.0
    %2459 = vmatpush1.msra.mxu0 0.0
    %2460 = vmatprep.subr.mxu0 0.0
    %2461 = vmatpush1.msra.mxu0 0.0
    %2462 = vmatprep.subr.mxu0 0.0
    %2463 = vmatpush1.msra.mxu0 0.0
    %2464 = vmatprep.subr.mxu0 0.0
    %2465 = vmatpush1.msra.mxu0 0.0
    %2466 = vmatprep.subr.mxu0 0.0
    %2467 = vmatpush1.msra.mxu0 0.0
    %2468 = vmatprep.subr.mxu0 0.0
    %2469 = vmatpush1.msra.mxu0 0.0
    %2470 = vmatprep.subr.mxu0 0.0
    %2471 = vmatpush1.msra.mxu0 0.0
    %2472 = vmatprep.subr.mxu0 0.0
    %2473 = vmatpush1.msra.mxu0 0.0
    %2474 = vmatprep.subr.mxu0 0.0
    %2475 = vmatpush1.msra.mxu0 0.0
    %2476 = vmatprep.subr.mxu0 0.0
    %2477 = vmatpush1.msra.mxu0 0.0
    %2478 = vmatprep.subr.mxu0 0.0
    %2479 = vmatpush1.msra.mxu0 %v1947
    %2480 = vmatprep.subr.mxu0 0.0
    %2481 = vmatpush1.msra.mxu0 %v1946
    %2482 = vmatprep.subr.mxu0 0.0
    %2483 = vmatpush1.msra.mxu0 %v1945
    %2484 = vmatprep.subr.mxu0 0.0
    %2485 = vmatpush1.msra.mxu0 %v1944
    %2486 = vmatprep.subr.mxu0 0.0
    %2487 = vmatpush2.msra.mxu0 0.0
    %2488 = vmatprep.subr.mxu0 0.0
    %2489 = vmatpush2.msra.mxu0 0.0
    %2490 = vmatprep.subr.mxu0 0.0
    %2491 = vmatpush2.msra.mxu0 0.0
    %2492 = vmatprep.subr.mxu0 0.0
    %2493 = vmatpush2.msra.mxu0 0.0
    %2494 = vmatprep.subr.mxu0 0.0
    %2495 = vmatpush2.msra.mxu0 0.0
    %2496 = vmatprep.subr.mxu0 0.0
    %2497 = vmatpush2.msra.mxu0 0.0
    %2498 = vmatprep.subr.mxu0 0.0
    %2499 = vmatpush2.msra.mxu0 0.0
    %2500 = vmatprep.subr.mxu0 0.0
    %2501 = vmatpush2.msra.mxu0 0.0
    %2502 = vmatprep.subr.mxu0 0.0
    %2503 = vmatpush2.msra.mxu0 0.0
    %2504 = vmatprep.subr.mxu0 0.0
    %2505 = vmatpush2.msra.mxu0 0.0
    %2506 = vmatprep.subr.mxu0 0.0
    %2507 = vmatpush2.msra.mxu0 0.0
    %2508 = vmatprep.subr.mxu0 0.0
    %2509 = vmatpush2.msra.mxu0 0.0
    %2510 = vmatprep.subr.mxu0 0.0
    %2511 = vmatpush2.msra.mxu0 0.0
    %2512 = vmatprep.subr.mxu0 0.0
    %2513 = vmatpush2.msra.mxu0 0.0
    %2514 = vmatprep.subr.mxu0 0.0
    %2515 = vmatpush2.msra.mxu0 0.0
    %2516 = vmatprep.subr.mxu0 0.0
    %2517 = vmatpush2.msra.mxu0 0.0
    %2518 = vmatprep.mubr.f32.mxu0 0.0
    %2519 = vmatmul.mubr.f32.gmra.mxu0 %v2452
    %v2520 = vpop.f32.mrf.mxu0
    %v2521 = vadd.f32 %v1953, %v2520
    %v2522 = vpop.f32.mrf.mxu0
    %2523 = vdwg.mxu0
    %s2524 = scalar_lea.vmem [#allocation2], 2
    %2525 = vst [vmem:[%s2524] sm:$0x3] %v2521
    %v2526 = vsel %vm255, %v2338, 0
    %2528 = vmatprep.subr.mxu0 0.0
    %2529 = vmatpush1.msra.mxu0 0.0
    %2530 = vmatprep.subr.mxu0 0.0
    %2531 = vmatpush1.msra.mxu0 0.0
    %2532 = vmatprep.subr.mxu0 0.0
    %2533 = vmatpush1.msra.mxu0 0.0
    %2534 = vmatprep.subr.mxu0 0.0
    %2535 = vmatpush1.msra.mxu0 0.0
    %2536 = vmatprep.subr.mxu0 0.0
    %2537 = vmatpush1.msra.mxu0 0.0
    %2538 = vmatprep.subr.mxu0 0.0
    %2539 = vmatpush1.msra.mxu0 0.0
    %2540 = vmatprep.subr.mxu0 0.0
    %2541 = vmatpush1.msra.mxu0 0.0
    %2542 = vmatprep.subr.mxu0 0.0
    %2543 = vmatpush1.msra.mxu0 0.0
    %2544 = vmatprep.subr.mxu0 0.0
    %2545 = vmatpush1.msra.mxu0 0.0
    %2546 = vmatprep.subr.mxu0 0.0
    %2547 = vmatpush1.msra.mxu0 0.0
    %2548 = vmatprep.subr.mxu0 0.0
    %2549 = vmatpush1.msra.mxu0 0.0
    %2550 = vmatprep.subr.mxu0 0.0
    %2551 = vmatpush1.msra.mxu0 0.0
    %2552 = vmatprep.subr.mxu0 0.0
    %2553 = vmatpush1.msra.mxu0 %v47
    %2554 = vmatprep.subr.mxu0 0.0
    %2555 = vmatpush1.msra.mxu0 %v46
    %2556 = vmatprep.subr.mxu0 0.0
    %2557 = vmatpush1.msra.mxu0 %v45
    %2558 = vmatprep.subr.mxu0 0.0
    %2559 = vmatpush1.msra.mxu0 %v44
    %2560 = vmatprep.subr.mxu0 0.0
    %2561 = vmatpush2.msra.mxu0 0.0
    %2562 = vmatprep.subr.mxu0 0.0
    %2563 = vmatpush2.msra.mxu0 0.0
    %2564 = vmatprep.subr.mxu0 0.0
    %2565 = vmatpush2.msra.mxu0 0.0
    %2566 = vmatprep.subr.mxu0 0.0
    %2567 = vmatpush2.msra.mxu0 0.0
    %2568 = vmatprep.subr.mxu0 0.0
    %2569 = vmatpush2.msra.mxu0 0.0
    %2570 = vmatprep.subr.mxu0 0.0
    %2571 = vmatpush2.msra.mxu0 0.0
    %2572 = vmatprep.subr.mxu0 0.0
    %2573 = vmatpush2.msra.mxu0 0.0
    %2574 = vmatprep.subr.mxu0 0.0
    %2575 = vmatpush2.msra.mxu0 0.0
    %2576 = vmatprep.subr.mxu0 0.0
    %2577 = vmatpush2.msra.mxu0 0.0
    %2578 = vmatprep.subr.mxu0 0.0
    %2579 = vmatpush2.msra.mxu0 0.0
    %2580 = vmatprep.subr.mxu0 0.0
    %2581 = vmatpush2.msra.mxu0 0.0
    %2582 = vmatprep.subr.mxu0 0.0
    %2583 = vmatpush2.msra.mxu0 0.0
    %2584 = vmatprep.subr.mxu0 0.0
    %2585 = vmatpush2.msra.mxu0 0.0
    %2586 = vmatprep.subr.mxu0 0.0
    %2587 = vmatpush2.msra.mxu0 0.0
    %2588 = vmatprep.subr.mxu0 0.0
    %2589 = vmatpush2.msra.mxu0 0.0
    %2590 = vmatprep.subr.mxu0 0.0
    %2591 = vmatpush2.msra.mxu0 0.0
    %2592 = vmatprep.mubr.f32.mxu0 0.0
    %2593 = vmatmul.mubr.f32.gmra.mxu0 %v2526
    %v2594 = vpop.f32.mrf.mxu0
    %v2595 = vadd.f32 %v61, %v2594
    %v2596 = vpop.f32.mrf.mxu0
    %2597 = vdwg.mxu0
    %v2598 = vxor.u32 %v2595, 2147483648
    %v2599 = vmul.f32 %v2598, 1.442695
    %v2600 = vpow.pop %v2599
    %v2601 = vadd.f32 %v2600, 1.0
    %v2602 = vrcp.pop %v2601
    %v2603 = vmul.f32 1.0, %v2602
    %v2604 = vtanh.pop %v2595
    %v2605 = vmul.f32 %v2603, %v2329
    %2607 = vrot.lane.b32.xlu0 %v2604, 64
    %v2608 = vpop.permute.xlu0 %2607
    %v2610 = vmul.f32 %v2603, %v2608
    %2612 = vrot.lane.b32.xlu0 %v2610, 32
    %v2613 = vpop.permute.xlu0 %2612
    %v2615 = vadd.f32 %v2605, %v2613
    %v2616 = vtanh.pop %v2615
    %2618 = vrot.lane.b32.xlu0 %v2616, 64
    %v2619 = vpop.permute.xlu0 %2618
    %v2621 = vmul.f32 %v2603, %v2619
    %2623 = vrot.lane.b32.xlu0 %v2621, 32
    %v2624 = vpop.permute.xlu0 %2623
    %2626 = vrot.lane.b32.xlu0 %v2449, 64
    %v2627 = vpop.permute.xlu0 %2626
    %v2629 = vsel %vm255, %v2624, %v2627
    %v2631 = vsel %vm359, %v2629, 0
    %2633 = vmatprep.subr.mxu0 0.0
    %2634 = vmatpush1.msra.mxu0 0.0
    %2635 = vmatprep.subr.mxu0 0.0
    %2636 = vmatpush1.msra.mxu0 0.0
    %2637 = vmatprep.subr.mxu0 0.0
    %2638 = vmatpush1.msra.mxu0 0.0
    %2639 = vmatprep.subr.mxu0 0.0
    %2640 = vmatpush1.msra.mxu0 0.0
    %2641 = vmatprep.subr.mxu0 0.0
    %2642 = vmatpush1.msra.mxu0 0.0
    %2643 = vmatprep.subr.mxu0 0.0
    %2644 = vmatpush1.msra.mxu0 0.0
    %2645 = vmatprep.subr.mxu0 0.0
    %2646 = vmatpush1.msra.mxu0 0.0
    %2647 = vmatprep.subr.mxu0 0.0
    %2648 = vmatpush1.msra.mxu0 0.0
    %2649 = vmatprep.subr.mxu0 0.0
    %2650 = vmatpush1.msra.mxu0 %v55
    %2651 = vmatprep.subr.mxu0 0.0
    %2652 = vmatpush1.msra.mxu0 %v54
    %2653 = vmatprep.subr.mxu0 0.0
    %2654 = vmatpush1.msra.mxu0 %v53
    %2655 = vmatprep.subr.mxu0 0.0
    %2656 = vmatpush1.msra.mxu0 %v52
    %2657 = vmatprep.subr.mxu0 0.0
    %2658 = vmatpush1.msra.mxu0 %v51
    %2659 = vmatprep.subr.mxu0 0.0
    %2660 = vmatpush1.msra.mxu0 %v50
    %2661 = vmatprep.subr.mxu0 0.0
    %2662 = vmatpush1.msra.mxu0 %v49
    %2663 = vmatprep.subr.mxu0 0.0
    %2664 = vmatpush1.msra.mxu0 %v48
    %2665 = vmatprep.subr.mxu0 0.0
    %2666 = vmatpush2.msra.mxu0 0.0
    %2667 = vmatprep.subr.mxu0 0.0
    %2668 = vmatpush2.msra.mxu0 0.0
    %2669 = vmatprep.subr.mxu0 0.0
    %2670 = vmatpush2.msra.mxu0 0.0
    %2671 = vmatprep.subr.mxu0 0.0
    %2672 = vmatpush2.msra.mxu0 0.0
    %2673 = vmatprep.subr.mxu0 0.0
    %2674 = vmatpush2.msra.mxu0 0.0
    %2675 = vmatprep.subr.mxu0 0.0
    %2676 = vmatpush2.msra.mxu0 0.0
    %2677 = vmatprep.subr.mxu0 0.0
    %2678 = vmatpush2.msra.mxu0 0.0
    %2679 = vmatprep.subr.mxu0 0.0
    %2680 = vmatpush2.msra.mxu0 0.0
    %2681 = vmatprep.subr.mxu0 0.0
    %2682 = vmatpush2.msra.mxu0 0.0
    %2683 = vmatprep.subr.mxu0 0.0
    %2684 = vmatpush2.msra.mxu0 0.0
    %2685 = vmatprep.subr.mxu0 0.0
    %2686 = vmatpush2.msra.mxu0 0.0
    %2687 = vmatprep.subr.mxu0 0.0
    %2688 = vmatpush2.msra.mxu0 0.0
    %2689 = vmatprep.subr.mxu0 0.0
    %2690 = vmatpush2.msra.mxu0 0.0
    %2691 = vmatprep.subr.mxu0 0.0
    %2692 = vmatpush2.msra.mxu0 0.0
    %2693 = vmatprep.subr.mxu0 0.0
    %2694 = vmatpush2.msra.mxu0 0.0
    %2695 = vmatprep.subr.mxu0 0.0
    %2696 = vmatpush2.msra.mxu0 0.0
    %2697 = vmatprep.mubr.f32.mxu0 0.0
    %2698 = vmatmul.mubr.f32.gmra.mxu0 %v2631
    %v2699 = vpop.f32.mrf.mxu0
    %v2700 = vadd.f32 0.0, %v2699
    %v2701 = vpop.f32.mrf.mxu0
    %2702 = vdwg.mxu0
    %v2704 = vrot.slane %v2700, 4
    %v2706 = vadd.f32 %v247, %v2704
    %v2707 = vxor.u32 %v2706, 2147483648
    %v2708 = vmul.f32 %v2707, 1.442695
    %v2709 = vpow.pop %v2708
    %v2710 = vadd.f32 %v2709, 1.0
    %v2711 = vrcp.pop %v2710
    %v2712 = vmul.f32 1.0, %v2711
    %v2713 = vtanh.pop %v2706
    %v2715 = vrot.slane %v2441, 6
    %v2717 = vmul.f32 %v2712, %v2715
    %2719 = vrot.lane.b32.xlu0 %v2713, 64
    %v2720 = vpop.permute.xlu0 %2719
    %v2722 = vmul.f32 %v2712, %v2720
    %2724 = vrot.lane.b32.xlu0 %v2722, 32
    %v2725 = vpop.permute.xlu0 %2724
    %v2727 = vadd.f32 %v2717, %v2725
    %v2728 = vtanh.pop %v2727
    %2730 = vrot.lane.b32.xlu0 %v2728, 64
    %v2731 = vpop.permute.xlu0 %2730
    %v2733 = vmul.f32 %v2712, %v2731
    %v2735 = vrot.slane %v2733, 4
    %2736 = vrot.lane.b32.xlu0 %v2735, 32
    %v2737 = vpop.permute.xlu0 %2736
    %v2738 = vsel %vm255, %v2737, 0
    %2740 = vmatprep.subr.mxu0 0.0
    %2741 = vmatpush1.msra.mxu0 0.0
    %2742 = vmatprep.subr.mxu0 0.0
    %2743 = vmatpush1.msra.mxu0 0.0
    %2744 = vmatprep.subr.mxu0 0.0
    %2745 = vmatpush1.msra.mxu0 0.0
    %2746 = vmatprep.subr.mxu0 0.0
    %2747 = vmatpush1.msra.mxu0 0.0
    %2748 = vmatprep.subr.mxu0 0.0
    %2749 = vmatpush1.msra.mxu0 0.0
    %2750 = vmatprep.subr.mxu0 0.0
    %2751 = vmatpush1.msra.mxu0 0.0
    %2752 = vmatprep.subr.mxu0 0.0
    %2753 = vmatpush1.msra.mxu0 0.0
    %2754 = vmatprep.subr.mxu0 0.0
    %2755 = vmatpush1.msra.mxu0 0.0
    %2756 = vmatprep.subr.mxu0 0.0
    %2757 = vmatpush1.msra.mxu0 0.0
    %2758 = vmatprep.subr.mxu0 0.0
    %2759 = vmatpush1.msra.mxu0 0.0
    %2760 = vmatprep.subr.mxu0 0.0
    %2761 = vmatpush1.msra.mxu0 0.0
    %2762 = vmatprep.subr.mxu0 0.0
    %2763 = vmatpush1.msra.mxu0 0.0
    %2764 = vmatprep.subr.mxu0 0.0
    %2765 = vmatpush1.msra.mxu0 %v1947
    %2766 = vmatprep.subr.mxu0 0.0
    %2767 = vmatpush1.msra.mxu0 %v1946
    %2768 = vmatprep.subr.mxu0 0.0
    %2769 = vmatpush1.msra.mxu0 %v1945
    %2770 = vmatprep.subr.mxu0 0.0
    %2771 = vmatpush1.msra.mxu0 %v1944
    %2772 = vmatprep.subr.mxu0 0.0
    %2773 = vmatpush2.msra.mxu0 0.0
    %2774 = vmatprep.subr.mxu0 0.0
    %2775 = vmatpush2.msra.mxu0 0.0
    %2776 = vmatprep.subr.mxu0 0.0
    %2777 = vmatpush2.msra.mxu0 0.0
    %2778 = vmatprep.subr.mxu0 0.0
    %2779 = vmatpush2.msra.mxu0 0.0
    %2780 = vmatprep.subr.mxu0 0.0
    %2781 = vmatpush2.msra.mxu0 0.0
    %2782 = vmatprep.subr.mxu0 0.0
    %2783 = vmatpush2.msra.mxu0 0.0
    %2784 = vmatprep.subr.mxu0 0.0
    %2785 = vmatpush2.msra.mxu0 0.0
    %2786 = vmatprep.subr.mxu0 0.0
    %2787 = vmatpush2.msra.mxu0 0.0
    %2788 = vmatprep.subr.mxu0 0.0
    %2789 = vmatpush2.msra.mxu0 0.0
    %2790 = vmatprep.subr.mxu0 0.0
    %2791 = vmatpush2.msra.mxu0 0.0
    %2792 = vmatprep.subr.mxu0 0.0
    %2793 = vmatpush2.msra.mxu0 0.0
    %2794 = vmatprep.subr.mxu0 0.0
    %2795 = vmatpush2.msra.mxu0 0.0
    %2796 = vmatprep.subr.mxu0 0.0
    %2797 = vmatpush2.msra.mxu0 0.0
    %2798 = vmatprep.subr.mxu0 0.0
    %2799 = vmatpush2.msra.mxu0 0.0
    %2800 = vmatprep.subr.mxu0 0.0
    %2801 = vmatpush2.msra.mxu0 0.0
    %2802 = vmatprep.subr.mxu0 0.0
    %2803 = vmatpush2.msra.mxu0 0.0
    %2804 = vmatprep.mubr.f32.mxu0 0.0
    %2805 = vmatmul.mubr.f32.gmra.mxu0 %v2738
    %v2806 = vpop.f32.mrf.mxu0
    %v2807 = vadd.f32 %v1953, %v2806
    %v2808 = vpop.f32.mrf.mxu0
    %2809 = vdwg.mxu0
    %s2810 = scalar_lea.vmem [#allocation2], 4
    %2811 = vst [vmem:[%s2810] sm:$0x3] %v2807
    %v2812 = vsel %vm255, %v2624, 0
    %2814 = vmatprep.subr.mxu0 0.0
    %2815 = vmatpush1.msra.mxu0 0.0
    %2816 = vmatprep.subr.mxu0 0.0
    %2817 = vmatpush1.msra.mxu0 0.0
    %2818 = vmatprep.subr.mxu0 0.0
    %2819 = vmatpush1.msra.mxu0 0.0
    %2820 = vmatprep.subr.mxu0 0.0
    %2821 = vmatpush1.msra.mxu0 0.0
    %2822 = vmatprep.subr.mxu0 0.0
    %2823 = vmatpush1.msra.mxu0 0.0
    %2824 = vmatprep.subr.mxu0 0.0
    %2825 = vmatpush1.msra.mxu0 0.0
    %2826 = vmatprep.subr.mxu0 0.0
    %2827 = vmatpush1.msra.mxu0 0.0
    %2828 = vmatprep.subr.mxu0 0.0
    %2829 = vmatpush1.msra.mxu0 0.0
    %2830 = vmatprep.subr.mxu0 0.0
    %2831 = vmatpush1.msra.mxu0 0.0
    %2832 = vmatprep.subr.mxu0 0.0
    %2833 = vmatpush1.msra.mxu0 0.0
    %2834 = vmatprep.subr.mxu0 0.0
    %2835 = vmatpush1.msra.mxu0 0.0
    %2836 = vmatprep.subr.mxu0 0.0
    %2837 = vmatpush1.msra.mxu0 0.0
    %2838 = vmatprep.subr.mxu0 0.0
    %2839 = vmatpush1.msra.mxu0 %v47
    %2840 = vmatprep.subr.mxu0 0.0
    %2841 = vmatpush1.msra.mxu0 %v46
    %2842 = vmatprep.subr.mxu0 0.0
    %2843 = vmatpush1.msra.mxu0 %v45
    %2844 = vmatprep.subr.mxu0 0.0
    %2845 = vmatpush1.msra.mxu0 %v44
    %2846 = vmatprep.subr.mxu0 0.0
    %2847 = vmatpush2.msra.mxu0 0.0
    %2848 = vmatprep.subr.mxu0 0.0
    %2849 = vmatpush2.msra.mxu0 0.0
    %2850 = vmatprep.subr.mxu0 0.0
    %2851 = vmatpush2.msra.mxu0 0.0
    %2852 = vmatprep.subr.mxu0 0.0
    %2853 = vmatpush2.msra.mxu0 0.0
    %2854 = vmatprep.subr.mxu0 0.0
    %2855 = vmatpush2.msra.mxu0 0.0
    %2856 = vmatprep.subr.mxu0 0.0
    %2857 = vmatpush2.msra.mxu0 0.0
    %2858 = vmatprep.subr.mxu0 0.0
    %2859 = vmatpush2.msra.mxu0 0.0
    %2860 = vmatprep.subr.mxu0 0.0
    %2861 = vmatpush2.msra.mxu0 0.0
    %2862 = vmatprep.subr.mxu0 0.0
    %2863 = vmatpush2.msra.mxu0 0.0
    %2864 = vmatprep.subr.mxu0 0.0
    %2865 = vmatpush2.msra.mxu0 0.0
    %2866 = vmatprep.subr.mxu0 0.0
    %2867 = vmatpush2.msra.mxu0 0.0
    %2868 = vmatprep.subr.mxu0 0.0
    %2869 = vmatpush2.msra.mxu0 0.0
    %2870 = vmatprep.subr.mxu0 0.0
    %2871 = vmatpush2.msra.mxu0 0.0
    %2872 = vmatprep.subr.mxu0 0.0
    %2873 = vmatpush2.msra.mxu0 0.0
    %2874 = vmatprep.subr.mxu0 0.0
    %2875 = vmatpush2.msra.mxu0 0.0
    %2876 = vmatprep.subr.mxu0 0.0
    %2877 = vmatpush2.msra.mxu0 0.0
    %2878 = vmatprep.mubr.f32.mxu0 0.0
    %2879 = vmatmul.mubr.f32.gmra.mxu0 %v2812
    %v2880 = vpop.f32.mrf.mxu0
    %v2881 = vadd.f32 %v61, %v2880
    %v2882 = vpop.f32.mrf.mxu0
    %2883 = vdwg.mxu0
    %v2884 = vxor.u32 %v2881, 2147483648
    %v2885 = vmul.f32 %v2884, 1.442695
    %v2886 = vpow.pop %v2885
    %v2887 = vadd.f32 %v2886, 1.0
    %v2888 = vrcp.pop %v2887
    %v2889 = vmul.f32 1.0, %v2888
    %v2890 = vtanh.pop %v2881
    %v2891 = vmul.f32 %v2889, %v2615
    %2893 = vrot.lane.b32.xlu0 %v2890, 64
    %v2894 = vpop.permute.xlu0 %2893
    %v2896 = vmul.f32 %v2889, %v2894
    %2898 = vrot.lane.b32.xlu0 %v2896, 32
    %v2899 = vpop.permute.xlu0 %2898
    %v2901 = vadd.f32 %v2891, %v2899
    %v2902 = vtanh.pop %v2901
    %2904 = vrot.lane.b32.xlu0 %v2902, 64
    %v2905 = vpop.permute.xlu0 %2904
    %v2907 = vmul.f32 %v2889, %v2905
    %2909 = vrot.lane.b32.xlu0 %v2907, 32
    %v2910 = vpop.permute.xlu0 %2909
    %2912 = vrot.lane.b32.xlu0 %v2735, 64
    %v2913 = vpop.permute.xlu0 %2912
    %v2915 = vsel %vm255, %v2910, %v2913
    %v2917 = vsel %vm359, %v2915, 0
    %2919 = vmatprep.subr.mxu0 0.0
    %2920 = vmatpush1.msra.mxu0 0.0
    %2921 = vmatprep.subr.mxu0 0.0
    %2922 = vmatpush1.msra.mxu0 0.0
    %2923 = vmatprep.subr.mxu0 0.0
    %2924 = vmatpush1.msra.mxu0 0.0
    %2925 = vmatprep.subr.mxu0 0.0
    %2926 = vmatpush1.msra.mxu0 0.0
    %2927 = vmatprep.subr.mxu0 0.0
    %2928 = vmatpush1.msra.mxu0 0.0
    %2929 = vmatprep.subr.mxu0 0.0
    %2930 = vmatpush1.msra.mxu0 0.0
    %2931 = vmatprep.subr.mxu0 0.0
    %2932 = vmatpush1.msra.mxu0 0.0
    %2933 = vmatprep.subr.mxu0 0.0
    %2934 = vmatpush1.msra.mxu0 0.0
    %2935 = vmatprep.subr.mxu0 0.0
    %2936 = vmatpush1.msra.mxu0 %v55
    %2937 = vmatprep.subr.mxu0 0.0
    %2938 = vmatpush1.msra.mxu0 %v54
    %2939 = vmatprep.subr.mxu0 0.0
    %2940 = vmatpush1.msra.mxu0 %v53
    %2941 = vmatprep.subr.mxu0 0.0
    %2942 = vmatpush1.msra.mxu0 %v52
    %2943 = vmatprep.subr.mxu0 0.0
    %2944 = vmatpush1.msra.mxu0 %v51
    %2945 = vmatprep.subr.mxu0 0.0
    %2946 = vmatpush1.msra.mxu0 %v50
    %2947 = vmatprep.subr.mxu0 0.0
    %2948 = vmatpush1.msra.mxu0 %v49
    %2949 = vmatprep.subr.mxu0 0.0
    %2950 = vmatpush1.msra.mxu0 %v48
    %2951 = vmatprep.subr.mxu0 0.0
    %2952 = vmatpush2.msra.mxu0 0.0
    %2953 = vmatprep.subr.mxu0 0.0
    %2954 = vmatpush2.msra.mxu0 0.0
    %2955 = vmatprep.subr.mxu0 0.0
    %2956 = vmatpush2.msra.mxu0 0.0
    %2957 = vmatprep.subr.mxu0 0.0
    %2958 = vmatpush2.msra.mxu0 0.0
    %2959 = vmatprep.subr.mxu0 0.0
    %2960 = vmatpush2.msra.mxu0 0.0
    %2961 = vmatprep.subr.mxu0 0.0
    %2962 = vmatpush2.msra.mxu0 0.0
    %2963 = vmatprep.subr.mxu0 0.0
    %2964 = vmatpush2.msra.mxu0 0.0
    %2965 = vmatprep.subr.mxu0 0.0
    %2966 = vmatpush2.msra.mxu0 0.0
    %2967 = vmatprep.subr.mxu0 0.0
    %2968 = vmatpush2.msra.mxu0 0.0
    %2969 = vmatprep.subr.mxu0 0.0
    %2970 = vmatpush2.msra.mxu0 0.0
    %2971 = vmatprep.subr.mxu0 0.0
    %2972 = vmatpush2.msra.mxu0 0.0
    %2973 = vmatprep.subr.mxu0 0.0
    %2974 = vmatpush2.msra.mxu0 0.0
    %2975 = vmatprep.subr.mxu0 0.0
    %2976 = vmatpush2.msra.mxu0 0.0
    %2977 = vmatprep.subr.mxu0 0.0
    %2978 = vmatpush2.msra.mxu0 0.0
    %2979 = vmatprep.subr.mxu0 0.0
    %2980 = vmatpush2.msra.mxu0 0.0
    %2981 = vmatprep.subr.mxu0 0.0
    %2982 = vmatpush2.msra.mxu0 0.0
    %2983 = vmatprep.mubr.f32.mxu0 0.0
    %2984 = vmatmul.mubr.f32.gmra.mxu0 %v2917
    %v2985 = vpop.f32.mrf.mxu0
    %v2986 = vadd.f32 0.0, %v2985
    %v2987 = vpop.f32.mrf.mxu0
    %2988 = vdwg.mxu0
    %v2990 = vrot.slane %v2986, 2
    %v2992 = vadd.f32 %v247, %v2990
    %v2993 = vxor.u32 %v2992, 2147483648
    %v2994 = vmul.f32 %v2993, 1.442695
    %v2995 = vpow.pop %v2994
    %v2996 = vadd.f32 %v2995, 1.0
    %v2997 = vrcp.pop %v2996
    %v2998 = vmul.f32 1.0, %v2997
    %v2999 = vtanh.pop %v2992
    %v3001 = vrot.slane %v2727, 6
    %v3003 = vmul.f32 %v2998, %v3001
    %3005 = vrot.lane.b32.xlu0 %v2999, 64
    %v3006 = vpop.permute.xlu0 %3005
    %v3008 = vmul.f32 %v2998, %v3006
    %3010 = vrot.lane.b32.xlu0 %v3008, 32
    %v3011 = vpop.permute.xlu0 %3010
    %v3013 = vadd.f32 %v3003, %v3011
    %v3014 = vtanh.pop %v3013
    %3016 = vrot.lane.b32.xlu0 %v3014, 64
    %v3017 = vpop.permute.xlu0 %3016
    %v3019 = vmul.f32 %v2998, %v3017
    %v3021 = vrot.slane %v3019, 6
    %3022 = vrot.lane.b32.xlu0 %v3021, 32
    %v3023 = vpop.permute.xlu0 %3022
    %v3024 = vsel %vm255, %v3023, 0
    %3026 = vmatprep.subr.mxu0 0.0
    %3027 = vmatpush1.msra.mxu0 0.0
    %3028 = vmatprep.subr.mxu0 0.0
    %3029 = vmatpush1.msra.mxu0 0.0
    %3030 = vmatprep.subr.mxu0 0.0
    %3031 = vmatpush1.msra.mxu0 0.0
    %3032 = vmatprep.subr.mxu0 0.0
    %3033 = vmatpush1.msra.mxu0 0.0
    %3034 = vmatprep.subr.mxu0 0.0
    %3035 = vmatpush1.msra.mxu0 0.0
    %3036 = vmatprep.subr.mxu0 0.0
    %3037 = vmatpush1.msra.mxu0 0.0
    %3038 = vmatprep.subr.mxu0 0.0
    %3039 = vmatpush1.msra.mxu0 0.0
    %3040 = vmatprep.subr.mxu0 0.0
    %3041 = vmatpush1.msra.mxu0 0.0
    %3042 = vmatprep.subr.mxu0 0.0
    %3043 = vmatpush1.msra.mxu0 0.0
    %3044 = vmatprep.subr.mxu0 0.0
    %3045 = vmatpush1.msra.mxu0 0.0
    %3046 = vmatprep.subr.mxu0 0.0
    %3047 = vmatpush1.msra.mxu0 0.0
    %3048 = vmatprep.subr.mxu0 0.0
    %3049 = vmatpush1.msra.mxu0 0.0
    %3050 = vmatprep.subr.mxu0 0.0
    %3051 = vmatpush1.msra.mxu0 %v1947
    %3052 = vmatprep.subr.mxu0 0.0
    %3053 = vmatpush1.msra.mxu0 %v1946
    %3054 = vmatprep.subr.mxu0 0.0
    %3055 = vmatpush1.msra.mxu0 %v1945
    %3056 = vmatprep.subr.mxu0 0.0
    %3057 = vmatpush1.msra.mxu0 %v1944
    %3058 = vmatprep.subr.mxu0 0.0
    %3059 = vmatpush2.msra.mxu0 0.0
    %3060 = vmatprep.subr.mxu0 0.0
    %3061 = vmatpush2.msra.mxu0 0.0
    %3062 = vmatprep.subr.mxu0 0.0
    %3063 = vmatpush2.msra.mxu0 0.0
    %3064 = vmatprep.subr.mxu0 0.0
    %3065 = vmatpush2.msra.mxu0 0.0
    %3066 = vmatprep.subr.mxu0 0.0
    %3067 = vmatpush2.msra.mxu0 0.0
    %3068 = vmatprep.subr.mxu0 0.0
    %3069 = vmatpush2.msra.mxu0 0.0
    %3070 = vmatprep.subr.mxu0 0.0
    %3071 = vmatpush2.msra.mxu0 0.0
    %3072 = vmatprep.subr.mxu0 0.0
    %3073 = vmatpush2.msra.mxu0 0.0
    %3074 = vmatprep.subr.mxu0 0.0
    %3075 = vmatpush2.msra.mxu0 0.0
    %3076 = vmatprep.subr.mxu0 0.0
    %3077 = vmatpush2.msra.mxu0 0.0
    %3078 = vmatprep.subr.mxu0 0.0
    %3079 = vmatpush2.msra.mxu0 0.0
    %3080 = vmatprep.subr.mxu0 0.0
    %3081 = vmatpush2.msra.mxu0 0.0
    %3082 = vmatprep.subr.mxu0 0.0
    %3083 = vmatpush2.msra.mxu0 0.0
    %3084 = vmatprep.subr.mxu0 0.0
    %3085 = vmatpush2.msra.mxu0 0.0
    %3086 = vmatprep.subr.mxu0 0.0
    %3087 = vmatpush2.msra.mxu0 0.0
    %3088 = vmatprep.subr.mxu0 0.0
    %3089 = vmatpush2.msra.mxu0 0.0
    %3090 = vmatprep.mubr.f32.mxu0 0.0
    %3091 = vmatmul.mubr.f32.gmra.mxu0 %v3024
    %v3092 = vpop.f32.mrf.mxu0
    %v3093 = vadd.f32 %v1953, %v3092
    %v3094 = vpop.f32.mrf.mxu0
    %3095 = vdwg.mxu0
    %s3096 = scalar_lea.vmem [#allocation2], 6
    %3097 = vst [vmem:[%s3096] sm:$0x3] %v3093
    %v3098 = vsel %vm255, %v2910, 0
    %3100 = vmatprep.subr.mxu0 0.0
    %3101 = vmatpush1.msra.mxu0 0.0
    %3102 = vmatprep.subr.mxu0 0.0
    %3103 = vmatpush1.msra.mxu0 0.0
    %3104 = vmatprep.subr.mxu0 0.0
    %3105 = vmatpush1.msra.mxu0 0.0
    %3106 = vmatprep.subr.mxu0 0.0
    %3107 = vmatpush1.msra.mxu0 0.0
    %3108 = vmatprep.subr.mxu0 0.0
    %3109 = vmatpush1.msra.mxu0 0.0
    %3110 = vmatprep.subr.mxu0 0.0
    %3111 = vmatpush1.msra.mxu0 0.0
    %3112 = vmatprep.subr.mxu0 0.0
    %3113 = vmatpush1.msra.mxu0 0.0
    %3114 = vmatprep.subr.mxu0 0.0
    %3115 = vmatpush1.msra.mxu0 0.0
    %3116 = vmatprep.subr.mxu0 0.0
    %3117 = vmatpush1.msra.mxu0 0.0
    %3118 = vmatprep.subr.mxu0 0.0
    %3119 = vmatpush1.msra.mxu0 0.0
    %3120 = vmatprep.subr.mxu0 0.0
    %3121 = vmatpush1.msra.mxu0 0.0
    %3122 = vmatprep.subr.mxu0 0.0
    %3123 = vmatpush1.msra.mxu0 0.0
    %3124 = vmatprep.subr.mxu0 0.0
    %3125 = vmatpush1.msra.mxu0 %v47
    %3126 = vmatprep.subr.mxu0 0.0
    %3127 = vmatpush1.msra.mxu0 %v46
    %3128 = vmatprep.subr.mxu0 0.0
    %3129 = vmatpush1.msra.mxu0 %v45
    %3130 = vmatprep.subr.mxu0 0.0
    %3131 = vmatpush1.msra.mxu0 %v44
    %3132 = vmatprep.subr.mxu0 0.0
    %3133 = vmatpush2.msra.mxu0 0.0
    %3134 = vmatprep.subr.mxu0 0.0
    %3135 = vmatpush2.msra.mxu0 0.0
    %3136 = vmatprep.subr.mxu0 0.0
    %3137 = vmatpush2.msra.mxu0 0.0
    %3138 = vmatprep.subr.mxu0 0.0
    %3139 = vmatpush2.msra.mxu0 0.0
    %3140 = vmatprep.subr.mxu0 0.0
    %3141 = vmatpush2.msra.mxu0 0.0
    %3142 = vmatprep.subr.mxu0 0.0
    %3143 = vmatpush2.msra.mxu0 0.0
    %3144 = vmatprep.subr.mxu0 0.0
    %3145 = vmatpush2.msra.mxu0 0.0
    %3146 = vmatprep.subr.mxu0 0.0
    %3147 = vmatpush2.msra.mxu0 0.0
    %3148 = vmatprep.subr.mxu0 0.0
    %3149 = vmatpush2.msra.mxu0 0.0
    %3150 = vmatprep.subr.mxu0 0.0
    %3151 = vmatpush2.msra.mxu0 0.0
    %3152 = vmatprep.subr.mxu0 0.0
    %3153 = vmatpush2.msra.mxu0 0.0
    %3154 = vmatprep.subr.mxu0 0.0
    %3155 = vmatpush2.msra.mxu0 0.0
    %3156 = vmatprep.subr.mxu0 0.0
    %3157 = vmatpush2.msra.mxu0 0.0
    %3158 = vmatprep.subr.mxu0 0.0
    %3159 = vmatpush2.msra.mxu0 0.0
    %3160 = vmatprep.subr.mxu0 0.0
    %3161 = vmatpush2.msra.mxu0 0.0
    %3162 = vmatprep.subr.mxu0 0.0
    %3163 = vmatpush2.msra.mxu0 0.0
    %3164 = vmatprep.mubr.f32.mxu0 0.0
    %3165 = vmatmul.mubr.f32.gmra.mxu0 %v3098
    %v3166 = vpop.f32.mrf.mxu0
    %v3167 = vadd.f32 %v61, %v3166
    %v3168 = vpop.f32.mrf.mxu0
    %3169 = vdwg.mxu0
    %v3170 = vxor.u32 %v3167, 2147483648
    %v3171 = vmul.f32 %v3170, 1.442695
    %v3172 = vpow.pop %v3171
    %v3173 = vadd.f32 %v3172, 1.0
    %v3174 = vrcp.pop %v3173
    %v3175 = vmul.f32 1.0, %v3174
    %v3176 = vtanh.pop %v3167
    %v3177 = vmul.f32 %v3175, %v2901
    %3179 = vrot.lane.b32.xlu0 %v3176, 64
    %v3180 = vpop.permute.xlu0 %3179
    %v3182 = vmul.f32 %v3175, %v3180
    %3184 = vrot.lane.b32.xlu0 %v3182, 32
    %v3185 = vpop.permute.xlu0 %3184
    %v3187 = vadd.f32 %v3177, %v3185
    %v3188 = vtanh.pop %v3187
    %3190 = vrot.lane.b32.xlu0 %v3188, 64
    %v3191 = vpop.permute.xlu0 %3190
    %v3193 = vmul.f32 %v3175, %v3191
    %3195 = vrot.lane.b32.xlu0 %v3193, 32
    %v3196 = vpop.permute.xlu0 %3195
    %3198 = vrot.lane.b32.xlu0 %v3021, 64
    %v3199 = vpop.permute.xlu0 %3198
    %v3201 = vsel %vm255, %v3196, %v3199
    %v3203 = vsel %vm359, %v3201, 0
    %3205 = vmatprep.subr.mxu0 0.0
    %3206 = vmatpush1.msra.mxu0 0.0
    %3207 = vmatprep.subr.mxu0 0.0
    %3208 = vmatpush1.msra.mxu0 0.0
    %3209 = vmatprep.subr.mxu0 0.0
    %3210 = vmatpush1.msra.mxu0 0.0
    %3211 = vmatprep.subr.mxu0 0.0
    %3212 = vmatpush1.msra.mxu0 0.0
    %3213 = vmatprep.subr.mxu0 0.0
    %3214 = vmatpush1.msra.mxu0 0.0
    %3215 = vmatprep.subr.mxu0 0.0
    %3216 = vmatpush1.msra.mxu0 0.0
    %3217 = vmatprep.subr.mxu0 0.0
    %3218 = vmatpush1.msra.mxu0 0.0
    %3219 = vmatprep.subr.mxu0 0.0
    %3220 = vmatpush1.msra.mxu0 0.0
    %3221 = vmatprep.subr.mxu0 0.0
    %3222 = vmatpush1.msra.mxu0 %v55
    %3223 = vmatprep.subr.mxu0 0.0
    %3224 = vmatpush1.msra.mxu0 %v54
    %3225 = vmatprep.subr.mxu0 0.0
    %3226 = vmatpush1.msra.mxu0 %v53
    %3227 = vmatprep.subr.mxu0 0.0
    %3228 = vmatpush1.msra.mxu0 %v52
    %3229 = vmatprep.subr.mxu0 0.0
    %3230 = vmatpush1.msra.mxu0 %v51
    %3231 = vmatprep.subr.mxu0 0.0
    %3232 = vmatpush1.msra.mxu0 %v50
    %3233 = vmatprep.subr.mxu0 0.0
    %3234 = vmatpush1.msra.mxu0 %v49
    %3235 = vmatprep.subr.mxu0 0.0
    %3236 = vmatpush1.msra.mxu0 %v48
    %3237 = vmatprep.subr.mxu0 0.0
    %3238 = vmatpush2.msra.mxu0 0.0
    %3239 = vmatprep.subr.mxu0 0.0
    %3240 = vmatpush2.msra.mxu0 0.0
    %3241 = vmatprep.subr.mxu0 0.0
    %3242 = vmatpush2.msra.mxu0 0.0
    %3243 = vmatprep.subr.mxu0 0.0
    %3244 = vmatpush2.msra.mxu0 0.0
    %3245 = vmatprep.subr.mxu0 0.0
    %3246 = vmatpush2.msra.mxu0 0.0
    %3247 = vmatprep.subr.mxu0 0.0
    %3248 = vmatpush2.msra.mxu0 0.0
    %3249 = vmatprep.subr.mxu0 0.0
    %3250 = vmatpush2.msra.mxu0 0.0
    %3251 = vmatprep.subr.mxu0 0.0
    %3252 = vmatpush2.msra.mxu0 0.0
    %3253 = vmatprep.subr.mxu0 0.0
    %3254 = vmatpush2.msra.mxu0 0.0
    %3255 = vmatprep.subr.mxu0 0.0
    %3256 = vmatpush2.msra.mxu0 0.0
    %3257 = vmatprep.subr.mxu0 0.0
    %3258 = vmatpush2.msra.mxu0 0.0
    %3259 = vmatprep.subr.mxu0 0.0
    %3260 = vmatpush2.msra.mxu0 0.0
    %3261 = vmatprep.subr.mxu0 0.0
    %3262 = vmatpush2.msra.mxu0 0.0
    %3263 = vmatprep.subr.mxu0 0.0
    %3264 = vmatpush2.msra.mxu0 0.0
    %3265 = vmatprep.subr.mxu0 0.0
    %3266 = vmatpush2.msra.mxu0 0.0
    %3267 = vmatprep.subr.mxu0 0.0
    %3268 = vmatpush2.msra.mxu0 0.0
    %3269 = vmatprep.mubr.f32.mxu0 0.0
    %3270 = vmatmul.mubr.f32.gmra.mxu0 %v3203
    %v3271 = vpop.f32.mrf.mxu0
    %v3272 = vadd.f32 0.0, %v3271
    %v3273 = vpop.f32.mrf.mxu0
    %3274 = vdwg.mxu0
    %v3275 = vadd.f32 %v252, %v3272
    %v3276 = vxor.u32 %v3275, 2147483648
    %v3277 = vmul.f32 %v3276, 1.442695
    %v3278 = vpow.pop %v3277
    %v3279 = vadd.f32 %v3278, 1.0
    %v3280 = vrcp.pop %v3279
    %v3281 = vmul.f32 1.0, %v3280
    %v3282 = vtanh.pop %v3275
    %v3284 = vrot.slane %v3013, 6
    %v3286 = vmul.f32 %v3281, %v3284
    %3288 = vrot.lane.b32.xlu0 %v3282, 64
    %v3289 = vpop.permute.xlu0 %3288
    %v3291 = vmul.f32 %v3281, %v3289
    %3293 = vrot.lane.b32.xlu0 %v3291, 32
    %v3294 = vpop.permute.xlu0 %3293
    %v3296 = vadd.f32 %v3286, %v3294
    %v3297 = vtanh.pop %v3296
    %3299 = vrot.lane.b32.xlu0 %v3297, 64
    %v3300 = vpop.permute.xlu0 %3299
    %v3302 = vmul.f32 %v3281, %v3300
    %3304 = vrot.lane.b32.xlu0 %v3302, 32
    %v3305 = vpop.permute.xlu0 %3304
    %v3306 = vsel %vm255, %v3305, 0
    %3308 = vmatprep.subr.mxu0 0.0
    %3309 = vmatpush1.msra.mxu0 0.0
    %3310 = vmatprep.subr.mxu0 0.0
    %3311 = vmatpush1.msra.mxu0 0.0
    %3312 = vmatprep.subr.mxu0 0.0
    %3313 = vmatpush1.msra.mxu0 0.0
    %3314 = vmatprep.subr.mxu0 0.0
    %3315 = vmatpush1.msra.mxu0 0.0
    %3316 = vmatprep.subr.mxu0 0.0
    %3317 = vmatpush1.msra.mxu0 0.0
    %3318 = vmatprep.subr.mxu0 0.0
    %3319 = vmatpush1.msra.mxu0 0.0
    %3320 = vmatprep.subr.mxu0 0.0
    %3321 = vmatpush1.msra.mxu0 0.0
    %3322 = vmatprep.subr.mxu0 0.0
    %3323 = vmatpush1.msra.mxu0 0.0
    %3324 = vmatprep.subr.mxu0 0.0
    %3325 = vmatpush1.msra.mxu0 0.0
    %3326 = vmatprep.subr.mxu0 0.0
    %3327 = vmatpush1.msra.mxu0 0.0
    %3328 = vmatprep.subr.mxu0 0.0
    %3329 = vmatpush1.msra.mxu0 0.0
    %3330 = vmatprep.subr.mxu0 0.0
    %3331 = vmatpush1.msra.mxu0 0.0
    %3332 = vmatprep.subr.mxu0 0.0
    %3333 = vmatpush1.msra.mxu0 %v1947
    %3334 = vmatprep.subr.mxu0 0.0
    %3335 = vmatpush1.msra.mxu0 %v1946
    %3336 = vmatprep.subr.mxu0 0.0
    %3337 = vmatpush1.msra.mxu0 %v1945
    %3338 = vmatprep.subr.mxu0 0.0
    %3339 = vmatpush1.msra.mxu0 %v1944
    %3340 = vmatprep.subr.mxu0 0.0
    %3341 = vmatpush2.msra.mxu0 0.0
    %3342 = vmatprep.subr.mxu0 0.0
    %3343 = vmatpush2.msra.mxu0 0.0
    %3344 = vmatprep.subr.mxu0 0.0
    %3345 = vmatpush2.msra.mxu0 0.0
    %3346 = vmatprep.subr.mxu0 0.0
    %3347 = vmatpush2.msra.mxu0 0.0
    %3348 = vmatprep.subr.mxu0 0.0
    %3349 = vmatpush2.msra.mxu0 0.0
    %3350 = vmatprep.subr.mxu0 0.0
    %3351 = vmatpush2.msra.mxu0 0.0
    %3352 = vmatprep.subr.mxu0 0.0
    %3353 = vmatpush2.msra.mxu0 0.0
    %3354 = vmatprep.subr.mxu0 0.0
    %3355 = vmatpush2.msra.mxu0 0.0
    %3356 = vmatprep.subr.mxu0 0.0
    %3357 = vmatpush2.msra.mxu0 0.0
    %3358 = vmatprep.subr.mxu0 0.0
    %3359 = vmatpush2.msra.mxu0 0.0
    %3360 = vmatprep.subr.mxu0 0.0
    %3361 = vmatpush2.msra.mxu0 0.0
    %3362 = vmatprep.subr.mxu0 0.0
    %3363 = vmatpush2.msra.mxu0 0.0
    %3364 = vmatprep.subr.mxu0 0.0
    %3365 = vmatpush2.msra.mxu0 0.0
    %3366 = vmatprep.subr.mxu0 0.0
    %3367 = vmatpush2.msra.mxu0 0.0
    %3368 = vmatprep.subr.mxu0 0.0
    %3369 = vmatpush2.msra.mxu0 0.0
    %3370 = vmatprep.subr.mxu0 0.0
    %3371 = vmatpush2.msra.mxu0 0.0
    %3372 = vmatprep.mubr.f32.mxu0 0.0
    %3373 = vmatmul.mubr.f32.gmra.mxu0 %v3306
    %v3374 = vpop.f32.mrf.mxu0
    %v3375 = vadd.f32 %v1953, %v3374
    %v3376 = vpop.f32.mrf.mxu0
    %3377 = vdwg.mxu0
    %s3378 = scalar_lea.vmem [#allocation2], 8
    %3379 = vst [vmem:[%s3378] sm:$0x3] %v3375
    %v3380 = vsel %vm255, %v3196, 0
    %3382 = vmatprep.subr.mxu0 0.0
    %3383 = vmatpush1.msra.mxu0 0.0
    %3384 = vmatprep.subr.mxu0 0.0
    %3385 = vmatpush1.msra.mxu0 0.0
    %3386 = vmatprep.subr.mxu0 0.0
    %3387 = vmatpush1.msra.mxu0 0.0
    %3388 = vmatprep.subr.mxu0 0.0
    %3389 = vmatpush1.msra.mxu0 0.0
    %3390 = vmatprep.subr.mxu0 0.0
    %3391 = vmatpush1.msra.mxu0 0.0
    %3392 = vmatprep.subr.mxu0 0.0
    %3393 = vmatpush1.msra.mxu0 0.0
    %3394 = vmatprep.subr.mxu0 0.0
    %3395 = vmatpush1.msra.mxu0 0.0
    %3396 = vmatprep.subr.mxu0 0.0
    %3397 = vmatpush1.msra.mxu0 0.0
    %3398 = vmatprep.subr.mxu0 0.0
    %3399 = vmatpush1.msra.mxu0 0.0
    %3400 = vmatprep.subr.mxu0 0.0
    %3401 = vmatpush1.msra.mxu0 0.0
    %3402 = vmatprep.subr.mxu0 0.0
    %3403 = vmatpush1.msra.mxu0 0.0
    %3404 = vmatprep.subr.mxu0 0.0
    %3405 = vmatpush1.msra.mxu0 0.0
    %3406 = vmatprep.subr.mxu0 0.0
    %3407 = vmatpush1.msra.mxu0 %v47
    %3408 = vmatprep.subr.mxu0 0.0
    %3409 = vmatpush1.msra.mxu0 %v46
    %3410 = vmatprep.subr.mxu0 0.0
    %3411 = vmatpush1.msra.mxu0 %v45
    %3412 = vmatprep.subr.mxu0 0.0
    %3413 = vmatpush1.msra.mxu0 %v44
    %3414 = vmatprep.subr.mxu0 0.0
    %3415 = vmatpush2.msra.mxu0 0.0
    %3416 = vmatprep.subr.mxu0 0.0
    %3417 = vmatpush2.msra.mxu0 0.0
    %3418 = vmatprep.subr.mxu0 0.0
    %3419 = vmatpush2.msra.mxu0 0.0
    %3420 = vmatprep.subr.mxu0 0.0
    %3421 = vmatpush2.msra.mxu0 0.0
    %3422 = vmatprep.subr.mxu0 0.0
    %3423 = vmatpush2.msra.mxu0 0.0
    %3424 = vmatprep.subr.mxu0 0.0
    %3425 = vmatpush2.msra.mxu0 0.0
    %3426 = vmatprep.subr.mxu0 0.0
    %3427 = vmatpush2.msra.mxu0 0.0
    %3428 = vmatprep.subr.mxu0 0.0
    %3429 = vmatpush2.msra.mxu0 0.0
    %3430 = vmatprep.subr.mxu0 0.0
    %3431 = vmatpush2.msra.mxu0 0.0
    %3432 = vmatprep.subr.mxu0 0.0
    %3433 = vmatpush2.msra.mxu0 0.0
    %3434 = vmatprep.subr.mxu0 0.0
    %3435 = vmatpush2.msra.mxu0 0.0
    %3436 = vmatprep.subr.mxu0 0.0
    %3437 = vmatpush2.msra.mxu0 0.0
    %3438 = vmatprep.subr.mxu0 0.0
    %3439 = vmatpush2.msra.mxu0 0.0
    %3440 = vmatprep.subr.mxu0 0.0
    %3441 = vmatpush2.msra.mxu0 0.0
    %3442 = vmatprep.subr.mxu0 0.0
    %3443 = vmatpush2.msra.mxu0 0.0
    %3444 = vmatprep.subr.mxu0 0.0
    %3445 = vmatpush2.msra.mxu0 0.0
    %3446 = vmatprep.mubr.f32.mxu0 0.0
    %3447 = vmatmul.mubr.f32.gmra.mxu0 %v3380
    %v3448 = vpop.f32.mrf.mxu0
    %v3449 = vadd.f32 %v61, %v3448
    %v3450 = vpop.f32.mrf.mxu0
    %3451 = vdwg.mxu0
    %v3452 = vxor.u32 %v3449, 2147483648
    %v3453 = vmul.f32 %v3452, 1.442695
    %v3454 = vpow.pop %v3453
    %v3455 = vadd.f32 %v3454, 1.0
    %v3456 = vrcp.pop %v3455
    %v3457 = vmul.f32 1.0, %v3456
    %v3458 = vtanh.pop %v3449
    %v3459 = vmul.f32 %v3457, %v3187
    %3461 = vrot.lane.b32.xlu0 %v3458, 64
    %v3462 = vpop.permute.xlu0 %3461
    %v3464 = vmul.f32 %v3457, %v3462
    %3466 = vrot.lane.b32.xlu0 %v3464, 32
    %v3467 = vpop.permute.xlu0 %3466
    %v3469 = vadd.f32 %v3459, %v3467
    %v3470 = vtanh.pop %v3469
    %3472 = vrot.lane.b32.xlu0 %v3470, 64
    %v3473 = vpop.permute.xlu0 %3472
    %v3475 = vmul.f32 %v3457, %v3473
    %3477 = vrot.lane.b32.xlu0 %v3475, 32
    %v3478 = vpop.permute.xlu0 %3477
    %3480 = vrot.lane.b32.xlu0 %v3302, 64
    %v3481 = vpop.permute.xlu0 %3480
    %v3483 = vsel %vm255, %v3478, %v3481
    %v3485 = vsel %vm359, %v3483, 0
    %3487 = vmatprep.subr.mxu0 0.0
    %3488 = vmatpush1.msra.mxu0 0.0
    %3489 = vmatprep.subr.mxu0 0.0
    %3490 = vmatpush1.msra.mxu0 0.0
    %3491 = vmatprep.subr.mxu0 0.0
    %3492 = vmatpush1.msra.mxu0 0.0
    %3493 = vmatprep.subr.mxu0 0.0
    %3494 = vmatpush1.msra.mxu0 0.0
    %3495 = vmatprep.subr.mxu0 0.0
    %3496 = vmatpush1.msra.mxu0 0.0
    %3497 = vmatprep.subr.mxu0 0.0
    %3498 = vmatpush1.msra.mxu0 0.0
    %3499 = vmatprep.subr.mxu0 0.0
    %3500 = vmatpush1.msra.mxu0 0.0
    %3501 = vmatprep.subr.mxu0 0.0
    %3502 = vmatpush1.msra.mxu0 0.0
    %3503 = vmatprep.subr.mxu0 0.0
    %3504 = vmatpush1.msra.mxu0 %v55
    %3505 = vmatprep.subr.mxu0 0.0
    %3506 = vmatpush1.msra.mxu0 %v54
    %3507 = vmatprep.subr.mxu0 0.0
    %3508 = vmatpush1.msra.mxu0 %v53
    %3509 = vmatprep.subr.mxu0 0.0
    %3510 = vmatpush1.msra.mxu0 %v52
    %3511 = vmatprep.subr.mxu0 0.0
    %3512 = vmatpush1.msra.mxu0 %v51
    %3513 = vmatprep.subr.mxu0 0.0
    %3514 = vmatpush1.msra.mxu0 %v50
    %3515 = vmatprep.subr.mxu0 0.0
    %3516 = vmatpush1.msra.mxu0 %v49
    %3517 = vmatprep.subr.mxu0 0.0
    %3518 = vmatpush1.msra.mxu0 %v48
    %3519 = vmatprep.subr.mxu0 0.0
    %3520 = vmatpush2.msra.mxu0 0.0
    %3521 = vmatprep.subr.mxu0 0.0
    %3522 = vmatpush2.msra.mxu0 0.0
    %3523 = vmatprep.subr.mxu0 0.0
    %3524 = vmatpush2.msra.mxu0 0.0
    %3525 = vmatprep.subr.mxu0 0.0
    %3526 = vmatpush2.msra.mxu0 0.0
    %3527 = vmatprep.subr.mxu0 0.0
    %3528 = vmatpush2.msra.mxu0 0.0
    %3529 = vmatprep.subr.mxu0 0.0
    %3530 = vmatpush2.msra.mxu0 0.0
    %3531 = vmatprep.subr.mxu0 0.0
    %3532 = vmatpush2.msra.mxu0 0.0
    %3533 = vmatprep.subr.mxu0 0.0
    %3534 = vmatpush2.msra.mxu0 0.0
    %3535 = vmatprep.subr.mxu0 0.0
    %3536 = vmatpush2.msra.mxu0 0.0
    %3537 = vmatprep.subr.mxu0 0.0
    %3538 = vmatpush2.msra.mxu0 0.0
    %3539 = vmatprep.subr.mxu0 0.0
    %3540 = vmatpush2.msra.mxu0 0.0
    %3541 = vmatprep.subr.mxu0 0.0
    %3542 = vmatpush2.msra.mxu0 0.0
    %3543 = vmatprep.subr.mxu0 0.0
    %3544 = vmatpush2.msra.mxu0 0.0
    %3545 = vmatprep.subr.mxu0 0.0
    %3546 = vmatpush2.msra.mxu0 0.0
    %3547 = vmatprep.subr.mxu0 0.0
    %3548 = vmatpush2.msra.mxu0 0.0
    %3549 = vmatprep.subr.mxu0 0.0
    %3550 = vmatpush2.msra.mxu0 0.0
    %3551 = vmatprep.mubr.f32.mxu0 0.0
    %3552 = vmatmul.mubr.f32.gmra.mxu0 %v3485
    %v3553 = vpop.f32.mrf.mxu0
    %v3554 = vadd.f32 0.0, %v3553
    %v3555 = vpop.f32.mrf.mxu0
    %3556 = vdwg.mxu0
    %v3558 = vrot.slane %v3554, 6
    %v3560 = vadd.f32 %v252, %v3558
    %v3561 = vxor.u32 %v3560, 2147483648
    %v3562 = vmul.f32 %v3561, 1.442695
    %v3563 = vpow.pop %v3562
    %v3564 = vadd.f32 %v3563, 1.0
    %v3565 = vrcp.pop %v3564
    %v3566 = vmul.f32 1.0, %v3565
    %v3567 = vtanh.pop %v3560
    %v3569 = vrot.slane %v3296, 6
    %v3571 = vmul.f32 %v3566, %v3569
    %3573 = vrot.lane.b32.xlu0 %v3567, 64
    %v3574 = vpop.permute.xlu0 %3573
    %v3576 = vmul.f32 %v3566, %v3574
    %3578 = vrot.lane.b32.xlu0 %v3576, 32
    %v3579 = vpop.permute.xlu0 %3578
    %v3581 = vadd.f32 %v3571, %v3579
    %v3582 = vtanh.pop %v3581
    %3584 = vrot.lane.b32.xlu0 %v3582, 64
    %v3585 = vpop.permute.xlu0 %3584
    %v3587 = vmul.f32 %v3566, %v3585
    %v3589 = vrot.slane %v3587, 2
    %3590 = vrot.lane.b32.xlu0 %v3589, 32
    %v3591 = vpop.permute.xlu0 %3590
    %v3592 = vsel %vm255, %v3591, 0
    %3594 = vmatprep.subr.mxu0 0.0
    %3595 = vmatpush1.msra.mxu0 0.0
    %3596 = vmatprep.subr.mxu0 0.0
    %3597 = vmatpush1.msra.mxu0 0.0
    %3598 = vmatprep.subr.mxu0 0.0
    %3599 = vmatpush1.msra.mxu0 0.0
    %3600 = vmatprep.subr.mxu0 0.0
    %3601 = vmatpush1.msra.mxu0 0.0
    %3602 = vmatprep.subr.mxu0 0.0
    %3603 = vmatpush1.msra.mxu0 0.0
    %3604 = vmatprep.subr.mxu0 0.0
    %3605 = vmatpush1.msra.mxu0 0.0
    %3606 = vmatprep.subr.mxu0 0.0
    %3607 = vmatpush1.msra.mxu0 0.0
    %3608 = vmatprep.subr.mxu0 0.0
    %3609 = vmatpush1.msra.mxu0 0.0
    %3610 = vmatprep.subr.mxu0 0.0
    %3611 = vmatpush1.msra.mxu0 0.0
    %3612 = vmatprep.subr.mxu0 0.0
    %3613 = vmatpush1.msra.mxu0 0.0
    %3614 = vmatprep.subr.mxu0 0.0
    %3615 = vmatpush1.msra.mxu0 0.0
    %3616 = vmatprep.subr.mxu0 0.0
    %3617 = vmatpush1.msra.mxu0 0.0
    %3618 = vmatprep.subr.mxu0 0.0
    %3619 = vmatpush1.msra.mxu0 %v1947
    %3620 = vmatprep.subr.mxu0 0.0
    %3621 = vmatpush1.msra.mxu0 %v1946
    %3622 = vmatprep.subr.mxu0 0.0
    %3623 = vmatpush1.msra.mxu0 %v1945
    %3624 = vmatprep.subr.mxu0 0.0
    %3625 = vmatpush1.msra.mxu0 %v1944
    %3626 = vmatprep.subr.mxu0 0.0
    %3627 = vmatpush2.msra.mxu0 0.0
    %3628 = vmatprep.subr.mxu0 0.0
    %3629 = vmatpush2.msra.mxu0 0.0
    %3630 = vmatprep.subr.mxu0 0.0
    %3631 = vmatpush2.msra.mxu0 0.0
    %3632 = vmatprep.subr.mxu0 0.0
    %3633 = vmatpush2.msra.mxu0 0.0
    %3634 = vmatprep.subr.mxu0 0.0
    %3635 = vmatpush2.msra.mxu0 0.0
    %3636 = vmatprep.subr.mxu0 0.0
    %3637 = vmatpush2.msra.mxu0 0.0
    %3638 = vmatprep.subr.mxu0 0.0
    %3639 = vmatpush2.msra.mxu0 0.0
    %3640 = vmatprep.subr.mxu0 0.0
    %3641 = vmatpush2.msra.mxu0 0.0
    %3642 = vmatprep.subr.mxu0 0.0
    %3643 = vmatpush2.msra.mxu0 0.0
    %3644 = vmatprep.subr.mxu0 0.0
    %3645 = vmatpush2.msra.mxu0 0.0
    %3646 = vmatprep.subr.mxu0 0.0
    %3647 = vmatpush2.msra.mxu0 0.0
    %3648 = vmatprep.subr.mxu0 0.0
    %3649 = vmatpush2.msra.mxu0 0.0
    %3650 = vmatprep.subr.mxu0 0.0
    %3651 = vmatpush2.msra.mxu0 0.0
    %3652 = vmatprep.subr.mxu0 0.0
    %3653 = vmatpush2.msra.mxu0 0.0
    %3654 = vmatprep.subr.mxu0 0.0
    %3655 = vmatpush2.msra.mxu0 0.0
    %3656 = vmatprep.subr.mxu0 0.0
    %3657 = vmatpush2.msra.mxu0 0.0
    %3658 = vmatprep.mubr.f32.mxu0 0.0
    %3659 = vmatmul.mubr.f32.gmra.mxu0 %v3592
    %v3660 = vpop.f32.mrf.mxu0
    %v3661 = vadd.f32 %v1953, %v3660
    %v3662 = vpop.f32.mrf.mxu0
    %3663 = vdwg.mxu0
    %s3664 = scalar_lea.vmem [#allocation2], 10
    %3665 = vst [vmem:[%s3664] sm:$0x3] %v3661
    %v3666 = vsel %vm255, %v3478, 0
    %3668 = vmatprep.subr.mxu0 0.0
    %3669 = vmatpush1.msra.mxu0 0.0
    %3670 = vmatprep.subr.mxu0 0.0
    %3671 = vmatpush1.msra.mxu0 0.0
    %3672 = vmatprep.subr.mxu0 0.0
    %3673 = vmatpush1.msra.mxu0 0.0
    %3674 = vmatprep.subr.mxu0 0.0
    %3675 = vmatpush1.msra.mxu0 0.0
    %3676 = vmatprep.subr.mxu0 0.0
    %3677 = vmatpush1.msra.mxu0 0.0
    %3678 = vmatprep.subr.mxu0 0.0
    %3679 = vmatpush1.msra.mxu0 0.0
    %3680 = vmatprep.subr.mxu0 0.0
    %3681 = vmatpush1.msra.mxu0 0.0
    %3682 = vmatprep.subr.mxu0 0.0
    %3683 = vmatpush1.msra.mxu0 0.0
    %3684 = vmatprep.subr.mxu0 0.0
    %3685 = vmatpush1.msra.mxu0 0.0
    %3686 = vmatprep.subr.mxu0 0.0
    %3687 = vmatpush1.msra.mxu0 0.0
    %3688 = vmatprep.subr.mxu0 0.0
    %3689 = vmatpush1.msra.mxu0 0.0
    %3690 = vmatprep.subr.mxu0 0.0
    %3691 = vmatpush1.msra.mxu0 0.0
    %3692 = vmatprep.subr.mxu0 0.0
    %3693 = vmatpush1.msra.mxu0 %v47
    %3694 = vmatprep.subr.mxu0 0.0
    %3695 = vmatpush1.msra.mxu0 %v46
    %3696 = vmatprep.subr.mxu0 0.0
    %3697 = vmatpush1.msra.mxu0 %v45
    %3698 = vmatprep.subr.mxu0 0.0
    %3699 = vmatpush1.msra.mxu0 %v44
    %3700 = vmatprep.subr.mxu0 0.0
    %3701 = vmatpush2.msra.mxu0 0.0
    %3702 = vmatprep.subr.mxu0 0.0
    %3703 = vmatpush2.msra.mxu0 0.0
    %3704 = vmatprep.subr.mxu0 0.0
    %3705 = vmatpush2.msra.mxu0 0.0
    %3706 = vmatprep.subr.mxu0 0.0
    %3707 = vmatpush2.msra.mxu0 0.0
    %3708 = vmatprep.subr.mxu0 0.0
    %3709 = vmatpush2.msra.mxu0 0.0
    %3710 = vmatprep.subr.mxu0 0.0
    %3711 = vmatpush2.msra.mxu0 0.0
    %3712 = vmatprep.subr.mxu0 0.0
    %3713 = vmatpush2.msra.mxu0 0.0
    %3714 = vmatprep.subr.mxu0 0.0
    %3715 = vmatpush2.msra.mxu0 0.0
    %3716 = vmatprep.subr.mxu0 0.0
    %3717 = vmatpush2.msra.mxu0 0.0
    %3718 = vmatprep.subr.mxu0 0.0
    %3719 = vmatpush2.msra.mxu0 0.0
    %3720 = vmatprep.subr.mxu0 0.0
    %3721 = vmatpush2.msra.mxu0 0.0
    %3722 = vmatprep.subr.mxu0 0.0
    %3723 = vmatpush2.msra.mxu0 0.0
    %3724 = vmatprep.subr.mxu0 0.0
    %3725 = vmatpush2.msra.mxu0 0.0
    %3726 = vmatprep.subr.mxu0 0.0
    %3727 = vmatpush2.msra.mxu0 0.0
    %3728 = vmatprep.subr.mxu0 0.0
    %3729 = vmatpush2.msra.mxu0 0.0
    %3730 = vmatprep.subr.mxu0 0.0
    %3731 = vmatpush2.msra.mxu0 0.0
    %3732 = vmatprep.mubr.f32.mxu0 0.0
    %3733 = vmatmul.mubr.f32.gmra.mxu0 %v3666
    %v3734 = vpop.f32.mrf.mxu0
    %v3735 = vadd.f32 %v61, %v3734
    %v3736 = vpop.f32.mrf.mxu0
    %3737 = vdwg.mxu0
    %v3738 = vxor.u32 %v3735, 2147483648
    %v3739 = vmul.f32 %v3738, 1.442695
    %v3740 = vpow.pop %v3739
    %v3741 = vadd.f32 %v3740, 1.0
    %v3742 = vrcp.pop %v3741
    %v3743 = vmul.f32 1.0, %v3742
    %v3744 = vtanh.pop %v3735
    %v3745 = vmul.f32 %v3743, %v3469
    %3747 = vrot.lane.b32.xlu0 %v3744, 64
    %v3748 = vpop.permute.xlu0 %3747
    %v3750 = vmul.f32 %v3743, %v3748
    %3752 = vrot.lane.b32.xlu0 %v3750, 32
    %v3753 = vpop.permute.xlu0 %3752
    %v3755 = vadd.f32 %v3745, %v3753
    %v3756 = vtanh.pop %v3755
    %3758 = vrot.lane.b32.xlu0 %v3756, 64
    %v3759 = vpop.permute.xlu0 %3758
    %v3761 = vmul.f32 %v3743, %v3759
    %3763 = vrot.lane.b32.xlu0 %v3761, 32
    %v3764 = vpop.permute.xlu0 %3763
    %3766 = vrot.lane.b32.xlu0 %v3589, 64
    %v3767 = vpop.permute.xlu0 %3766
    %v3769 = vsel %vm255, %v3764, %v3767
    %v3771 = vsel %vm359, %v3769, 0
    %3773 = vmatprep.subr.mxu0 0.0
    %3774 = vmatpush1.msra.mxu0 0.0
    %3775 = vmatprep.subr.mxu0 0.0
    %3776 = vmatpush1.msra.mxu0 0.0
    %3777 = vmatprep.subr.mxu0 0.0
    %3778 = vmatpush1.msra.mxu0 0.0
    %3779 = vmatprep.subr.mxu0 0.0
    %3780 = vmatpush1.msra.mxu0 0.0
    %3781 = vmatprep.subr.mxu0 0.0
    %3782 = vmatpush1.msra.mxu0 0.0
    %3783 = vmatprep.subr.mxu0 0.0
    %3784 = vmatpush1.msra.mxu0 0.0
    %3785 = vmatprep.subr.mxu0 0.0
    %3786 = vmatpush1.msra.mxu0 0.0
    %3787 = vmatprep.subr.mxu0 0.0
    %3788 = vmatpush1.msra.mxu0 0.0
    %3789 = vmatprep.subr.mxu0 0.0
    %3790 = vmatpush1.msra.mxu0 %v55
    %3791 = vmatprep.subr.mxu0 0.0
    %3792 = vmatpush1.msra.mxu0 %v54
    %3793 = vmatprep.subr.mxu0 0.0
    %3794 = vmatpush1.msra.mxu0 %v53
    %3795 = vmatprep.subr.mxu0 0.0
    %3796 = vmatpush1.msra.mxu0 %v52
    %3797 = vmatprep.subr.mxu0 0.0
    %3798 = vmatpush1.msra.mxu0 %v51
    %3799 = vmatprep.subr.mxu0 0.0
    %3800 = vmatpush1.msra.mxu0 %v50
    %3801 = vmatprep.subr.mxu0 0.0
    %3802 = vmatpush1.msra.mxu0 %v49
    %3803 = vmatprep.subr.mxu0 0.0
    %3804 = vmatpush1.msra.mxu0 %v48
    %3805 = vmatprep.subr.mxu0 0.0
    %3806 = vmatpush2.msra.mxu0 0.0
    %3807 = vmatprep.subr.mxu0 0.0
    %3808 = vmatpush2.msra.mxu0 0.0
    %3809 = vmatprep.subr.mxu0 0.0
    %3810 = vmatpush2.msra.mxu0 0.0
    %3811 = vmatprep.subr.mxu0 0.0
    %3812 = vmatpush2.msra.mxu0 0.0
    %3813 = vmatprep.subr.mxu0 0.0
    %3814 = vmatpush2.msra.mxu0 0.0
    %3815 = vmatprep.subr.mxu0 0.0
    %3816 = vmatpush2.msra.mxu0 0.0
    %3817 = vmatprep.subr.mxu0 0.0
    %3818 = vmatpush2.msra.mxu0 0.0
    %3819 = vmatprep.subr.mxu0 0.0
    %3820 = vmatpush2.msra.mxu0 0.0
    %3821 = vmatprep.subr.mxu0 0.0
    %3822 = vmatpush2.msra.mxu0 0.0
    %3823 = vmatprep.subr.mxu0 0.0
    %3824 = vmatpush2.msra.mxu0 0.0
    %3825 = vmatprep.subr.mxu0 0.0
    %3826 = vmatpush2.msra.mxu0 0.0
    %3827 = vmatprep.subr.mxu0 0.0
    %3828 = vmatpush2.msra.mxu0 0.0
    %3829 = vmatprep.subr.mxu0 0.0
    %3830 = vmatpush2.msra.mxu0 0.0
    %3831 = vmatprep.subr.mxu0 0.0
    %3832 = vmatpush2.msra.mxu0 0.0
    %3833 = vmatprep.subr.mxu0 0.0
    %3834 = vmatpush2.msra.mxu0 0.0
    %3835 = vmatprep.subr.mxu0 0.0
    %3836 = vmatpush2.msra.mxu0 0.0
    %3837 = vmatprep.mubr.f32.mxu0 0.0
    %3838 = vmatmul.mubr.f32.gmra.mxu0 %v3771
    %v3839 = vpop.f32.mrf.mxu0
    %v3840 = vadd.f32 0.0, %v3839
    %v3841 = vpop.f32.mrf.mxu0
    %3842 = vdwg.mxu0
    %v3844 = vrot.slane %v3840, 4
    %v3846 = vadd.f32 %v252, %v3844
    %v3847 = vxor.u32 %v3846, 2147483648
    %v3848 = vmul.f32 %v3847, 1.442695
    %v3849 = vpow.pop %v3848
    %v3850 = vadd.f32 %v3849, 1.0
    %v3851 = vrcp.pop %v3850
    %v3852 = vmul.f32 1.0, %v3851
    %v3853 = vtanh.pop %v3846
    %v3855 = vrot.slane %v3581, 6
    %v3857 = vmul.f32 %v3852, %v3855
    %3859 = vrot.lane.b32.xlu0 %v3853, 64
    %v3860 = vpop.permute.xlu0 %3859
    %v3862 = vmul.f32 %v3852, %v3860
    %3864 = vrot.lane.b32.xlu0 %v3862, 32
    %v3865 = vpop.permute.xlu0 %3864
    %v3867 = vadd.f32 %v3857, %v3865
    %v3868 = vtanh.pop %v3867
    %3870 = vrot.lane.b32.xlu0 %v3868, 64
    %v3871 = vpop.permute.xlu0 %3870
    %v3873 = vmul.f32 %v3852, %v3871
    %v3875 = vrot.slane %v3873, 4
    %3876 = vrot.lane.b32.xlu0 %v3875, 32
    %v3877 = vpop.permute.xlu0 %3876
    %v3878 = vsel %vm255, %v3877, 0
    %3880 = vmatprep.subr.mxu0 0.0
    %3881 = vmatpush1.msra.mxu0 0.0
    %3882 = vmatprep.subr.mxu0 0.0
    %3883 = vmatpush1.msra.mxu0 0.0
    %3884 = vmatprep.subr.mxu0 0.0
    %3885 = vmatpush1.msra.mxu0 0.0
    %3886 = vmatprep.subr.mxu0 0.0
    %3887 = vmatpush1.msra.mxu0 0.0
    %3888 = vmatprep.subr.mxu0 0.0
    %3889 = vmatpush1.msra.mxu0 0.0
    %3890 = vmatprep.subr.mxu0 0.0
    %3891 = vmatpush1.msra.mxu0 0.0
    %3892 = vmatprep.subr.mxu0 0.0
    %3893 = vmatpush1.msra.mxu0 0.0
    %3894 = vmatprep.subr.mxu0 0.0
    %3895 = vmatpush1.msra.mxu0 0.0
    %3896 = vmatprep.subr.mxu0 0.0
    %3897 = vmatpush1.msra.mxu0 0.0
    %3898 = vmatprep.subr.mxu0 0.0
    %3899 = vmatpush1.msra.mxu0 0.0
    %3900 = vmatprep.subr.mxu0 0.0
    %3901 = vmatpush1.msra.mxu0 0.0
    %3902 = vmatprep.subr.mxu0 0.0
    %3903 = vmatpush1.msra.mxu0 0.0
    %3904 = vmatprep.subr.mxu0 0.0
    %3905 = vmatpush1.msra.mxu0 %v1947
    %3906 = vmatprep.subr.mxu0 0.0
    %3907 = vmatpush1.msra.mxu0 %v1946
    %3908 = vmatprep.subr.mxu0 0.0
    %3909 = vmatpush1.msra.mxu0 %v1945
    %3910 = vmatprep.subr.mxu0 0.0
    %3911 = vmatpush1.msra.mxu0 %v1944
    %3912 = vmatprep.subr.mxu0 0.0
    %3913 = vmatpush2.msra.mxu0 0.0
    %3914 = vmatprep.subr.mxu0 0.0
    %3915 = vmatpush2.msra.mxu0 0.0
    %3916 = vmatprep.subr.mxu0 0.0
    %3917 = vmatpush2.msra.mxu0 0.0
    %3918 = vmatprep.subr.mxu0 0.0
    %3919 = vmatpush2.msra.mxu0 0.0
    %3920 = vmatprep.subr.mxu0 0.0
    %3921 = vmatpush2.msra.mxu0 0.0
    %3922 = vmatprep.subr.mxu0 0.0
    %3923 = vmatpush2.msra.mxu0 0.0
    %3924 = vmatprep.subr.mxu0 0.0
    %3925 = vmatpush2.msra.mxu0 0.0
    %3926 = vmatprep.subr.mxu0 0.0
    %3927 = vmatpush2.msra.mxu0 0.0
    %3928 = vmatprep.subr.mxu0 0.0
    %3929 = vmatpush2.msra.mxu0 0.0
    %3930 = vmatprep.subr.mxu0 0.0
    %3931 = vmatpush2.msra.mxu0 0.0
    %3932 = vmatprep.subr.mxu0 0.0
    %3933 = vmatpush2.msra.mxu0 0.0
    %3934 = vmatprep.subr.mxu0 0.0
    %3935 = vmatpush2.msra.mxu0 0.0
    %3936 = vmatprep.subr.mxu0 0.0
    %3937 = vmatpush2.msra.mxu0 0.0
    %3938 = vmatprep.subr.mxu0 0.0
    %3939 = vmatpush2.msra.mxu0 0.0
    %3940 = vmatprep.subr.mxu0 0.0
    %3941 = vmatpush2.msra.mxu0 0.0
    %3942 = vmatprep.subr.mxu0 0.0
    %3943 = vmatpush2.msra.mxu0 0.0
    %3944 = vmatprep.mubr.f32.mxu0 0.0
    %3945 = vmatmul.mubr.f32.gmra.mxu0 %v3878
    %v3946 = vpop.f32.mrf.mxu0
    %v3947 = vadd.f32 %v1953, %v3946
    %v3948 = vpop.f32.mrf.mxu0
    %3949 = vdwg.mxu0
    %s3950 = scalar_lea.vmem [#allocation2], 12
    %3951 = vst [vmem:[%s3950] sm:$0x3] %v3947
    %v3952 = vsel %vm255, %v3764, 0
    %3954 = vmatprep.subr.mxu0 0.0
    %3955 = vmatpush1.msra.mxu0 0.0
    %3956 = vmatprep.subr.mxu0 0.0
    %3957 = vmatpush1.msra.mxu0 0.0
    %3958 = vmatprep.subr.mxu0 0.0
    %3959 = vmatpush1.msra.mxu0 0.0
    %3960 = vmatprep.subr.mxu0 0.0
    %3961 = vmatpush1.msra.mxu0 0.0
    %3962 = vmatprep.subr.mxu0 0.0
    %3963 = vmatpush1.msra.mxu0 0.0
    %3964 = vmatprep.subr.mxu0 0.0
    %3965 = vmatpush1.msra.mxu0 0.0
    %3966 = vmatprep.subr.mxu0 0.0
    %3967 = vmatpush1.msra.mxu0 0.0
    %3968 = vmatprep.subr.mxu0 0.0
    %3969 = vmatpush1.msra.mxu0 0.0
    %3970 = vmatprep.subr.mxu0 0.0
    %3971 = vmatpush1.msra.mxu0 0.0
    %3972 = vmatprep.subr.mxu0 0.0
    %3973 = vmatpush1.msra.mxu0 0.0
    %3974 = vmatprep.subr.mxu0 0.0
    %3975 = vmatpush1.msra.mxu0 0.0
    %3976 = vmatprep.subr.mxu0 0.0
    %3977 = vmatpush1.msra.mxu0 0.0
    %3978 = vmatprep.subr.mxu0 0.0
    %3979 = vmatpush1.msra.mxu0 %v47
    %3980 = vmatprep.subr.mxu0 0.0
    %3981 = vmatpush1.msra.mxu0 %v46
    %3982 = vmatprep.subr.mxu0 0.0
    %3983 = vmatpush1.msra.mxu0 %v45
    %3984 = vmatprep.subr.mxu0 0.0
    %3985 = vmatpush1.msra.mxu0 %v44
    %3986 = vmatprep.subr.mxu0 0.0
    %3987 = vmatpush2.msra.mxu0 0.0
    %3988 = vmatprep.subr.mxu0 0.0
    %3989 = vmatpush2.msra.mxu0 0.0
    %3990 = vmatprep.subr.mxu0 0.0
    %3991 = vmatpush2.msra.mxu0 0.0
    %3992 = vmatprep.subr.mxu0 0.0
    %3993 = vmatpush2.msra.mxu0 0.0
    %3994 = vmatprep.subr.mxu0 0.0
    %3995 = vmatpush2.msra.mxu0 0.0
    %3996 = vmatprep.subr.mxu0 0.0
    %3997 = vmatpush2.msra.mxu0 0.0
    %3998 = vmatprep.subr.mxu0 0.0
    %3999 = vmatpush2.msra.mxu0 0.0
    %4000 = vmatprep.subr.mxu0 0.0
    %4001 = vmatpush2.msra.mxu0 0.0
    %4002 = vmatprep.subr.mxu0 0.0
    %4003 = vmatpush2.msra.mxu0 0.0
    %4004 = vmatprep.subr.mxu0 0.0
    %4005 = vmatpush2.msra.mxu0 0.0
    %4006 = vmatprep.subr.mxu0 0.0
    %4007 = vmatpush2.msra.mxu0 0.0
    %4008 = vmatprep.subr.mxu0 0.0
    %4009 = vmatpush2.msra.mxu0 0.0
    %4010 = vmatprep.subr.mxu0 0.0
    %4011 = vmatpush2.msra.mxu0 0.0
    %4012 = vmatprep.subr.mxu0 0.0
    %4013 = vmatpush2.msra.mxu0 0.0
    %4014 = vmatprep.subr.mxu0 0.0
    %4015 = vmatpush2.msra.mxu0 0.0
    %4016 = vmatprep.subr.mxu0 0.0
    %4017 = vmatpush2.msra.mxu0 0.0
    %4018 = vmatprep.mubr.f32.mxu0 0.0
    %4019 = vmatmul.mubr.f32.gmra.mxu0 %v3952
    %v4020 = vpop.f32.mrf.mxu0
    %v4021 = vadd.f32 %v61, %v4020
    %v4022 = vpop.f32.mrf.mxu0
    %4023 = vdwg.mxu0
    %v4024 = vxor.u32 %v4021, 2147483648
    %v4025 = vmul.f32 %v4024, 1.442695
    %v4026 = vpow.pop %v4025
    %v4027 = vadd.f32 %v4026, 1.0
    %v4028 = vrcp.pop %v4027
    %v4029 = vmul.f32 1.0, %v4028
    %v4030 = vtanh.pop %v4021
    %v4031 = vmul.f32 %v4029, %v3755
    %4033 = vrot.lane.b32.xlu0 %v4030, 64
    %v4034 = vpop.permute.xlu0 %4033
    %v4036 = vmul.f32 %v4029, %v4034
    %4038 = vrot.lane.b32.xlu0 %v4036, 32
    %v4039 = vpop.permute.xlu0 %4038
    %v4041 = vadd.f32 %v4031, %v4039
    %v4042 = vtanh.pop %v4041
    %4044 = vrot.lane.b32.xlu0 %v4042, 64
    %v4045 = vpop.permute.xlu0 %4044
    %v4047 = vmul.f32 %v4029, %v4045
    %4049 = vrot.lane.b32.xlu0 %v4047, 32
    %v4050 = vpop.permute.xlu0 %4049
    %4052 = vrot.lane.b32.xlu0 %v3875, 64
    %v4053 = vpop.permute.xlu0 %4052
    %v4055 = vsel %vm255, %v4050, %v4053
    %v4057 = vsel %vm359, %v4055, 0
    %4059 = vmatprep.subr.mxu0 0.0
    %4060 = vmatpush1.msra.mxu0 0.0
    %4061 = vmatprep.subr.mxu0 0.0
    %4062 = vmatpush1.msra.mxu0 0.0
    %4063 = vmatprep.subr.mxu0 0.0
    %4064 = vmatpush1.msra.mxu0 0.0
    %4065 = vmatprep.subr.mxu0 0.0
    %4066 = vmatpush1.msra.mxu0 0.0
    %4067 = vmatprep.subr.mxu0 0.0
    %4068 = vmatpush1.msra.mxu0 0.0
    %4069 = vmatprep.subr.mxu0 0.0
    %4070 = vmatpush1.msra.mxu0 0.0
    %4071 = vmatprep.subr.mxu0 0.0
    %4072 = vmatpush1.msra.mxu0 0.0
    %4073 = vmatprep.subr.mxu0 0.0
    %4074 = vmatpush1.msra.mxu0 0.0
    %4075 = vmatprep.subr.mxu0 0.0
    %4076 = vmatpush1.msra.mxu0 %v55
    %4077 = vmatprep.subr.mxu0 0.0
    %4078 = vmatpush1.msra.mxu0 %v54
    %4079 = vmatprep.subr.mxu0 0.0
    %4080 = vmatpush1.msra.mxu0 %v53
    %4081 = vmatprep.subr.mxu0 0.0
    %4082 = vmatpush1.msra.mxu0 %v52
    %4083 = vmatprep.subr.mxu0 0.0
    %4084 = vmatpush1.msra.mxu0 %v51
    %4085 = vmatprep.subr.mxu0 0.0
    %4086 = vmatpush1.msra.mxu0 %v50
    %4087 = vmatprep.subr.mxu0 0.0
    %4088 = vmatpush1.msra.mxu0 %v49
    %4089 = vmatprep.subr.mxu0 0.0
    %4090 = vmatpush1.msra.mxu0 %v48
    %4091 = vmatprep.subr.mxu0 0.0
    %4092 = vmatpush2.msra.mxu0 0.0
    %4093 = vmatprep.subr.mxu0 0.0
    %4094 = vmatpush2.msra.mxu0 0.0
    %4095 = vmatprep.subr.mxu0 0.0
    %4096 = vmatpush2.msra.mxu0 0.0
    %4097 = vmatprep.subr.mxu0 0.0
    %4098 = vmatpush2.msra.mxu0 0.0
    %4099 = vmatprep.subr.mxu0 0.0
    %4100 = vmatpush2.msra.mxu0 0.0
    %4101 = vmatprep.subr.mxu0 0.0
    %4102 = vmatpush2.msra.mxu0 0.0
    %4103 = vmatprep.subr.mxu0 0.0
    %4104 = vmatpush2.msra.mxu0 0.0
    %4105 = vmatprep.subr.mxu0 0.0
    %4106 = vmatpush2.msra.mxu0 0.0
    %4107 = vmatprep.subr.mxu0 0.0
    %4108 = vmatpush2.msra.mxu0 0.0
    %4109 = vmatprep.subr.mxu0 0.0
    %4110 = vmatpush2.msra.mxu0 0.0
    %4111 = vmatprep.subr.mxu0 0.0
    %4112 = vmatpush2.msra.mxu0 0.0
    %4113 = vmatprep.subr.mxu0 0.0
    %4114 = vmatpush2.msra.mxu0 0.0
    %4115 = vmatprep.subr.mxu0 0.0
    %4116 = vmatpush2.msra.mxu0 0.0
    %4117 = vmatprep.subr.mxu0 0.0
    %4118 = vmatpush2.msra.mxu0 0.0
    %4119 = vmatprep.subr.mxu0 0.0
    %4120 = vmatpush2.msra.mxu0 0.0
    %4121 = vmatprep.subr.mxu0 0.0
    %4122 = vmatpush2.msra.mxu0 0.0
    %4123 = vmatprep.mubr.f32.mxu0 0.0
    %4124 = vmatmul.mubr.f32.gmra.mxu0 %v4057
    %v4125 = vpop.f32.mrf.mxu0
    %v4126 = vadd.f32 0.0, %v4125
    %v4127 = vpop.f32.mrf.mxu0
    %4128 = vdwg.mxu0
    %v4130 = vrot.slane %v4126, 2
    %v4132 = vadd.f32 %v252, %v4130
    %v4133 = vxor.u32 %v4132, 2147483648
    %v4134 = vmul.f32 %v4133, 1.442695
    %v4135 = vpow.pop %v4134
    %v4136 = vadd.f32 %v4135, 1.0
    %v4137 = vrcp.pop %v4136
    %v4138 = vmul.f32 1.0, %v4137
    %v4139 = vtanh.pop %v4132
    %v4141 = vrot.slane %v3867, 6
    %v4143 = vmul.f32 %v4138, %v4141
    %4145 = vrot.lane.b32.xlu0 %v4139, 64
    %v4146 = vpop.permute.xlu0 %4145
    %v4148 = vmul.f32 %v4138, %v4146
    %4150 = vrot.lane.b32.xlu0 %v4148, 32
    %v4151 = vpop.permute.xlu0 %4150
    %v4153 = vadd.f32 %v4143, %v4151
    %v4154 = vtanh.pop %v4153
    %4156 = vrot.lane.b32.xlu0 %v4154, 64
    %v4157 = vpop.permute.xlu0 %4156
    %v4159 = vmul.f32 %v4138, %v4157
    %v4161 = vrot.slane %v4159, 6
    %4162 = vrot.lane.b32.xlu0 %v4161, 32
    %v4163 = vpop.permute.xlu0 %4162
    %v4164 = vsel %vm255, %v4163, 0
    %4166 = vmatprep.subr.mxu0 0.0
    %4167 = vmatpush1.msra.mxu0 0.0
    %4168 = vmatprep.subr.mxu0 0.0
    %4169 = vmatpush1.msra.mxu0 0.0
    %4170 = vmatprep.subr.mxu0 0.0
    %4171 = vmatpush1.msra.mxu0 0.0
    %4172 = vmatprep.subr.mxu0 0.0
    %4173 = vmatpush1.msra.mxu0 0.0
    %4174 = vmatprep.subr.mxu0 0.0
    %4175 = vmatpush1.msra.mxu0 0.0
    %4176 = vmatprep.subr.mxu0 0.0
    %4177 = vmatpush1.msra.mxu0 0.0
    %4178 = vmatprep.subr.mxu0 0.0
    %4179 = vmatpush1.msra.mxu0 0.0
    %4180 = vmatprep.subr.mxu0 0.0
    %4181 = vmatpush1.msra.mxu0 0.0
    %4182 = vmatprep.subr.mxu0 0.0
    %4183 = vmatpush1.msra.mxu0 0.0
    %4184 = vmatprep.subr.mxu0 0.0
    %4185 = vmatpush1.msra.mxu0 0.0
    %4186 = vmatprep.subr.mxu0 0.0
    %4187 = vmatpush1.msra.mxu0 0.0
    %4188 = vmatprep.subr.mxu0 0.0
    %4189 = vmatpush1.msra.mxu0 0.0
    %4190 = vmatprep.subr.mxu0 0.0
    %4191 = vmatpush1.msra.mxu0 %v1947
    %4192 = vmatprep.subr.mxu0 0.0
    %4193 = vmatpush1.msra.mxu0 %v1946
    %4194 = vmatprep.subr.mxu0 0.0
    %4195 = vmatpush1.msra.mxu0 %v1945
    %4196 = vmatprep.subr.mxu0 0.0
    %4197 = vmatpush1.msra.mxu0 %v1944
    %4198 = vmatprep.subr.mxu0 0.0
    %4199 = vmatpush2.msra.mxu0 0.0
    %4200 = vmatprep.subr.mxu0 0.0
    %4201 = vmatpush2.msra.mxu0 0.0
    %4202 = vmatprep.subr.mxu0 0.0
    %4203 = vmatpush2.msra.mxu0 0.0
    %4204 = vmatprep.subr.mxu0 0.0
    %4205 = vmatpush2.msra.mxu0 0.0
    %4206 = vmatprep.subr.mxu0 0.0
    %4207 = vmatpush2.msra.mxu0 0.0
    %4208 = vmatprep.subr.mxu0 0.0
    %4209 = vmatpush2.msra.mxu0 0.0
    %4210 = vmatprep.subr.mxu0 0.0
    %4211 = vmatpush2.msra.mxu0 0.0
    %4212 = vmatprep.subr.mxu0 0.0
    %4213 = vmatpush2.msra.mxu0 0.0
    %4214 = vmatprep.subr.mxu0 0.0
    %4215 = vmatpush2.msra.mxu0 0.0
    %4216 = vmatprep.subr.mxu0 0.0
    %4217 = vmatpush2.msra.mxu0 0.0
    %4218 = vmatprep.subr.mxu0 0.0
    %4219 = vmatpush2.msra.mxu0 0.0
    %4220 = vmatprep.subr.mxu0 0.0
    %4221 = vmatpush2.msra.mxu0 0.0
    %4222 = vmatprep.subr.mxu0 0.0
    %4223 = vmatpush2.msra.mxu0 0.0
    %4224 = vmatprep.subr.mxu0 0.0
    %4225 = vmatpush2.msra.mxu0 0.0
    %4226 = vmatprep.subr.mxu0 0.0
    %4227 = vmatpush2.msra.mxu0 0.0
    %4228 = vmatprep.subr.mxu0 0.0
    %4229 = vmatpush2.msra.mxu0 0.0
    %4230 = vmatprep.mubr.f32.mxu0 0.0
    %4231 = vmatmul.mubr.f32.gmra.mxu0 %v4164
    %v4232 = vpop.f32.mrf.mxu0
    %v4233 = vadd.f32 %v1953, %v4232
    %v4234 = vpop.f32.mrf.mxu0
    %4235 = vdwg.mxu0
    %s4236 = scalar_lea.vmem [#allocation2], 14
    %4237 = vst [vmem:[%s4236] sm:$0x3] %v4233
    %4238 = vrot.lane.b32.xlu0 %v4161, 96
    %v4239 = vpop.permute.xlu0 %4238
    %v4242 = vrot.slane %v4153, 6
    %4243 = vrot.lane.b32.xlu0 %v4242, 64
    %v4244 = vpop.permute.xlu0 %4243
    %v4246 = vsel %vm255, %v4050, %v4041
    %v4247 = vsel %vm359, %v4246, %v4239
    %vm4248 = vcmask 785408
    %v4249 = vsel %vm4248, %v4247, %v4244
    %4250 = vst [vmem:[%s13] sm:$0x3] %v4249
    // Predicated region
    $region50: #{new_seq2seq_forward.1} parent=1 // pred_check
      _
    $region51: #{new_seq2seq_forward.1} parent=1 // pred_check_branch
      %4252 = sbr.rel (0) target = $region53
    $region52: #{new_seq2seq_forward.1} parent=1 // pred_region
      %s4254 = ssub.s32 256, 256
      %4255 = vsyncadd [#allocation3], %s4254
      %s4256 = sshll.u32 [#allocation2], 4
      %s4257 = int_to_ptr.vmem [resolvable:$true] %s4256
      %4262 = dma.vmem_to_hbm [thread:$0]  %s4257, 256, %s12, [#allocation3], 32, 32, 2
    $region53: #{new_seq2seq_forward.1} parent=1 // pred_fallthru
      _
    // Predicated region
    $region54: #{new_seq2seq_forward.1} parent=1 // pred_check
      _
    $region55: #{new_seq2seq_forward.1} parent=1 // pred_check_branch
      %4264 = sbr.rel (0) target = $region57
    $region56: #{new_seq2seq_forward.1} parent=1 // pred_region
      _
    $region57: #{new_seq2seq_forward.1} parent=1 // pred_fallthru
      _
    // Predicated region
    $region58: #{new_seq2seq_forward.1} parent=1 // pred_check
      _
    $region59: #{new_seq2seq_forward.1} parent=1 // pred_check_branch
      %4266 = sbr.rel (0) target = $region61
    $region60: #{new_seq2seq_forward.1} parent=1 // pred_region
      %4267 = dma.done [#allocation3], 256
    $region61: #{new_seq2seq_forward.1} parent=1 // pred_fallthru
      _
    // Predicated region
    $region62: #{new_seq2seq_forward.1} parent=1 // pred_check
      _
    $region63: #{new_seq2seq_forward.1} parent=1 // pred_check_branch
      %4269 = sbr.rel (0) target = $region65
    $region64: #{new_seq2seq_forward.1} parent=1 // pred_region
      _
    $region65: #{new_seq2seq_forward.1} parent=1 // pred_fallthru
      _
    %4270 = vsyncpa [#allocation3], 1

</llo_original>
